<compile_context>
chip_gen: v6e
topology: v6e:2x2x1
jax: 0.10.0
libtpu: 0.0.40
codegen_flags: <defaults>
</compile_context>

<pallas_src>
import functools

import jax
import jax.numpy as jnp
from jax.experimental import pallas as pl
from jax.experimental.pallas import tpu as pltpu


# ----------------------------------------------------------------------------
# LSTM cell on pre-projected gates.  Gate column order is (i, f, o, g) so the
# three sigmoid gates form one contiguous 3H slab (single sigmoid pass) and
# the tanh gate is the trailing H slab (single tanh pass).
# ----------------------------------------------------------------------------
def _lstm_cell(gates_pre, h, c, whh, H):
    gates = gates_pre
    if whh is not None:   # recurrent term (skipped when h is known to be zero)
        gates = gates + jnp.dot(h, whh, preferred_element_type=jnp.float32)
    sig = jax.nn.sigmoid(gates[:, : 3 * H])
    i_g = sig[:, 0 * H:1 * H]
    f_g = sig[:, 1 * H:2 * H]
    o_g = sig[:, 2 * H:3 * H]
    g_g = jnp.tanh(gates[:, 3 * H:])
    c_new = f_g * c + i_g * g_g
    h_new = o_g * jnp.tanh(c_new)
    return h_new, c_new


# ----------------------------------------------------------------------------
# Fully fused kernel: all LSTM layers + fc + argmax in one invocation.
#
# refs layout (all VMEM, whole-array blocks):
#   refs[0]                      x_flat  [T*B, E]       (row = t*B + b)
#   refs[1 + 4*l .. 4 + 4*l]     per layer l: wih [E_in, 8H] (fwd||bwd, gate
#                                order i,f,o,g), whh_f [H,4H], whh_b [H,4H],
#                                bias [1, 8H] (b_ih + b_hh, fwd||bwd)
#   refs[1 + 4*L]                fc_w^T  [2H, C]
#   refs[2 + 4*L]                fc_b    [1, C]
#   refs[3 + 4*L]                pred    [B, 1]  int32   (output)
#   refs[4 + 4*L], refs[5 + 4*L] fwd/bwd VMEM scratch [T*B, H]
# ----------------------------------------------------------------------------
def _bilstm_fused_kernel(*refs, T, B, H, num_layers):
    x_ref = refs[0]
    fcw_ref = refs[1 + 4 * num_layers]
    fcb_ref = refs[2 + 4 * num_layers]
    pred_ref = refs[3 + 4 * num_layers]
    fwd_buf = refs[4 + 4 * num_layers]
    bwd_buf = refs[5 + 4 * num_layers]

    h_f = jnp.zeros((B, H), jnp.float32)
    h_b = jnp.zeros((B, H), jnp.float32)

    for layer in range(num_layers):
        wih = refs[1 + 4 * layer][...]
        whh_f = refs[2 + 4 * layer][...]
        bias = refs[4 + 4 * layer][...]

        # Hoisted input projection for both directions: one wide MXU matmul
        # instead of 2*T tiny matmuls on the serial critical path.  For layers
        # past the first, the previous layer's two direction halves feed in as
        # two row-aligned half matmuls (no [.., 2H] concatenation needed).
        if layer == 0:
            gx = jnp.dot(x_ref[...], wih,
                         preferred_element_type=jnp.float32) + bias
        else:
            gx = (jnp.dot(fwd_buf[...], wih[:H],
                          preferred_element_type=jnp.float32)
                  + jnp.dot(bwd_buf[...], wih[H:],
                            preferred_element_type=jnp.float32)
                  + bias)

        h_f = jnp.zeros((B, H), jnp.float32)
        c_f = jnp.zeros((B, H), jnp.float32)
        last = (layer == num_layers - 1)

        if not last:
            whh_b = refs[3 + 4 * layer][...]
            h_b = jnp.zeros((B, H), jnp.float32)
            c_b = jnp.zeros((B, H), jnp.float32)
            # T is tiny & static -> fully unrolled in-kernel time loop.
            for t in range(T):
                r = T - 1 - t
                h_f, c_f = _lstm_cell(gx[t * B:(t + 1) * B, :4 * H],
                                      h_f, c_f, whh_f, H)
                h_b, c_b = _lstm_cell(gx[r * B:(r + 1) * B, 4 * H:],
                                      h_b, c_b, whh_b, H)
                fwd_buf[t * B:(t + 1) * B, :] = h_f
                bwd_buf[r * B:(r + 1) * B, :] = h_b
        else:
            # Only out[:, -1, :] is needed downstream: forward half = forward
            # hidden after all T steps; backward half = backward hidden at
            # position T-1, which is ONE backward step from the zero initial
            # state (recurrent term vanishes).
            for t in range(T):
                h_f, c_f = _lstm_cell(gx[t * B:(t + 1) * B, :4 * H],
                                      h_f, c_f, whh_f, H)
            zero = jnp.zeros((B, H), jnp.float32)
            h_b, _ = _lstm_cell(gx[(T - 1) * B:T * B, 4 * H:],
                                zero, zero, None, H)

    # fc + argmax (softmax dropped: monotonic).
    fcw = fcw_ref[...]                                            # [2H, C]
    logits = (jnp.dot(h_f, fcw[:H], preferred_element_type=jnp.float32)
              + jnp.dot(h_b, fcw[H:], preferred_element_type=jnp.float32)
              + fcb_ref[...])                                     # [B, C]
    C = logits.shape[1]
    idx = jax.lax.broadcasted_iota(jnp.int32, (B, C), 1)
    m = jnp.max(logits, axis=1, keepdims=True)
    pred = jnp.min(jnp.where(logits == m, idx, C), axis=1, keepdims=True)
    pred_ref[...] = pred.astype(jnp.int32)


# ----------------------------------------------------------------------------
# Wrapper: one pallas_call for the whole forward pass.
# ----------------------------------------------------------------------------
@jax.jit
def bilstm_forward(x_bte, packed):
    B, T, E = x_bte.shape
    lstm = packed["lstm"]
    num_layers = len(lstm)
    H = lstm[0][1].shape[0]

    # [B, T, E] -> time-major flat [T*B, E] once (tiny XLA transpose).
    x_flat = jnp.transpose(x_bte, (1, 0, 2)).reshape(T * B, E)

    args = [x_flat]
    for wih, whh_f, whh_b, bias in lstm:
        args += [wih, whh_f, whh_b, bias]
    args += [packed["fc_w"], packed["fc_b"]]

    out = pl.pallas_call(
        functools.partial(_bilstm_fused_kernel,
                          T=T, B=B, H=H, num_layers=num_layers),
        out_shape=jax.ShapeDtypeStruct((B, 1), jnp.int32),
        in_specs=[pl.BlockSpec(memory_space=pltpu.MemorySpace.VMEM)
                  for _ in range(len(args))],
        out_specs=pl.BlockSpec(memory_space=pltpu.MemorySpace.VMEM),
        scratch_shapes=[pltpu.VMEM((T * B, H), jnp.float32),
                        pltpu.VMEM((T * B, H), jnp.float32)],
    )(*args)
    return out[:, 0]


# ----------------------------------------------------------------------------
# Parameters: PyTorch-layout init + packing into kernel layout
# ----------------------------------------------------------------------------
def _reorder_gates(w):
    """PyTorch gate order (i, f, g, o) -> kernel order (i, f, o, g), axis 0."""
    H = w.shape[0] // 4
    return jnp.concatenate([w[:2 * H], w[3 * H:4 * H], w[2 * H:3 * H]], axis=0)


def init_raw_params(key, embed_size, hidden_size, num_layers, num_classes):
    """PyTorch-layout params: per layer, per direction (w_ih, w_hh, b_ih, b_hh)."""
    H = hidden_size
    k = 1.0 / (H ** 0.5)
    layers = []
    for layer in range(num_layers):
        in_size = embed_size if layer == 0 else 2 * H
        dirs = []
        for _ in range(2):  # forward, reverse
            key, k1, k2, k3, k4 = jax.random.split(key, 5)
            w_ih = jax.random.uniform(k1, (4 * H, in_size), jnp.float32, -k, k)
            w_hh = jax.random.uniform(k2, (4 * H, H), jnp.float32, -k, k)
            b_ih = jax.random.uniform(k3, (4 * H,), jnp.float32, -k, k)
            b_hh = jax.random.uniform(k4, (4 * H,), jnp.float32, -k, k)
            dirs.append((w_ih, w_hh, b_ih, b_hh))
        layers.append(tuple(dirs))
    key, kf1, kf2 = jax.random.split(key, 3)
    kc = 1.0 / ((2 * H) ** 0.5)
    fc_w = jax.random.uniform(kf1, (num_classes, 2 * H), jnp.float32, -kc, kc)
    fc_b = jax.random.uniform(kf2, (num_classes,), jnp.float32, -kc, kc)
    return {"lstm": layers, "fc_w": fc_w, "fc_b": fc_b}


def pack_params(raw):
    """Kernel layout: fwd||bwd stacked [E_in, 8H] input weights (wide MXU
    tiles), transposed [H, 4H] recurrent weights, fused biases."""
    layers = []
    for fwd, bwd in raw["lstm"]:
        w_ih_f, w_hh_f, b_ih_f, b_hh_f = fwd
        w_ih_b, w_hh_b, b_ih_b, b_hh_b = bwd
        wih = jnp.concatenate(
            [_reorder_gates(w_ih_f).T, _reorder_gates(w_ih_b).T], axis=1)
        whh_f = _reorder_gates(w_hh_f).T
        whh_b = _reorder_gates(w_hh_b).T
        bias = jnp.concatenate(
            [_reorder_gates(b_ih_f + b_hh_f),
             _reorder_gates(b_ih_b + b_hh_b)], axis=0)[None, :]
        layers.append((wih, whh_f, whh_b, bias))
    return {"lstm": layers,
            "fc_w": raw["fc_w"].T,
            "fc_b": raw["fc_b"][None, :]}


# ----------------------------------------------------------------------------
# Pure-JAX reference (PyTorch semantics, for correctness check)
# ----------------------------------------------------------------------------
def _ref_lstm_dir(x_tbe, w_ih, w_hh, b_ih, b_hh):
    H = w_hh.shape[1]
    B = x_tbe.shape[1]

    def step(carry, x_t):
        h, c = carry
        gates = x_t @ w_ih.T + h @ w_hh.T + b_ih + b_hh
        i = jax.nn.sigmoid(gates[:, 0 * H:1 * H])
        f = jax.nn.sigmoid(gates[:, 1 * H:2 * H])
        g = jnp.tanh(gates[:, 2 * H:3 * H])
        o = jax.nn.sigmoid(gates[:, 3 * H:4 * H])
        c = f * c + i * g
        h = o * jnp.tanh(c)
        return (h, c), h

    init = (jnp.zeros((B, H)), jnp.zeros((B, H)))
    _, hs = jax.lax.scan(step, init, x_tbe)
    return hs


def ref_forward(x_bte, raw):
    layer_in = jnp.transpose(x_bte, (1, 0, 2))
    for fwd, bwd in raw["lstm"]:
        h_f = _ref_lstm_dir(layer_in, *fwd)
        h_b = _ref_lstm_dir(layer_in[::-1], *bwd)[::-1]
        layer_in = jnp.concatenate([h_f, h_b], axis=-1)
    logits = layer_in[-1] @ raw["fc_w"].T + raw["fc_b"]
    probs = jax.nn.softmax(logits, axis=1)
    return jnp.argmax(probs, axis=1).astype(jnp.int32)


if __name__ == "__main__":
    # Shapes consistent with the module's forward:
    #   batch B=2, seq T=8, embed_size E=32, hidden_size H=32,
    #   num_layers=2, num_classes=4
    B, T, E, H, L, C = 2, 8, 32, 32, 2, 4

    key = jax.random.PRNGKey(0)
    kx, kp = jax.random.split(key)
    x = jax.random.normal(kx, (B, T, E), jnp.float32)  # stands in for BERT last_hidden_state
    raw = init_raw_params(kp, E, H, L, C)
    packed = pack_params(raw)

    pred = bilstm_forward(x, packed)
    pred = jax.block_until_ready(pred)

    ref = ref_forward(x, raw)
    assert pred.shape == (B,)
    assert jnp.array_equal(pred, ref), (pred, ref)

    print("KERNEL_OK")
</pallas_src>

<mosaic_0001>
module attributes {stable_mosaic.version = 11 : i64} {
  func.func @_bilstm_fused_kernel(%arg0: memref<16x32xf32, #tpu.memory_space<vmem>>, %arg1: memref<32x256xf32, #tpu.memory_space<vmem>>, %arg2: memref<32x128xf32, #tpu.memory_space<vmem>>, %arg3: memref<32x128xf32, #tpu.memory_space<vmem>>, %arg4: memref<1x256xf32, #tpu.memory_space<vmem>>, %arg5: memref<64x256xf32, #tpu.memory_space<vmem>>, %arg6: memref<32x128xf32, #tpu.memory_space<vmem>>, %arg7: memref<32x128xf32, #tpu.memory_space<vmem>>, %arg8: memref<1x256xf32, #tpu.memory_space<vmem>>, %arg9: memref<64x4xf32, #tpu.memory_space<vmem>>, %arg10: memref<1x4xf32, #tpu.memory_space<vmem>>, %arg11: memref<2x1xi32, #tpu.memory_space<vmem>>, %arg12: memref<16x32xf32, #tpu.memory_space<vmem>>, %arg13: memref<16x32xf32, #tpu.memory_space<vmem>>) attributes {dimension_semantics = [], scalar_prefetch = 0 : i64, scratch_operands = 2 : i64, tpu.core_type = #tpu.core_type<tc>} {
    %c0 = arith.constant 0 : index
    %c0_0 = arith.constant 0 : index
    %0 = vector.load %arg1[%c0, %c0_0] : memref<32x256xf32, #tpu.memory_space<vmem>>, vector<32x256xf32>
    %c0_1 = arith.constant 0 : index
    %c0_2 = arith.constant 0 : index
    %1 = vector.load %arg2[%c0_1, %c0_2] : memref<32x128xf32, #tpu.memory_space<vmem>>, vector<32x128xf32>
    %c0_3 = arith.constant 0 : index
    %c0_4 = arith.constant 0 : index
    %2 = vector.load %arg4[%c0_3, %c0_4] : memref<1x256xf32, #tpu.memory_space<vmem>>, vector<1x256xf32>
    %c0_5 = arith.constant 0 : index
    %c0_6 = arith.constant 0 : index
    %3 = vector.load %arg0[%c0_5, %c0_6] : memref<16x32xf32, #tpu.memory_space<vmem>>, vector<16x32xf32>
    %cst = arith.constant dense<0.000000e+00> : vector<16x256xf32>
    %4 = tpu.matmul %3, %0, %cst {dimension_numbers = #tpu.dot_dimension_numbers<[1], [0], [0], [1], [0, 0, 1, 1], [], []>} : vector<16x32xf32>, vector<32x256xf32>, vector<16x256xf32> -> vector<16x256xf32>
    %5 = vector.broadcast %2 : vector<1x256xf32> to vector<16x256xf32>
    %6 = arith.addf %4, %5 : vector<16x256xf32>
    %cst_7 = arith.constant 0.000000e+00 : f32
    %7 = vector.broadcast %cst_7 : f32 to vector<2x32xf32>
    %cst_8 = arith.constant 0.000000e+00 : f32
    %8 = vector.broadcast %cst_8 : f32 to vector<2x32xf32>
    %c0_9 = arith.constant 0 : index
    %c0_10 = arith.constant 0 : index
    %9 = vector.load %arg3[%c0_9, %c0_10] : memref<32x128xf32, #tpu.memory_space<vmem>>, vector<32x128xf32>
    %cst_11 = arith.constant 0.000000e+00 : f32
    %10 = vector.broadcast %cst_11 : f32 to vector<2x32xf32>
    %cst_12 = arith.constant 0.000000e+00 : f32
    %11 = vector.broadcast %cst_12 : f32 to vector<2x32xf32>
    %12 = vector.extract_strided_slice %6 {offsets = [0, 0], sizes = [2, 128], strides = [1, 1]} : vector<16x256xf32> to vector<2x128xf32>
    %cst_13 = arith.constant dense<0.000000e+00> : vector<2x128xf32>
    %13 = tpu.matmul %7, %1, %cst_13 {dimension_numbers = #tpu.dot_dimension_numbers<[1], [0], [0], [1], [0, 0, 1, 1], [], []>} : vector<2x32xf32>, vector<32x128xf32>, vector<2x128xf32> -> vector<2x128xf32>
    %14 = arith.addf %12, %13 : vector<2x128xf32>
    %15 = vector.extract_strided_slice %14 {offsets = [0, 0], sizes = [2, 96], strides = [1, 1]} : vector<2x128xf32> to vector<2x96xf32>
    %16 = arith.negf %15 : vector<2x96xf32>
    %17 = math.exp %16 : vector<2x96xf32>
    %cst_14 = arith.constant 1.000000e+00 : f32
    %18 = vector.broadcast %cst_14 : f32 to vector<2x96xf32>
    %19 = arith.addf %18, %17 : vector<2x96xf32>
    %20 = arith.divf %18, %19 : vector<2x96xf32>
    %21 = vector.extract_strided_slice %20 {offsets = [0, 0], sizes = [2, 32], strides = [1, 1]} : vector<2x96xf32> to vector<2x32xf32>
    %22 = vector.extract_strided_slice %20 {offsets = [0, 32], sizes = [2, 32], strides = [1, 1]} : vector<2x96xf32> to vector<2x32xf32>
    %23 = vector.extract_strided_slice %20 {offsets = [0, 64], sizes = [2, 32], strides = [1, 1]} : vector<2x96xf32> to vector<2x32xf32>
    %24 = vector.extract_strided_slice %14 {offsets = [0, 96], sizes = [2, 32], strides = [1, 1]} : vector<2x128xf32> to vector<2x32xf32>
    %25 = math.tanh %24 : vector<2x32xf32>
    %26 = arith.mulf %22, %8 : vector<2x32xf32>
    %27 = arith.mulf %21, %25 : vector<2x32xf32>
    %28 = arith.addf %26, %27 : vector<2x32xf32>
    %29 = math.tanh %28 : vector<2x32xf32>
    %30 = arith.mulf %23, %29 : vector<2x32xf32>
    %31 = vector.extract_strided_slice %6 {offsets = [14, 128], sizes = [2, 128], strides = [1, 1]} : vector<16x256xf32> to vector<2x128xf32>
    %cst_15 = arith.constant dense<0.000000e+00> : vector<2x128xf32>
    %32 = tpu.matmul %10, %9, %cst_15 {dimension_numbers = #tpu.dot_dimension_numbers<[1], [0], [0], [1], [0, 0, 1, 1], [], []>} : vector<2x32xf32>, vector<32x128xf32>, vector<2x128xf32> -> vector<2x128xf32>
    %33 = arith.addf %31, %32 : vector<2x128xf32>
    %34 = vector.extract_strided_slice %33 {offsets = [0, 0], sizes = [2, 96], strides = [1, 1]} : vector<2x128xf32> to vector<2x96xf32>
    %35 = arith.negf %34 : vector<2x96xf32>
    %36 = math.exp %35 : vector<2x96xf32>
    %cst_16 = arith.constant 1.000000e+00 : f32
    %37 = vector.broadcast %cst_16 : f32 to vector<2x96xf32>
    %38 = arith.addf %37, %36 : vector<2x96xf32>
    %39 = arith.divf %37, %38 : vector<2x96xf32>
    %40 = vector.extract_strided_slice %39 {offsets = [0, 0], sizes = [2, 32], strides = [1, 1]} : vector<2x96xf32> to vector<2x32xf32>
    %41 = vector.extract_strided_slice %39 {offsets = [0, 32], sizes = [2, 32], strides = [1, 1]} : vector<2x96xf32> to vector<2x32xf32>
    %42 = vector.extract_strided_slice %39 {offsets = [0, 64], sizes = [2, 32], strides = [1, 1]} : vector<2x96xf32> to vector<2x32xf32>
    %43 = vector.extract_strided_slice %33 {offsets = [0, 96], sizes = [2, 32], strides = [1, 1]} : vector<2x128xf32> to vector<2x32xf32>
    %44 = math.tanh %43 : vector<2x32xf32>
    %45 = arith.mulf %41, %11 : vector<2x32xf32>
    %46 = arith.mulf %40, %44 : vector<2x32xf32>
    %47 = arith.addf %45, %46 : vector<2x32xf32>
    %48 = math.tanh %47 : vector<2x32xf32>
    %49 = arith.mulf %42, %48 : vector<2x32xf32>
    %c0_17 = arith.constant 0 : index
    %c0_18 = arith.constant 0 : index
    %50 = vector.load %arg12[%c0_17, %c0_18] : memref<16x32xf32, #tpu.memory_space<vmem>>, vector<2x32xf32>
    tpu.vector_store %arg12[%c0_17, %c0_18], %30 {strides = array<i32>} : memref<16x32xf32, #tpu.memory_space<vmem>>, vector<2x32xf32>,
    %c14 = arith.constant 14 : index
    %c0_19 = arith.constant 0 : index
    %51 = vector.load %arg13[%c14, %c0_19] : memref<16x32xf32, #tpu.memory_space<vmem>>, vector<2x32xf32>
    tpu.vector_store %arg13[%c14, %c0_19], %49 {strides = array<i32>} : memref<16x32xf32, #tpu.memory_space<vmem>>, vector<2x32xf32>,
    %52 = vector.extract_strided_slice %6 {offsets = [2, 0], sizes = [2, 128], strides = [1, 1]} : vector<16x256xf32> to vector<2x128xf32>
    %cst_20 = arith.constant dense<0.000000e+00> : vector<2x128xf32>
    %53 = tpu.matmul %30, %1, %cst_20 {dimension_numbers = #tpu.dot_dimension_numbers<[1], [0], [0], [1], [0, 0, 1, 1], [], []>} : vector<2x32xf32>, vector<32x128xf32>, vector<2x128xf32> -> vector<2x128xf32>
    %54 = arith.addf %52, %53 : vector<2x128xf32>
    %55 = vector.extract_strided_slice %54 {offsets = [0, 0], sizes = [2, 96], strides = [1, 1]} : vector<2x128xf32> to vector<2x96xf32>
    %56 = arith.negf %55 : vector<2x96xf32>
    %57 = math.exp %56 : vector<2x96xf32>
    %cst_21 = arith.constant 1.000000e+00 : f32
    %58 = vector.broadcast %cst_21 : f32 to vector<2x96xf32>
    %59 = arith.addf %58, %57 : vector<2x96xf32>
    %60 = arith.divf %58, %59 : vector<2x96xf32>
    %61 = vector.extract_strided_slice %60 {offsets = [0, 0], sizes = [2, 32], strides = [1, 1]} : vector<2x96xf32> to vector<2x32xf32>
    %62 = vector.extract_strided_slice %60 {offsets = [0, 32], sizes = [2, 32], strides = [1, 1]} : vector<2x96xf32> to vector<2x32xf32>
    %63 = vector.extract_strided_slice %60 {offsets = [0, 64], sizes = [2, 32], strides = [1, 1]} : vector<2x96xf32> to vector<2x32xf32>
    %64 = vector.extract_strided_slice %54 {offsets = [0, 96], sizes = [2, 32], strides = [1, 1]} : vector<2x128xf32> to vector<2x32xf32>
    %65 = math.tanh %64 : vector<2x32xf32>
    %66 = arith.mulf %62, %28 : vector<2x32xf32>
    %67 = arith.mulf %61, %65 : vector<2x32xf32>
    %68 = arith.addf %66, %67 : vector<2x32xf32>
    %69 = math.tanh %68 : vector<2x32xf32>
    %70 = arith.mulf %63, %69 : vector<2x32xf32>
    %71 = vector.extract_strided_slice %6 {offsets = [12, 128], sizes = [2, 128], strides = [1, 1]} : vector<16x256xf32> to vector<2x128xf32>
    %cst_22 = arith.constant dense<0.000000e+00> : vector<2x128xf32>
    %72 = tpu.matmul %49, %9, %cst_22 {dimension_numbers = #tpu.dot_dimension_numbers<[1], [0], [0], [1], [0, 0, 1, 1], [], []>} : vector<2x32xf32>, vector<32x128xf32>, vector<2x128xf32> -> vector<2x128xf32>
    %73 = arith.addf %71, %72 : vector<2x128xf32>
    %74 = vector.extract_strided_slice %73 {offsets = [0, 0], sizes = [2, 96], strides = [1, 1]} : vector<2x128xf32> to vector<2x96xf32>
    %75 = arith.negf %74 : vector<2x96xf32>
    %76 = math.exp %75 : vector<2x96xf32>
    %cst_23 = arith.constant 1.000000e+00 : f32
    %77 = vector.broadcast %cst_23 : f32 to vector<2x96xf32>
    %78 = arith.addf %77, %76 : vector<2x96xf32>
    %79 = arith.divf %77, %78 : vector<2x96xf32>
    %80 = vector.extract_strided_slice %79 {offsets = [0, 0], sizes = [2, 32], strides = [1, 1]} : vector<2x96xf32> to vector<2x32xf32>
    %81 = vector.extract_strided_slice %79 {offsets = [0, 32], sizes = [2, 32], strides = [1, 1]} : vector<2x96xf32> to vector<2x32xf32>
    %82 = vector.extract_strided_slice %79 {offsets = [0, 64], sizes = [2, 32], strides = [1, 1]} : vector<2x96xf32> to vector<2x32xf32>
    %83 = vector.extract_strided_slice %73 {offsets = [0, 96], sizes = [2, 32], strides = [1, 1]} : vector<2x128xf32> to vector<2x32xf32>
    %84 = math.tanh %83 : vector<2x32xf32>
    %85 = arith.mulf %81, %47 : vector<2x32xf32>
    %86 = arith.mulf %80, %84 : vector<2x32xf32>
    %87 = arith.addf %85, %86 : vector<2x32xf32>
    %88 = math.tanh %87 : vector<2x32xf32>
    %89 = arith.mulf %82, %88 : vector<2x32xf32>
    %c2 = arith.constant 2 : index
    %c0_24 = arith.constant 0 : index
    %90 = vector.load %arg12[%c2, %c0_24] : memref<16x32xf32, #tpu.memory_space<vmem>>, vector<2x32xf32>
    tpu.vector_store %arg12[%c2, %c0_24], %70 {strides = array<i32>} : memref<16x32xf32, #tpu.memory_space<vmem>>, vector<2x32xf32>,
    %c12 = arith.constant 12 : index
    %c0_25 = arith.constant 0 : index
    %91 = vector.load %arg13[%c12, %c0_25] : memref<16x32xf32, #tpu.memory_space<vmem>>, vector<2x32xf32>
    tpu.vector_store %arg13[%c12, %c0_25], %89 {strides = array<i32>} : memref<16x32xf32, #tpu.memory_space<vmem>>, vector<2x32xf32>,
    %92 = vector.extract_strided_slice %6 {offsets = [4, 0], sizes = [2, 128], strides = [1, 1]} : vector<16x256xf32> to vector<2x128xf32>
    %cst_26 = arith.constant dense<0.000000e+00> : vector<2x128xf32>
    %93 = tpu.matmul %70, %1, %cst_26 {dimension_numbers = #tpu.dot_dimension_numbers<[1], [0], [0], [1], [0, 0, 1, 1], [], []>} : vector<2x32xf32>, vector<32x128xf32>, vector<2x128xf32> -> vector<2x128xf32>
    %94 = arith.addf %92, %93 : vector<2x128xf32>
    %95 = vector.extract_strided_slice %94 {offsets = [0, 0], sizes = [2, 96], strides = [1, 1]} : vector<2x128xf32> to vector<2x96xf32>
    %96 = arith.negf %95 : vector<2x96xf32>
    %97 = math.exp %96 : vector<2x96xf32>
    %cst_27 = arith.constant 1.000000e+00 : f32
    %98 = vector.broadcast %cst_27 : f32 to vector<2x96xf32>
    %99 = arith.addf %98, %97 : vector<2x96xf32>
    %100 = arith.divf %98, %99 : vector<2x96xf32>
    %101 = vector.extract_strided_slice %100 {offsets = [0, 0], sizes = [2, 32], strides = [1, 1]} : vector<2x96xf32> to vector<2x32xf32>
    %102 = vector.extract_strided_slice %100 {offsets = [0, 32], sizes = [2, 32], strides = [1, 1]} : vector<2x96xf32> to vector<2x32xf32>
    %103 = vector.extract_strided_slice %100 {offsets = [0, 64], sizes = [2, 32], strides = [1, 1]} : vector<2x96xf32> to vector<2x32xf32>
    %104 = vector.extract_strided_slice %94 {offsets = [0, 96], sizes = [2, 32], strides = [1, 1]} : vector<2x128xf32> to vector<2x32xf32>
    %105 = math.tanh %104 : vector<2x32xf32>
    %106 = arith.mulf %102, %68 : vector<2x32xf32>
    %107 = arith.mulf %101, %105 : vector<2x32xf32>
    %108 = arith.addf %106, %107 : vector<2x32xf32>
    %109 = math.tanh %108 : vector<2x32xf32>
    %110 = arith.mulf %103, %109 : vector<2x32xf32>
    %111 = vector.extract_strided_slice %6 {offsets = [10, 128], sizes = [2, 128], strides = [1, 1]} : vector<16x256xf32> to vector<2x128xf32>
    %cst_28 = arith.constant dense<0.000000e+00> : vector<2x128xf32>
    %112 = tpu.matmul %89, %9, %cst_28 {dimension_numbers = #tpu.dot_dimension_numbers<[1], [0], [0], [1], [0, 0, 1, 1], [], []>} : vector<2x32xf32>, vector<32x128xf32>, vector<2x128xf32> -> vector<2x128xf32>
    %113 = arith.addf %111, %112 : vector<2x128xf32>
    %114 = vector.extract_strided_slice %113 {offsets = [0, 0], sizes = [2, 96], strides = [1, 1]} : vector<2x128xf32> to vector<2x96xf32>
    %115 = arith.negf %114 : vector<2x96xf32>
    %116 = math.exp %115 : vector<2x96xf32>
    %cst_29 = arith.constant 1.000000e+00 : f32
    %117 = vector.broadcast %cst_29 : f32 to vector<2x96xf32>
    %118 = arith.addf %117, %116 : vector<2x96xf32>
    %119 = arith.divf %117, %118 : vector<2x96xf32>
    %120 = vector.extract_strided_slice %119 {offsets = [0, 0], sizes = [2, 32], strides = [1, 1]} : vector<2x96xf32> to vector<2x32xf32>
    %121 = vector.extract_strided_slice %119 {offsets = [0, 32], sizes = [2, 32], strides = [1, 1]} : vector<2x96xf32> to vector<2x32xf32>
    %122 = vector.extract_strided_slice %119 {offsets = [0, 64], sizes = [2, 32], strides = [1, 1]} : vector<2x96xf32> to vector<2x32xf32>
    %123 = vector.extract_strided_slice %113 {offsets = [0, 96], sizes = [2, 32], strides = [1, 1]} : vector<2x128xf32> to vector<2x32xf32>
    %124 = math.tanh %123 : vector<2x32xf32>
    %125 = arith.mulf %121, %87 : vector<2x32xf32>
    %126 = arith.mulf %120, %124 : vector<2x32xf32>
    %127 = arith.addf %125, %126 : vector<2x32xf32>
    %128 = math.tanh %127 : vector<2x32xf32>
    %129 = arith.mulf %122, %128 : vector<2x32xf32>
    %c4 = arith.constant 4 : index
    %c0_30 = arith.constant 0 : index
    %130 = vector.load %arg12[%c4, %c0_30] : memref<16x32xf32, #tpu.memory_space<vmem>>, vector<2x32xf32>
    tpu.vector_store %arg12[%c4, %c0_30], %110 {strides = array<i32>} : memref<16x32xf32, #tpu.memory_space<vmem>>, vector<2x32xf32>,
    %c10 = arith.constant 10 : index
    %c0_31 = arith.constant 0 : index
    %131 = vector.load %arg13[%c10, %c0_31] : memref<16x32xf32, #tpu.memory_space<vmem>>, vector<2x32xf32>
    tpu.vector_store %arg13[%c10, %c0_31], %129 {strides = array<i32>} : memref<16x32xf32, #tpu.memory_space<vmem>>, vector<2x32xf32>,
    %132 = vector.extract_strided_slice %6 {offsets = [6, 0], sizes = [2, 128], strides = [1, 1]} : vector<16x256xf32> to vector<2x128xf32>
    %cst_32 = arith.constant dense<0.000000e+00> : vector<2x128xf32>
    %133 = tpu.matmul %110, %1, %cst_32 {dimension_numbers = #tpu.dot_dimension_numbers<[1], [0], [0], [1], [0, 0, 1, 1], [], []>} : vector<2x32xf32>, vector<32x128xf32>, vector<2x128xf32> -> vector<2x128xf32>
    %134 = arith.addf %132, %133 : vector<2x128xf32>
    %135 = vector.extract_strided_slice %134 {offsets = [0, 0], sizes = [2, 96], strides = [1, 1]} : vector<2x128xf32> to vector<2x96xf32>
    %136 = arith.negf %135 : vector<2x96xf32>
    %137 = math.exp %136 : vector<2x96xf32>
    %cst_33 = arith.constant 1.000000e+00 : f32
    %138 = vector.broadcast %cst_33 : f32 to vector<2x96xf32>
    %139 = arith.addf %138, %137 : vector<2x96xf32>
    %140 = arith.divf %138, %139 : vector<2x96xf32>
    %141 = vector.extract_strided_slice %140 {offsets = [0, 0], sizes = [2, 32], strides = [1, 1]} : vector<2x96xf32> to vector<2x32xf32>
    %142 = vector.extract_strided_slice %140 {offsets = [0, 32], sizes = [2, 32], strides = [1, 1]} : vector<2x96xf32> to vector<2x32xf32>
    %143 = vector.extract_strided_slice %140 {offsets = [0, 64], sizes = [2, 32], strides = [1, 1]} : vector<2x96xf32> to vector<2x32xf32>
    %144 = vector.extract_strided_slice %134 {offsets = [0, 96], sizes = [2, 32], strides = [1, 1]} : vector<2x128xf32> to vector<2x32xf32>
    %145 = math.tanh %144 : vector<2x32xf32>
    %146 = arith.mulf %142, %108 : vector<2x32xf32>
    %147 = arith.mulf %141, %145 : vector<2x32xf32>
    %148 = arith.addf %146, %147 : vector<2x32xf32>
    %149 = math.tanh %148 : vector<2x32xf32>
    %150 = arith.mulf %143, %149 : vector<2x32xf32>
    %151 = vector.extract_strided_slice %6 {offsets = [8, 128], sizes = [2, 128], strides = [1, 1]} : vector<16x256xf32> to vector<2x128xf32>
    %cst_34 = arith.constant dense<0.000000e+00> : vector<2x128xf32>
    %152 = tpu.matmul %129, %9, %cst_34 {dimension_numbers = #tpu.dot_dimension_numbers<[1], [0], [0], [1], [0, 0, 1, 1], [], []>} : vector<2x32xf32>, vector<32x128xf32>, vector<2x128xf32> -> vector<2x128xf32>
    %153 = arith.addf %151, %152 : vector<2x128xf32>
    %154 = vector.extract_strided_slice %153 {offsets = [0, 0], sizes = [2, 96], strides = [1, 1]} : vector<2x128xf32> to vector<2x96xf32>
    %155 = arith.negf %154 : vector<2x96xf32>
    %156 = math.exp %155 : vector<2x96xf32>
    %cst_35 = arith.constant 1.000000e+00 : f32
    %157 = vector.broadcast %cst_35 : f32 to vector<2x96xf32>
    %158 = arith.addf %157, %156 : vector<2x96xf32>
    %159 = arith.divf %157, %158 : vector<2x96xf32>
    %160 = vector.extract_strided_slice %159 {offsets = [0, 0], sizes = [2, 32], strides = [1, 1]} : vector<2x96xf32> to vector<2x32xf32>
    %161 = vector.extract_strided_slice %159 {offsets = [0, 32], sizes = [2, 32], strides = [1, 1]} : vector<2x96xf32> to vector<2x32xf32>
    %162 = vector.extract_strided_slice %159 {offsets = [0, 64], sizes = [2, 32], strides = [1, 1]} : vector<2x96xf32> to vector<2x32xf32>
    %163 = vector.extract_strided_slice %153 {offsets = [0, 96], sizes = [2, 32], strides = [1, 1]} : vector<2x128xf32> to vector<2x32xf32>
    %164 = math.tanh %163 : vector<2x32xf32>
    %165 = arith.mulf %161, %127 : vector<2x32xf32>
    %166 = arith.mulf %160, %164 : vector<2x32xf32>
    %167 = arith.addf %165, %166 : vector<2x32xf32>
    %168 = math.tanh %167 : vector<2x32xf32>
    %169 = arith.mulf %162, %168 : vector<2x32xf32>
    %c6 = arith.constant 6 : index
    %c0_36 = arith.constant 0 : index
    %170 = vector.load %arg12[%c6, %c0_36] : memref<16x32xf32, #tpu.memory_space<vmem>>, vector<2x32xf32>
    tpu.vector_store %arg12[%c6, %c0_36], %150 {strides = array<i32>} : memref<16x32xf32, #tpu.memory_space<vmem>>, vector<2x32xf32>,
    %c8 = arith.constant 8 : index
    %c0_37 = arith.constant 0 : index
    %171 = vector.load %arg13[%c8, %c0_37] : memref<16x32xf32, #tpu.memory_space<vmem>>, vector<2x32xf32>
    tpu.vector_store %arg13[%c8, %c0_37], %169 {strides = array<i32>} : memref<16x32xf32, #tpu.memory_space<vmem>>, vector<2x32xf32>,
    %172 = vector.extract_strided_slice %6 {offsets = [8, 0], sizes = [2, 128], strides = [1, 1]} : vector<16x256xf32> to vector<2x128xf32>
    %cst_38 = arith.constant dense<0.000000e+00> : vector<2x128xf32>
    %173 = tpu.matmul %150, %1, %cst_38 {dimension_numbers = #tpu.dot_dimension_numbers<[1], [0], [0], [1], [0, 0, 1, 1], [], []>} : vector<2x32xf32>, vector<32x128xf32>, vector<2x128xf32> -> vector<2x128xf32>
    %174 = arith.addf %172, %173 : vector<2x128xf32>
    %175 = vector.extract_strided_slice %174 {offsets = [0, 0], sizes = [2, 96], strides = [1, 1]} : vector<2x128xf32> to vector<2x96xf32>
    %176 = arith.negf %175 : vector<2x96xf32>
    %177 = math.exp %176 : vector<2x96xf32>
    %cst_39 = arith.constant 1.000000e+00 : f32
    %178 = vector.broadcast %cst_39 : f32 to vector<2x96xf32>
    %179 = arith.addf %178, %177 : vector<2x96xf32>
    %180 = arith.divf %178, %179 : vector<2x96xf32>
    %181 = vector.extract_strided_slice %180 {offsets = [0, 0], sizes = [2, 32], strides = [1, 1]} : vector<2x96xf32> to vector<2x32xf32>
    %182 = vector.extract_strided_slice %180 {offsets = [0, 32], sizes = [2, 32], strides = [1, 1]} : vector<2x96xf32> to vector<2x32xf32>
    %183 = vector.extract_strided_slice %180 {offsets = [0, 64], sizes = [2, 32], strides = [1, 1]} : vector<2x96xf32> to vector<2x32xf32>
    %184 = vector.extract_strided_slice %174 {offsets = [0, 96], sizes = [2, 32], strides = [1, 1]} : vector<2x128xf32> to vector<2x32xf32>
    %185 = math.tanh %184 : vector<2x32xf32>
    %186 = arith.mulf %182, %148 : vector<2x32xf32>
    %187 = arith.mulf %181, %185 : vector<2x32xf32>
    %188 = arith.addf %186, %187 : vector<2x32xf32>
    %189 = math.tanh %188 : vector<2x32xf32>
    %190 = arith.mulf %183, %189 : vector<2x32xf32>
    %191 = vector.extract_strided_slice %6 {offsets = [6, 128], sizes = [2, 128], strides = [1, 1]} : vector<16x256xf32> to vector<2x128xf32>
    %cst_40 = arith.constant dense<0.000000e+00> : vector<2x128xf32>
    %192 = tpu.matmul %169, %9, %cst_40 {dimension_numbers = #tpu.dot_dimension_numbers<[1], [0], [0], [1], [0, 0, 1, 1], [], []>} : vector<2x32xf32>, vector<32x128xf32>, vector<2x128xf32> -> vector<2x128xf32>
    %193 = arith.addf %191, %192 : vector<2x128xf32>
    %194 = vector.extract_strided_slice %193 {offsets = [0, 0], sizes = [2, 96], strides = [1, 1]} : vector<2x128xf32> to vector<2x96xf32>
    %195 = arith.negf %194 : vector<2x96xf32>
    %196 = math.exp %195 : vector<2x96xf32>
    %cst_41 = arith.constant 1.000000e+00 : f32
    %197 = vector.broadcast %cst_41 : f32 to vector<2x96xf32>
    %198 = arith.addf %197, %196 : vector<2x96xf32>
    %199 = arith.divf %197, %198 : vector<2x96xf32>
    %200 = vector.extract_strided_slice %199 {offsets = [0, 0], sizes = [2, 32], strides = [1, 1]} : vector<2x96xf32> to vector<2x32xf32>
    %201 = vector.extract_strided_slice %199 {offsets = [0, 32], sizes = [2, 32], strides = [1, 1]} : vector<2x96xf32> to vector<2x32xf32>
    %202 = vector.extract_strided_slice %199 {offsets = [0, 64], sizes = [2, 32], strides = [1, 1]} : vector<2x96xf32> to vector<2x32xf32>
    %203 = vector.extract_strided_slice %193 {offsets = [0, 96], sizes = [2, 32], strides = [1, 1]} : vector<2x128xf32> to vector<2x32xf32>
    %204 = math.tanh %203 : vector<2x32xf32>
    %205 = arith.mulf %201, %167 : vector<2x32xf32>
    %206 = arith.mulf %200, %204 : vector<2x32xf32>
    %207 = arith.addf %205, %206 : vector<2x32xf32>
    %208 = math.tanh %207 : vector<2x32xf32>
    %209 = arith.mulf %202, %208 : vector<2x32xf32>
    %c8_42 = arith.constant 8 : index
    %c0_43 = arith.constant 0 : index
    %210 = vector.load %arg12[%c8_42, %c0_43] : memref<16x32xf32, #tpu.memory_space<vmem>>, vector<2x32xf32>
    tpu.vector_store %arg12[%c8_42, %c0_43], %190 {strides = array<i32>} : memref<16x32xf32, #tpu.memory_space<vmem>>, vector<2x32xf32>,
    %c6_44 = arith.constant 6 : index
    %c0_45 = arith.constant 0 : index
    %211 = vector.load %arg13[%c6_44, %c0_45] : memref<16x32xf32, #tpu.memory_space<vmem>>, vector<2x32xf32>
    tpu.vector_store %arg13[%c6_44, %c0_45], %209 {strides = array<i32>} : memref<16x32xf32, #tpu.memory_space<vmem>>, vector<2x32xf32>,
    %212 = vector.extract_strided_slice %6 {offsets = [10, 0], sizes = [2, 128], strides = [1, 1]} : vector<16x256xf32> to vector<2x128xf32>
    %cst_46 = arith.constant dense<0.000000e+00> : vector<2x128xf32>
    %213 = tpu.matmul %190, %1, %cst_46 {dimension_numbers = #tpu.dot_dimension_numbers<[1], [0], [0], [1], [0, 0, 1, 1], [], []>} : vector<2x32xf32>, vector<32x128xf32>, vector<2x128xf32> -> vector<2x128xf32>
    %214 = arith.addf %212, %213 : vector<2x128xf32>
    %215 = vector.extract_strided_slice %214 {offsets = [0, 0], sizes = [2, 96], strides = [1, 1]} : vector<2x128xf32> to vector<2x96xf32>
    %216 = arith.negf %215 : vector<2x96xf32>
    %217 = math.exp %216 : vector<2x96xf32>
    %cst_47 = arith.constant 1.000000e+00 : f32
    %218 = vector.broadcast %cst_47 : f32 to vector<2x96xf32>
    %219 = arith.addf %218, %217 : vector<2x96xf32>
    %220 = arith.divf %218, %219 : vector<2x96xf32>
    %221 = vector.extract_strided_slice %220 {offsets = [0, 0], sizes = [2, 32], strides = [1, 1]} : vector<2x96xf32> to vector<2x32xf32>
    %222 = vector.extract_strided_slice %220 {offsets = [0, 32], sizes = [2, 32], strides = [1, 1]} : vector<2x96xf32> to vector<2x32xf32>
    %223 = vector.extract_strided_slice %220 {offsets = [0, 64], sizes = [2, 32], strides = [1, 1]} : vector<2x96xf32> to vector<2x32xf32>
    %224 = vector.extract_strided_slice %214 {offsets = [0, 96], sizes = [2, 32], strides = [1, 1]} : vector<2x128xf32> to vector<2x32xf32>
    %225 = math.tanh %224 : vector<2x32xf32>
    %226 = arith.mulf %222, %188 : vector<2x32xf32>
    %227 = arith.mulf %221, %225 : vector<2x32xf32>
    %228 = arith.addf %226, %227 : vector<2x32xf32>
    %229 = math.tanh %228 : vector<2x32xf32>
    %230 = arith.mulf %223, %229 : vector<2x32xf32>
    %231 = vector.extract_strided_slice %6 {offsets = [4, 128], sizes = [2, 128], strides = [1, 1]} : vector<16x256xf32> to vector<2x128xf32>
    %cst_48 = arith.constant dense<0.000000e+00> : vector<2x128xf32>
    %232 = tpu.matmul %209, %9, %cst_48 {dimension_numbers = #tpu.dot_dimension_numbers<[1], [0], [0], [1], [0, 0, 1, 1], [], []>} : vector<2x32xf32>, vector<32x128xf32>, vector<2x128xf32> -> vector<2x128xf32>
    %233 = arith.addf %231, %232 : vector<2x128xf32>
    %234 = vector.extract_strided_slice %233 {offsets = [0, 0], sizes = [2, 96], strides = [1, 1]} : vector<2x128xf32> to vector<2x96xf32>
    %235 = arith.negf %234 : vector<2x96xf32>
    %236 = math.exp %235 : vector<2x96xf32>
    %cst_49 = arith.constant 1.000000e+00 : f32
    %237 = vector.broadcast %cst_49 : f32 to vector<2x96xf32>
    %238 = arith.addf %237, %236 : vector<2x96xf32>
    %239 = arith.divf %237, %238 : vector<2x96xf32>
    %240 = vector.extract_strided_slice %239 {offsets = [0, 0], sizes = [2, 32], strides = [1, 1]} : vector<2x96xf32> to vector<2x32xf32>
    %241 = vector.extract_strided_slice %239 {offsets = [0, 32], sizes = [2, 32], strides = [1, 1]} : vector<2x96xf32> to vector<2x32xf32>
    %242 = vector.extract_strided_slice %239 {offsets = [0, 64], sizes = [2, 32], strides = [1, 1]} : vector<2x96xf32> to vector<2x32xf32>
    %243 = vector.extract_strided_slice %233 {offsets = [0, 96], sizes = [2, 32], strides = [1, 1]} : vector<2x128xf32> to vector<2x32xf32>
    %244 = math.tanh %243 : vector<2x32xf32>
    %245 = arith.mulf %241, %207 : vector<2x32xf32>
    %246 = arith.mulf %240, %244 : vector<2x32xf32>
    %247 = arith.addf %245, %246 : vector<2x32xf32>
    %248 = math.tanh %247 : vector<2x32xf32>
    %249 = arith.mulf %242, %248 : vector<2x32xf32>
    %c10_50 = arith.constant 10 : index
    %c0_51 = arith.constant 0 : index
    %250 = vector.load %arg12[%c10_50, %c0_51] : memref<16x32xf32, #tpu.memory_space<vmem>>, vector<2x32xf32>
    tpu.vector_store %arg12[%c10_50, %c0_51], %230 {strides = array<i32>} : memref<16x32xf32, #tpu.memory_space<vmem>>, vector<2x32xf32>,
    %c4_52 = arith.constant 4 : index
    %c0_53 = arith.constant 0 : index
    %251 = vector.load %arg13[%c4_52, %c0_53] : memref<16x32xf32, #tpu.memory_space<vmem>>, vector<2x32xf32>
    tpu.vector_store %arg13[%c4_52, %c0_53], %249 {strides = array<i32>} : memref<16x32xf32, #tpu.memory_space<vmem>>, vector<2x32xf32>,
    %252 = vector.extract_strided_slice %6 {offsets = [12, 0], sizes = [2, 128], strides = [1, 1]} : vector<16x256xf32> to vector<2x128xf32>
    %cst_54 = arith.constant dense<0.000000e+00> : vector<2x128xf32>
    %253 = tpu.matmul %230, %1, %cst_54 {dimension_numbers = #tpu.dot_dimension_numbers<[1], [0], [0], [1], [0, 0, 1, 1], [], []>} : vector<2x32xf32>, vector<32x128xf32>, vector<2x128xf32> -> vector<2x128xf32>
    %254 = arith.addf %252, %253 : vector<2x128xf32>
    %255 = vector.extract_strided_slice %254 {offsets = [0, 0], sizes = [2, 96], strides = [1, 1]} : vector<2x128xf32> to vector<2x96xf32>
    %256 = arith.negf %255 : vector<2x96xf32>
    %257 = math.exp %256 : vector<2x96xf32>
    %cst_55 = arith.constant 1.000000e+00 : f32
    %258 = vector.broadcast %cst_55 : f32 to vector<2x96xf32>
    %259 = arith.addf %258, %257 : vector<2x96xf32>
    %260 = arith.divf %258, %259 : vector<2x96xf32>
    %261 = vector.extract_strided_slice %260 {offsets = [0, 0], sizes = [2, 32], strides = [1, 1]} : vector<2x96xf32> to vector<2x32xf32>
    %262 = vector.extract_strided_slice %260 {offsets = [0, 32], sizes = [2, 32], strides = [1, 1]} : vector<2x96xf32> to vector<2x32xf32>
    %263 = vector.extract_strided_slice %260 {offsets = [0, 64], sizes = [2, 32], strides = [1, 1]} : vector<2x96xf32> to vector<2x32xf32>
    %264 = vector.extract_strided_slice %254 {offsets = [0, 96], sizes = [2, 32], strides = [1, 1]} : vector<2x128xf32> to vector<2x32xf32>
    %265 = math.tanh %264 : vector<2x32xf32>
    %266 = arith.mulf %262, %228 : vector<2x32xf32>
    %267 = arith.mulf %261, %265 : vector<2x32xf32>
    %268 = arith.addf %266, %267 : vector<2x32xf32>
    %269 = math.tanh %268 : vector<2x32xf32>
    %270 = arith.mulf %263, %269 : vector<2x32xf32>
    %271 = vector.extract_strided_slice %6 {offsets = [2, 128], sizes = [2, 128], strides = [1, 1]} : vector<16x256xf32> to vector<2x128xf32>
    %cst_56 = arith.constant dense<0.000000e+00> : vector<2x128xf32>
    %272 = tpu.matmul %249, %9, %cst_56 {dimension_numbers = #tpu.dot_dimension_numbers<[1], [0], [0], [1], [0, 0, 1, 1], [], []>} : vector<2x32xf32>, vector<32x128xf32>, vector<2x128xf32> -> vector<2x128xf32>
    %273 = arith.addf %271, %272 : vector<2x128xf32>
    %274 = vector.extract_strided_slice %273 {offsets = [0, 0], sizes = [2, 96], strides = [1, 1]} : vector<2x128xf32> to vector<2x96xf32>
    %275 = arith.negf %274 : vector<2x96xf32>
    %276 = math.exp %275 : vector<2x96xf32>
    %cst_57 = arith.constant 1.000000e+00 : f32
    %277 = vector.broadcast %cst_57 : f32 to vector<2x96xf32>
    %278 = arith.addf %277, %276 : vector<2x96xf32>
    %279 = arith.divf %277, %278 : vector<2x96xf32>
    %280 = vector.extract_strided_slice %279 {offsets = [0, 0], sizes = [2, 32], strides = [1, 1]} : vector<2x96xf32> to vector<2x32xf32>
    %281 = vector.extract_strided_slice %279 {offsets = [0, 32], sizes = [2, 32], strides = [1, 1]} : vector<2x96xf32> to vector<2x32xf32>
    %282 = vector.extract_strided_slice %279 {offsets = [0, 64], sizes = [2, 32], strides = [1, 1]} : vector<2x96xf32> to vector<2x32xf32>
    %283 = vector.extract_strided_slice %273 {offsets = [0, 96], sizes = [2, 32], strides = [1, 1]} : vector<2x128xf32> to vector<2x32xf32>
    %284 = math.tanh %283 : vector<2x32xf32>
    %285 = arith.mulf %281, %247 : vector<2x32xf32>
    %286 = arith.mulf %280, %284 : vector<2x32xf32>
    %287 = arith.addf %285, %286 : vector<2x32xf32>
    %288 = math.tanh %287 : vector<2x32xf32>
    %289 = arith.mulf %282, %288 : vector<2x32xf32>
    %c12_58 = arith.constant 12 : index
    %c0_59 = arith.constant 0 : index
    %290 = vector.load %arg12[%c12_58, %c0_59] : memref<16x32xf32, #tpu.memory_space<vmem>>, vector<2x32xf32>
    tpu.vector_store %arg12[%c12_58, %c0_59], %270 {strides = array<i32>} : memref<16x32xf32, #tpu.memory_space<vmem>>, vector<2x32xf32>,
    %c2_60 = arith.constant 2 : index
    %c0_61 = arith.constant 0 : index
    %291 = vector.load %arg13[%c2_60, %c0_61] : memref<16x32xf32, #tpu.memory_space<vmem>>, vector<2x32xf32>
    tpu.vector_store %arg13[%c2_60, %c0_61], %289 {strides = array<i32>} : memref<16x32xf32, #tpu.memory_space<vmem>>, vector<2x32xf32>,
    %292 = vector.extract_strided_slice %6 {offsets = [14, 0], sizes = [2, 128], strides = [1, 1]} : vector<16x256xf32> to vector<2x128xf32>
    %cst_62 = arith.constant dense<0.000000e+00> : vector<2x128xf32>
    %293 = tpu.matmul %270, %1, %cst_62 {dimension_numbers = #tpu.dot_dimension_numbers<[1], [0], [0], [1], [0, 0, 1, 1], [], []>} : vector<2x32xf32>, vector<32x128xf32>, vector<2x128xf32> -> vector<2x128xf32>
    %294 = arith.addf %292, %293 : vector<2x128xf32>
    %295 = vector.extract_strided_slice %294 {offsets = [0, 0], sizes = [2, 96], strides = [1, 1]} : vector<2x128xf32> to vector<2x96xf32>
    %296 = arith.negf %295 : vector<2x96xf32>
    %297 = math.exp %296 : vector<2x96xf32>
    %cst_63 = arith.constant 1.000000e+00 : f32
    %298 = vector.broadcast %cst_63 : f32 to vector<2x96xf32>
    %299 = arith.addf %298, %297 : vector<2x96xf32>
    %300 = arith.divf %298, %299 : vector<2x96xf32>
    %301 = vector.extract_strided_slice %300 {offsets = [0, 0], sizes = [2, 32], strides = [1, 1]} : vector<2x96xf32> to vector<2x32xf32>
    %302 = vector.extract_strided_slice %300 {offsets = [0, 32], sizes = [2, 32], strides = [1, 1]} : vector<2x96xf32> to vector<2x32xf32>
    %303 = vector.extract_strided_slice %300 {offsets = [0, 64], sizes = [2, 32], strides = [1, 1]} : vector<2x96xf32> to vector<2x32xf32>
    %304 = vector.extract_strided_slice %294 {offsets = [0, 96], sizes = [2, 32], strides = [1, 1]} : vector<2x128xf32> to vector<2x32xf32>
    %305 = math.tanh %304 : vector<2x32xf32>
    %306 = arith.mulf %302, %268 : vector<2x32xf32>
    %307 = arith.mulf %301, %305 : vector<2x32xf32>
    %308 = arith.addf %306, %307 : vector<2x32xf32>
    %309 = math.tanh %308 : vector<2x32xf32>
    %310 = arith.mulf %303, %309 : vector<2x32xf32>
    %311 = vector.extract_strided_slice %6 {offsets = [0, 128], sizes = [2, 128], strides = [1, 1]} : vector<16x256xf32> to vector<2x128xf32>
    %cst_64 = arith.constant dense<0.000000e+00> : vector<2x128xf32>
    %312 = tpu.matmul %289, %9, %cst_64 {dimension_numbers = #tpu.dot_dimension_numbers<[1], [0], [0], [1], [0, 0, 1, 1], [], []>} : vector<2x32xf32>, vector<32x128xf32>, vector<2x128xf32> -> vector<2x128xf32>
    %313 = arith.addf %311, %312 : vector<2x128xf32>
    %314 = vector.extract_strided_slice %313 {offsets = [0, 0], sizes = [2, 96], strides = [1, 1]} : vector<2x128xf32> to vector<2x96xf32>
    %315 = arith.negf %314 : vector<2x96xf32>
    %316 = math.exp %315 : vector<2x96xf32>
    %cst_65 = arith.constant 1.000000e+00 : f32
    %317 = vector.broadcast %cst_65 : f32 to vector<2x96xf32>
    %318 = arith.addf %317, %316 : vector<2x96xf32>
    %319 = arith.divf %317, %318 : vector<2x96xf32>
    %320 = vector.extract_strided_slice %319 {offsets = [0, 0], sizes = [2, 32], strides = [1, 1]} : vector<2x96xf32> to vector<2x32xf32>
    %321 = vector.extract_strided_slice %319 {offsets = [0, 32], sizes = [2, 32], strides = [1, 1]} : vector<2x96xf32> to vector<2x32xf32>
    %322 = vector.extract_strided_slice %319 {offsets = [0, 64], sizes = [2, 32], strides = [1, 1]} : vector<2x96xf32> to vector<2x32xf32>
    %323 = vector.extract_strided_slice %313 {offsets = [0, 96], sizes = [2, 32], strides = [1, 1]} : vector<2x128xf32> to vector<2x32xf32>
    %324 = math.tanh %323 : vector<2x32xf32>
    %325 = arith.mulf %321, %287 : vector<2x32xf32>
    %326 = arith.mulf %320, %324 : vector<2x32xf32>
    %327 = arith.addf %325, %326 : vector<2x32xf32>
    %328 = math.tanh %327 : vector<2x32xf32>
    %329 = arith.mulf %322, %328 : vector<2x32xf32>
    %c14_66 = arith.constant 14 : index
    %c0_67 = arith.constant 0 : index
    %330 = vector.load %arg12[%c14_66, %c0_67] : memref<16x32xf32, #tpu.memory_space<vmem>>, vector<2x32xf32>
    tpu.vector_store %arg12[%c14_66, %c0_67], %310 {strides = array<i32>} : memref<16x32xf32, #tpu.memory_space<vmem>>, vector<2x32xf32>,
    %c0_68 = arith.constant 0 : index
    %c0_69 = arith.constant 0 : index
    %331 = vector.load %arg13[%c0_68, %c0_69] : memref<16x32xf32, #tpu.memory_space<vmem>>, vector<2x32xf32>
    tpu.vector_store %arg13[%c0_68, %c0_69], %329 {strides = array<i32>} : memref<16x32xf32, #tpu.memory_space<vmem>>, vector<2x32xf32>,
    %c0_70 = arith.constant 0 : index
    %c0_71 = arith.constant 0 : index
    %332 = vector.load %arg5[%c0_70, %c0_71] : memref<64x256xf32, #tpu.memory_space<vmem>>, vector<64x256xf32>
    %c0_72 = arith.constant 0 : index
    %c0_73 = arith.constant 0 : index
    %333 = vector.load %arg6[%c0_72, %c0_73] : memref<32x128xf32, #tpu.memory_space<vmem>>, vector<32x128xf32>
    %c0_74 = arith.constant 0 : index
    %c0_75 = arith.constant 0 : index
    %334 = vector.load %arg8[%c0_74, %c0_75] : memref<1x256xf32, #tpu.memory_space<vmem>>, vector<1x256xf32>
    %c0_76 = arith.constant 0 : index
    %c0_77 = arith.constant 0 : index
    %335 = vector.load %arg12[%c0_76, %c0_77] : memref<16x32xf32, #tpu.memory_space<vmem>>, vector<16x32xf32>
    %336 = vector.extract_strided_slice %332 {offsets = [0, 0], sizes = [32, 256], strides = [1, 1]} : vector<64x256xf32> to vector<32x256xf32>
    %cst_78 = arith.constant dense<0.000000e+00> : vector<16x256xf32>
    %337 = tpu.matmul %335, %336, %cst_78 {dimension_numbers = #tpu.dot_dimension_numbers<[1], [0], [0], [1], [0, 0, 1, 1], [], []>} : vector<16x32xf32>, vector<32x256xf32>, vector<16x256xf32> -> vector<16x256xf32>
    %c0_79 = arith.constant 0 : index
    %c0_80 = arith.constant 0 : index
    %338 = vector.load %arg13[%c0_79, %c0_80] : memref<16x32xf32, #tpu.memory_space<vmem>>, vector<16x32xf32>
    %339 = vector.extract_strided_slice %332 {offsets = [32, 0], sizes = [32, 256], strides = [1, 1]} : vector<64x256xf32> to vector<32x256xf32>
    %cst_81 = arith.constant dense<0.000000e+00> : vector<16x256xf32>
    %340 = tpu.matmul %338, %339, %cst_81 {dimension_numbers = #tpu.dot_dimension_numbers<[1], [0], [0], [1], [0, 0, 1, 1], [], []>} : vector<16x32xf32>, vector<32x256xf32>, vector<16x256xf32> -> vector<16x256xf32>
    %341 = arith.addf %337, %340 : vector<16x256xf32>
    %342 = vector.broadcast %334 : vector<1x256xf32> to vector<16x256xf32>
    %343 = arith.addf %341, %342 : vector<16x256xf32>
    %cst_82 = arith.constant 0.000000e+00 : f32
    %344 = vector.broadcast %cst_82 : f32 to vector<2x32xf32>
    %cst_83 = arith.constant 0.000000e+00 : f32
    %345 = vector.broadcast %cst_83 : f32 to vector<2x32xf32>
    %346 = vector.extract_strided_slice %343 {offsets = [0, 0], sizes = [2, 128], strides = [1, 1]} : vector<16x256xf32> to vector<2x128xf32>
    %cst_84 = arith.constant dense<0.000000e+00> : vector<2x128xf32>
    %347 = tpu.matmul %344, %333, %cst_84 {dimension_numbers = #tpu.dot_dimension_numbers<[1], [0], [0], [1], [0, 0, 1, 1], [], []>} : vector<2x32xf32>, vector<32x128xf32>, vector<2x128xf32> -> vector<2x128xf32>
    %348 = arith.addf %346, %347 : vector<2x128xf32>
    %349 = vector.extract_strided_slice %348 {offsets = [0, 0], sizes = [2, 96], strides = [1, 1]} : vector<2x128xf32> to vector<2x96xf32>
    %350 = arith.negf %349 : vector<2x96xf32>
    %351 = math.exp %350 : vector<2x96xf32>
    %cst_85 = arith.constant 1.000000e+00 : f32
    %352 = vector.broadcast %cst_85 : f32 to vector<2x96xf32>
    %353 = arith.addf %352, %351 : vector<2x96xf32>
    %354 = arith.divf %352, %353 : vector<2x96xf32>
    %355 = vector.extract_strided_slice %354 {offsets = [0, 0], sizes = [2, 32], strides = [1, 1]} : vector<2x96xf32> to vector<2x32xf32>
    %356 = vector.extract_strided_slice %354 {offsets = [0, 32], sizes = [2, 32], strides = [1, 1]} : vector<2x96xf32> to vector<2x32xf32>
    %357 = vector.extract_strided_slice %354 {offsets = [0, 64], sizes = [2, 32], strides = [1, 1]} : vector<2x96xf32> to vector<2x32xf32>
    %358 = vector.extract_strided_slice %348 {offsets = [0, 96], sizes = [2, 32], strides = [1, 1]} : vector<2x128xf32> to vector<2x32xf32>
    %359 = math.tanh %358 : vector<2x32xf32>
    %360 = arith.mulf %356, %345 : vector<2x32xf32>
    %361 = arith.mulf %355, %359 : vector<2x32xf32>
    %362 = arith.addf %360, %361 : vector<2x32xf32>
    %363 = math.tanh %362 : vector<2x32xf32>
    %364 = arith.mulf %357, %363 : vector<2x32xf32>
    %365 = vector.extract_strided_slice %343 {offsets = [2, 0], sizes = [2, 128], strides = [1, 1]} : vector<16x256xf32> to vector<2x128xf32>
    %cst_86 = arith.constant dense<0.000000e+00> : vector<2x128xf32>
    %366 = tpu.matmul %364, %333, %cst_86 {dimension_numbers = #tpu.dot_dimension_numbers<[1], [0], [0], [1], [0, 0, 1, 1], [], []>} : vector<2x32xf32>, vector<32x128xf32>, vector<2x128xf32> -> vector<2x128xf32>
    %367 = arith.addf %365, %366 : vector<2x128xf32>
    %368 = vector.extract_strided_slice %367 {offsets = [0, 0], sizes = [2, 96], strides = [1, 1]} : vector<2x128xf32> to vector<2x96xf32>
    %369 = arith.negf %368 : vector<2x96xf32>
    %370 = math.exp %369 : vector<2x96xf32>
    %cst_87 = arith.constant 1.000000e+00 : f32
    %371 = vector.broadcast %cst_87 : f32 to vector<2x96xf32>
    %372 = arith.addf %371, %370 : vector<2x96xf32>
    %373 = arith.divf %371, %372 : vector<2x96xf32>
    %374 = vector.extract_strided_slice %373 {offsets = [0, 0], sizes = [2, 32], strides = [1, 1]} : vector<2x96xf32> to vector<2x32xf32>
    %375 = vector.extract_strided_slice %373 {offsets = [0, 32], sizes = [2, 32], strides = [1, 1]} : vector<2x96xf32> to vector<2x32xf32>
    %376 = vector.extract_strided_slice %373 {offsets = [0, 64], sizes = [2, 32], strides = [1, 1]} : vector<2x96xf32> to vector<2x32xf32>
    %377 = vector.extract_strided_slice %367 {offsets = [0, 96], sizes = [2, 32], strides = [1, 1]} : vector<2x128xf32> to vector<2x32xf32>
    %378 = math.tanh %377 : vector<2x32xf32>
    %379 = arith.mulf %375, %362 : vector<2x32xf32>
    %380 = arith.mulf %374, %378 : vector<2x32xf32>
    %381 = arith.addf %379, %380 : vector<2x32xf32>
    %382 = math.tanh %381 : vector<2x32xf32>
    %383 = arith.mulf %376, %382 : vector<2x32xf32>
    %384 = vector.extract_strided_slice %343 {offsets = [4, 0], sizes = [2, 128], strides = [1, 1]} : vector<16x256xf32> to vector<2x128xf32>
    %cst_88 = arith.constant dense<0.000000e+00> : vector<2x128xf32>
    %385 = tpu.matmul %383, %333, %cst_88 {dimension_numbers = #tpu.dot_dimension_numbers<[1], [0], [0], [1], [0, 0, 1, 1], [], []>} : vector<2x32xf32>, vector<32x128xf32>, vector<2x128xf32> -> vector<2x128xf32>
    %386 = arith.addf %384, %385 : vector<2x128xf32>
    %387 = vector.extract_strided_slice %386 {offsets = [0, 0], sizes = [2, 96], strides = [1, 1]} : vector<2x128xf32> to vector<2x96xf32>
    %388 = arith.negf %387 : vector<2x96xf32>
    %389 = math.exp %388 : vector<2x96xf32>
    %cst_89 = arith.constant 1.000000e+00 : f32
    %390 = vector.broadcast %cst_89 : f32 to vector<2x96xf32>
    %391 = arith.addf %390, %389 : vector<2x96xf32>
    %392 = arith.divf %390, %391 : vector<2x96xf32>
    %393 = vector.extract_strided_slice %392 {offsets = [0, 0], sizes = [2, 32], strides = [1, 1]} : vector<2x96xf32> to vector<2x32xf32>
    %394 = vector.extract_strided_slice %392 {offsets = [0, 32], sizes = [2, 32], strides = [1, 1]} : vector<2x96xf32> to vector<2x32xf32>
    %395 = vector.extract_strided_slice %392 {offsets = [0, 64], sizes = [2, 32], strides = [1, 1]} : vector<2x96xf32> to vector<2x32xf32>
    %396 = vector.extract_strided_slice %386 {offsets = [0, 96], sizes = [2, 32], strides = [1, 1]} : vector<2x128xf32> to vector<2x32xf32>
    %397 = math.tanh %396 : vector<2x32xf32>
    %398 = arith.mulf %394, %381 : vector<2x32xf32>
    %399 = arith.mulf %393, %397 : vector<2x32xf32>
    %400 = arith.addf %398, %399 : vector<2x32xf32>
    %401 = math.tanh %400 : vector<2x32xf32>
    %402 = arith.mulf %395, %401 : vector<2x32xf32>
    %403 = vector.extract_strided_slice %343 {offsets = [6, 0], sizes = [2, 128], strides = [1, 1]} : vector<16x256xf32> to vector<2x128xf32>
    %cst_90 = arith.constant dense<0.000000e+00> : vector<2x128xf32>
    %404 = tpu.matmul %402, %333, %cst_90 {dimension_numbers = #tpu.dot_dimension_numbers<[1], [0], [0], [1], [0, 0, 1, 1], [], []>} : vector<2x32xf32>, vector<32x128xf32>, vector<2x128xf32> -> vector<2x128xf32>
    %405 = arith.addf %403, %404 : vector<2x128xf32>
    %406 = vector.extract_strided_slice %405 {offsets = [0, 0], sizes = [2, 96], strides = [1, 1]} : vector<2x128xf32> to vector<2x96xf32>
    %407 = arith.negf %406 : vector<2x96xf32>
    %408 = math.exp %407 : vector<2x96xf32>
    %cst_91 = arith.constant 1.000000e+00 : f32
    %409 = vector.broadcast %cst_91 : f32 to vector<2x96xf32>
    %410 = arith.addf %409, %408 : vector<2x96xf32>
    %411 = arith.divf %409, %410 : vector<2x96xf32>
    %412 = vector.extract_strided_slice %411 {offsets = [0, 0], sizes = [2, 32], strides = [1, 1]} : vector<2x96xf32> to vector<2x32xf32>
    %413 = vector.extract_strided_slice %411 {offsets = [0, 32], sizes = [2, 32], strides = [1, 1]} : vector<2x96xf32> to vector<2x32xf32>
    %414 = vector.extract_strided_slice %411 {offsets = [0, 64], sizes = [2, 32], strides = [1, 1]} : vector<2x96xf32> to vector<2x32xf32>
    %415 = vector.extract_strided_slice %405 {offsets = [0, 96], sizes = [2, 32], strides = [1, 1]} : vector<2x128xf32> to vector<2x32xf32>
    %416 = math.tanh %415 : vector<2x32xf32>
    %417 = arith.mulf %413, %400 : vector<2x32xf32>
    %418 = arith.mulf %412, %416 : vector<2x32xf32>
    %419 = arith.addf %417, %418 : vector<2x32xf32>
    %420 = math.tanh %419 : vector<2x32xf32>
    %421 = arith.mulf %414, %420 : vector<2x32xf32>
    %422 = vector.extract_strided_slice %343 {offsets = [8, 0], sizes = [2, 128], strides = [1, 1]} : vector<16x256xf32> to vector<2x128xf32>
    %cst_92 = arith.constant dense<0.000000e+00> : vector<2x128xf32>
    %423 = tpu.matmul %421, %333, %cst_92 {dimension_numbers = #tpu.dot_dimension_numbers<[1], [0], [0], [1], [0, 0, 1, 1], [], []>} : vector<2x32xf32>, vector<32x128xf32>, vector<2x128xf32> -> vector<2x128xf32>
    %424 = arith.addf %422, %423 : vector<2x128xf32>
    %425 = vector.extract_strided_slice %424 {offsets = [0, 0], sizes = [2, 96], strides = [1, 1]} : vector<2x128xf32> to vector<2x96xf32>
    %426 = arith.negf %425 : vector<2x96xf32>
    %427 = math.exp %426 : vector<2x96xf32>
    %cst_93 = arith.constant 1.000000e+00 : f32
    %428 = vector.broadcast %cst_93 : f32 to vector<2x96xf32>
    %429 = arith.addf %428, %427 : vector<2x96xf32>
    %430 = arith.divf %428, %429 : vector<2x96xf32>
    %431 = vector.extract_strided_slice %430 {offsets = [0, 0], sizes = [2, 32], strides = [1, 1]} : vector<2x96xf32> to vector<2x32xf32>
    %432 = vector.extract_strided_slice %430 {offsets = [0, 32], sizes = [2, 32], strides = [1, 1]} : vector<2x96xf32> to vector<2x32xf32>
    %433 = vector.extract_strided_slice %430 {offsets = [0, 64], sizes = [2, 32], strides = [1, 1]} : vector<2x96xf32> to vector<2x32xf32>
    %434 = vector.extract_strided_slice %424 {offsets = [0, 96], sizes = [2, 32], strides = [1, 1]} : vector<2x128xf32> to vector<2x32xf32>
    %435 = math.tanh %434 : vector<2x32xf32>
    %436 = arith.mulf %432, %419 : vector<2x32xf32>
    %437 = arith.mulf %431, %435 : vector<2x32xf32>
    %438 = arith.addf %436, %437 : vector<2x32xf32>
    %439 = math.tanh %438 : vector<2x32xf32>
    %440 = arith.mulf %433, %439 : vector<2x32xf32>
    %441 = vector.extract_strided_slice %343 {offsets = [10, 0], sizes = [2, 128], strides = [1, 1]} : vector<16x256xf32> to vector<2x128xf32>
    %cst_94 = arith.constant dense<0.000000e+00> : vector<2x128xf32>
    %442 = tpu.matmul %440, %333, %cst_94 {dimension_numbers = #tpu.dot_dimension_numbers<[1], [0], [0], [1], [0, 0, 1, 1], [], []>} : vector<2x32xf32>, vector<32x128xf32>, vector<2x128xf32> -> vector<2x128xf32>
    %443 = arith.addf %441, %442 : vector<2x128xf32>
    %444 = vector.extract_strided_slice %443 {offsets = [0, 0], sizes = [2, 96], strides = [1, 1]} : vector<2x128xf32> to vector<2x96xf32>
    %445 = arith.negf %444 : vector<2x96xf32>
    %446 = math.exp %445 : vector<2x96xf32>
    %cst_95 = arith.constant 1.000000e+00 : f32
    %447 = vector.broadcast %cst_95 : f32 to vector<2x96xf32>
    %448 = arith.addf %447, %446 : vector<2x96xf32>
    %449 = arith.divf %447, %448 : vector<2x96xf32>
    %450 = vector.extract_strided_slice %449 {offsets = [0, 0], sizes = [2, 32], strides = [1, 1]} : vector<2x96xf32> to vector<2x32xf32>
    %451 = vector.extract_strided_slice %449 {offsets = [0, 32], sizes = [2, 32], strides = [1, 1]} : vector<2x96xf32> to vector<2x32xf32>
    %452 = vector.extract_strided_slice %449 {offsets = [0, 64], sizes = [2, 32], strides = [1, 1]} : vector<2x96xf32> to vector<2x32xf32>
    %453 = vector.extract_strided_slice %443 {offsets = [0, 96], sizes = [2, 32], strides = [1, 1]} : vector<2x128xf32> to vector<2x32xf32>
    %454 = math.tanh %453 : vector<2x32xf32>
    %455 = arith.mulf %451, %438 : vector<2x32xf32>
    %456 = arith.mulf %450, %454 : vector<2x32xf32>
    %457 = arith.addf %455, %456 : vector<2x32xf32>
    %458 = math.tanh %457 : vector<2x32xf32>
    %459 = arith.mulf %452, %458 : vector<2x32xf32>
    %460 = vector.extract_strided_slice %343 {offsets = [12, 0], sizes = [2, 128], strides = [1, 1]} : vector<16x256xf32> to vector<2x128xf32>
    %cst_96 = arith.constant dense<0.000000e+00> : vector<2x128xf32>
    %461 = tpu.matmul %459, %333, %cst_96 {dimension_numbers = #tpu.dot_dimension_numbers<[1], [0], [0], [1], [0, 0, 1, 1], [], []>} : vector<2x32xf32>, vector<32x128xf32>, vector<2x128xf32> -> vector<2x128xf32>
    %462 = arith.addf %460, %461 : vector<2x128xf32>
    %463 = vector.extract_strided_slice %462 {offsets = [0, 0], sizes = [2, 96], strides = [1, 1]} : vector<2x128xf32> to vector<2x96xf32>
    %464 = arith.negf %463 : vector<2x96xf32>
    %465 = math.exp %464 : vector<2x96xf32>
    %cst_97 = arith.constant 1.000000e+00 : f32
    %466 = vector.broadcast %cst_97 : f32 to vector<2x96xf32>
    %467 = arith.addf %466, %465 : vector<2x96xf32>
    %468 = arith.divf %466, %467 : vector<2x96xf32>
    %469 = vector.extract_strided_slice %468 {offsets = [0, 0], sizes = [2, 32], strides = [1, 1]} : vector<2x96xf32> to vector<2x32xf32>
    %470 = vector.extract_strided_slice %468 {offsets = [0, 32], sizes = [2, 32], strides = [1, 1]} : vector<2x96xf32> to vector<2x32xf32>
    %471 = vector.extract_strided_slice %468 {offsets = [0, 64], sizes = [2, 32], strides = [1, 1]} : vector<2x96xf32> to vector<2x32xf32>
    %472 = vector.extract_strided_slice %462 {offsets = [0, 96], sizes = [2, 32], strides = [1, 1]} : vector<2x128xf32> to vector<2x32xf32>
    %473 = math.tanh %472 : vector<2x32xf32>
    %474 = arith.mulf %470, %457 : vector<2x32xf32>
    %475 = arith.mulf %469, %473 : vector<2x32xf32>
    %476 = arith.addf %474, %475 : vector<2x32xf32>
    %477 = math.tanh %476 : vector<2x32xf32>
    %478 = arith.mulf %471, %477 : vector<2x32xf32>
    %479 = vector.extract_strided_slice %343 {offsets = [14, 0], sizes = [2, 128], strides = [1, 1]} : vector<16x256xf32> to vector<2x128xf32>
    %cst_98 = arith.constant dense<0.000000e+00> : vector<2x128xf32>
    %480 = tpu.matmul %478, %333, %cst_98 {dimension_numbers = #tpu.dot_dimension_numbers<[1], [0], [0], [1], [0, 0, 1, 1], [], []>} : vector<2x32xf32>, vector<32x128xf32>, vector<2x128xf32> -> vector<2x128xf32>
    %481 = arith.addf %479, %480 : vector<2x128xf32>
    %482 = vector.extract_strided_slice %481 {offsets = [0, 0], sizes = [2, 96], strides = [1, 1]} : vector<2x128xf32> to vector<2x96xf32>
    %483 = arith.negf %482 : vector<2x96xf32>
    %484 = math.exp %483 : vector<2x96xf32>
    %cst_99 = arith.constant 1.000000e+00 : f32
    %485 = vector.broadcast %cst_99 : f32 to vector<2x96xf32>
    %486 = arith.addf %485, %484 : vector<2x96xf32>
    %487 = arith.divf %485, %486 : vector<2x96xf32>
    %488 = vector.extract_strided_slice %487 {offsets = [0, 0], sizes = [2, 32], strides = [1, 1]} : vector<2x96xf32> to vector<2x32xf32>
    %489 = vector.extract_strided_slice %487 {offsets = [0, 32], sizes = [2, 32], strides = [1, 1]} : vector<2x96xf32> to vector<2x32xf32>
    %490 = vector.extract_strided_slice %487 {offsets = [0, 64], sizes = [2, 32], strides = [1, 1]} : vector<2x96xf32> to vector<2x32xf32>
    %491 = vector.extract_strided_slice %481 {offsets = [0, 96], sizes = [2, 32], strides = [1, 1]} : vector<2x128xf32> to vector<2x32xf32>
    %492 = math.tanh %491 : vector<2x32xf32>
    %493 = arith.mulf %489, %476 : vector<2x32xf32>
    %494 = arith.mulf %488, %492 : vector<2x32xf32>
    %495 = arith.addf %493, %494 : vector<2x32xf32>
    %496 = math.tanh %495 : vector<2x32xf32>
    %497 = arith.mulf %490, %496 : vector<2x32xf32>
    %cst_100 = arith.constant 0.000000e+00 : f32
    %498 = vector.broadcast %cst_100 : f32 to vector<2x32xf32>
    %499 = vector.extract_strided_slice %343 {offsets = [14, 128], sizes = [2, 128], strides = [1, 1]} : vector<16x256xf32> to vector<2x128xf32>
    %500 = vector.extract_strided_slice %499 {offsets = [0, 0], sizes = [2, 96], strides = [1, 1]} : vector<2x128xf32> to vector<2x96xf32>
    %501 = arith.negf %500 : vector<2x96xf32>
    %502 = math.exp %501 : vector<2x96xf32>
    %cst_101 = arith.constant 1.000000e+00 : f32
    %503 = vector.broadcast %cst_101 : f32 to vector<2x96xf32>
    %504 = arith.addf %503, %502 : vector<2x96xf32>
    %505 = arith.divf %503, %504 : vector<2x96xf32>
    %506 = vector.extract_strided_slice %505 {offsets = [0, 0], sizes = [2, 32], strides = [1, 1]} : vector<2x96xf32> to vector<2x32xf32>
    %507 = vector.extract_strided_slice %505 {offsets = [0, 32], sizes = [2, 32], strides = [1, 1]} : vector<2x96xf32> to vector<2x32xf32>
    %508 = vector.extract_strided_slice %505 {offsets = [0, 64], sizes = [2, 32], strides = [1, 1]} : vector<2x96xf32> to vector<2x32xf32>
    %509 = vector.extract_strided_slice %499 {offsets = [0, 96], sizes = [2, 32], strides = [1, 1]} : vector<2x128xf32> to vector<2x32xf32>
    %510 = math.tanh %509 : vector<2x32xf32>
    %511 = arith.mulf %507, %498 : vector<2x32xf32>
    %512 = arith.mulf %506, %510 : vector<2x32xf32>
    %513 = arith.addf %511, %512 : vector<2x32xf32>
    %514 = math.tanh %513 : vector<2x32xf32>
    %515 = arith.mulf %508, %514 : vector<2x32xf32>
    %c0_102 = arith.constant 0 : index
    %c0_103 = arith.constant 0 : index
    %516 = vector.load %arg9[%c0_102, %c0_103] : memref<64x4xf32, #tpu.memory_space<vmem>>, vector<64x4xf32>
    %517 = vector.extract_strided_slice %516 {offsets = [0, 0], sizes = [32, 4], strides = [1, 1]} : vector<64x4xf32> to vector<32x4xf32>
    %cst_104 = arith.constant dense<0.000000e+00> : vector<2x4xf32>
    %518 = tpu.matmul %497, %517, %cst_104 {dimension_numbers = #tpu.dot_dimension_numbers<[1], [0], [0], [1], [0, 0, 1, 1], [], []>} : vector<2x32xf32>, vector<32x4xf32>, vector<2x4xf32> -> vector<2x4xf32>
    %519 = vector.extract_strided_slice %516 {offsets = [32, 0], sizes = [32, 4], strides = [1, 1]} : vector<64x4xf32> to vector<32x4xf32>
    %cst_105 = arith.constant dense<0.000000e+00> : vector<2x4xf32>
    %520 = tpu.matmul %515, %519, %cst_105 {dimension_numbers = #tpu.dot_dimension_numbers<[1], [0], [0], [1], [0, 0, 1, 1], [], []>} : vector<2x32xf32>, vector<32x4xf32>, vector<2x4xf32> -> vector<2x4xf32>
    %521 = arith.addf %518, %520 : vector<2x4xf32>
    %c0_106 = arith.constant 0 : index
    %c0_107 = arith.constant 0 : index
    %522 = vector.load %arg10[%c0_106, %c0_107] : memref<1x4xf32, #tpu.memory_space<vmem>>, vector<1x4xf32>
    %523 = vector.broadcast %522 : vector<1x4xf32> to vector<2x4xf32>
    %524 = arith.addf %521, %523 : vector<2x4xf32>
    %525 = tpu.iota {dimensions = array<i32: 1>} : vector<2x4xi32>
    %cst_108 = arith.constant dense<0xFF800000> : vector<2xf32>
    %526 = vector.multi_reduction <maximumf>, %524, %cst_108 [1] : vector<2x4xf32> to vector<2xf32>
    %527 = vector.shape_cast %526 : vector<2xf32> to vector<2x1xf32>
    %528 = vector.broadcast %527 : vector<2x1xf32> to vector<2x4xf32>
    %529 = arith.cmpf oeq, %524, %528 : vector<2x4xf32>
    %c4_i32 = arith.constant 4 : i32
    %530 = vector.broadcast %c4_i32 : i32 to vector<2x4xi32>
    %531 = arith.select %529, %525, %530 : vector<2x4xi1>, vector<2x4xi32>
    %cst_109 = arith.constant dense<2147483647> : vector<2xi32>
    %532 = vector.multi_reduction <minsi>, %531, %cst_109 [1] : vector<2x4xi32> to vector<2xi32>
    %533 = vector.shape_cast %532 : vector<2xi32> to vector<2x1xi32>
    %c0_110 = arith.constant 0 : index
    %c0_111 = arith.constant 0 : index
    %534 = vector.load %arg11[%c0_110, %c0_111] : memref<2x1xi32, #tpu.memory_space<vmem>>, vector<2x1xi32>
    tpu.vector_store %arg11[%c0_110, %c0_111], %533 {strides = array<i32>} : memref<2x1xi32, #tpu.memory_space<vmem>>, vector<2x1xi32>,
    return
  }
}

</mosaic_0001>

<llo_original>
// kernel: bilstm_forward.1
$region0: #{bilstm_forward.1}
  #allocation0 [shape = 'u32[]', space=smem, size = 0x4, offset = 0x4, fixed_abs, tag = 'smem constant byte address 0x4 - core index']
  #allocation1 [shape = 'u32[144,128]{1,0:T(1,128)}', space=vmem, size = 0x12000, scoped, tag = 'internal scratch']
  #allocation2 [shape = 'f32[16,32]{1,0:T(8,128)}', space=vmem, size = 0x2000, scoped, tag = 'scratch operand']
  #allocation3 [shape = 'f32[16,32]{1,0:T(8,128)}', space=vmem, size = 0x2000, scoped, tag = 'scratch operand']
  %s0 = inlined_call_operand.vmem [shape: f32[16,32], index: 0, kind: input, shape index: {}]
  %s1 = inlined_call_operand.vmem [shape: f32[32,256], index: 1, kind: input, shape index: {}]
  %s2 = inlined_call_operand.vmem [shape: f32[32,128], index: 2, kind: input, shape index: {}]
  %s3 = inlined_call_operand.hbm [shape: f32[32,128], index: 3, kind: input, shape index: {}]
  %s4 = inlined_call_operand.vmem [shape: f32[1,256], index: 4, kind: input, shape index: {}]
  %s5 = inlined_call_operand.hbm [shape: f32[64,256], index: 5, kind: input, shape index: {}]
  %s6 = inlined_call_operand.hbm [shape: f32[32,128], index: 6, kind: input, shape index: {}]
  %s7 = inlined_call_operand.hbm [shape: f32[32,128], index: 7, kind: input, shape index: {}]
  %s8 = inlined_call_operand.vmem [shape: f32[1,256], index: 8, kind: input, shape index: {}]
  %s9 = inlined_call_operand.vmem [shape: f32[64,4], index: 9, kind: input, shape index: {}]
  %s10 = inlined_call_operand.vmem [shape: f32[1,4], index: 10, kind: input, shape index: {}]
  %s11 = inlined_call_operand.vmem [shape: s32[2,1], index: 11, kind: output, shape index: {}]
  %s12 = sld [smem:[#allocation0]]
  $region70: #{bilstm_forward.1} parent=0
    _
  %s14 = ssub.s32 1, %s12
  %s15 = scalar_select 0, %s14, %s12
  $region1: #{bilstm_forward.1} parent=0
    #allocation4 [shape = 'u8[16384]{0}', space=vmem, size = 0x4000, scoped, tag = 'input window, operand 3, single buffered']
    #allocation5 [shape = 's32[1]{0}', space=sflag, size = 0x4, scoped, tag = 'scoped memory for bilstm_forward.1']
    #allocation6 [shape = 'u8[65536]{0}', space=vmem, size = 0x10000, scoped, tag = 'input window, operand 5, single buffered']
    #allocation7 [shape = 's32[1]{0}', space=sflag, size = 0x4, scoped, tag = 'scoped memory for bilstm_forward.1']
    #allocation8 [shape = 'u8[16384]{0}', space=vmem, size = 0x4000, scoped, tag = 'input window, operand 6, single buffered']
    #allocation9 [shape = 'u8[16384]{0}', space=vmem, size = 0x4000, scoped, tag = 'input window, operand 7, single buffered']
    #allocation10 [shape = 's32[1]{0}', space=sflag, size = 0x4, scoped, tag = 'scoped memory for bilstm_forward.1']
    %16 = vsyncpa [#allocation5], 0
    %17 = vsyncpa [#allocation7], 0
    %18 = vsyncpa [#allocation10], 0
    // Predicated region
    $region2: #{bilstm_forward.1} parent=1 // pred_check
      _
    $region3: #{bilstm_forward.1} parent=1 // pred_check_branch
      %20 = sbr.rel (0) target = $region5
    $region4: #{bilstm_forward.1} parent=1 // pred_region
      _
    $region5: #{bilstm_forward.1} parent=1 // pred_fallthru
      _
    // Predicated region
    $region6: #{bilstm_forward.1} parent=1 // pred_check
      _
    $region7: #{bilstm_forward.1} parent=1 // pred_check_branch
      %22 = sbr.rel (0) target = $region9
    $region8: #{bilstm_forward.1} parent=1 // pred_region
      _
    $region9: #{bilstm_forward.1} parent=1 // pred_fallthru
      _
    // Predicated region
    $region10: #{bilstm_forward.1} parent=1 // pred_check
      _
    $region11: #{bilstm_forward.1} parent=1 // pred_check_branch
      %24 = sbr.rel (0) target = $region13
    $region12: #{bilstm_forward.1} parent=1 // pred_region
      _
    $region13: #{bilstm_forward.1} parent=1 // pred_fallthru
      _
    // Predicated region
    $region14: #{bilstm_forward.1} parent=1 // pred_check
      _
    $region15: #{bilstm_forward.1} parent=1 // pred_check_branch
      %26 = sbr.rel (0) target = $region17
    $region16: #{bilstm_forward.1} parent=1 // pred_region
      %s28 = ssub.s32 512, 512
      %29 = vsyncadd [#allocation5], %s28
      %s30 = sshll.u32 [#allocation4], 4
      %s31 = int_to_ptr.vmem [resolvable:$true] %s30
      %36 = dma.hbm_to_vmem [thread:$0]  %s3, 512, %s31, [#allocation5], 128, 128, 8
    $region17: #{bilstm_forward.1} parent=1 // pred_fallthru
      _
    // Predicated region
    $region18: #{bilstm_forward.1} parent=1 // pred_check
      _
    $region19: #{bilstm_forward.1} parent=1 // pred_check_branch
      %38 = sbr.rel (0) target = $region21
    $region20: #{bilstm_forward.1} parent=1 // pred_region
      _
    $region21: #{bilstm_forward.1} parent=1 // pred_fallthru
      _
    // Predicated region
    $region22: #{bilstm_forward.1} parent=1 // pred_check
      _
    $region23: #{bilstm_forward.1} parent=1 // pred_check_branch
      %40 = sbr.rel (0) target = $region25
    $region24: #{bilstm_forward.1} parent=1 // pred_region
      %s42 = ssub.s32 2048, 2048
      %43 = vsyncadd [#allocation7], %s42
      %s44 = sshll.u32 [#allocation6], 4
      %s45 = int_to_ptr.vmem [resolvable:$true] %s44
      %50 = dma.hbm_to_vmem [thread:$0]  %s5, 2048, %s45, [#allocation7], 256, 256, 16
    $region25: #{bilstm_forward.1} parent=1 // pred_fallthru
      _
    // Predicated region
    $region26: #{bilstm_forward.1} parent=1 // pred_check
      _
    $region27: #{bilstm_forward.1} parent=1 // pred_check_branch
      %52 = sbr.rel (0) target = $region29
    $region28: #{bilstm_forward.1} parent=1 // pred_region
      %s54 = ssub.s32 512, 512
      %55 = vsyncadd [#allocation7], %s54
      %s56 = sshll.u32 [#allocation8], 4
      %s57 = int_to_ptr.vmem [resolvable:$true] %s56
      %62 = dma.hbm_to_vmem [thread:$0]  %s6, 512, %s57, [#allocation7], 128, 128, 8
    $region29: #{bilstm_forward.1} parent=1 // pred_fallthru
      _
    // Predicated region
    $region30: #{bilstm_forward.1} parent=1 // pred_check
      _
    $region31: #{bilstm_forward.1} parent=1 // pred_check_branch
      %64 = sbr.rel (0) target = $region33
    $region32: #{bilstm_forward.1} parent=1 // pred_region
      %s66 = ssub.s32 512, 512
      %67 = vsyncadd [#allocation10], %s66
      %s68 = sshll.u32 [#allocation9], 4
      %s69 = int_to_ptr.vmem [resolvable:$true] %s68
      %74 = dma.hbm_to_vmem [thread:$0]  %s7, 512, %s69, [#allocation10], 128, 128, 8
    $region33: #{bilstm_forward.1} parent=1 // pred_fallthru
      _
    // Predicated region
    $region34: #{bilstm_forward.1} parent=1 // pred_check
      _
    $region35: #{bilstm_forward.1} parent=1 // pred_check_branch
      %76 = sbr.rel (0) target = $region37
    $region36: #{bilstm_forward.1} parent=1 // pred_region
      _
    $region37: #{bilstm_forward.1} parent=1 // pred_fallthru
      _
    // Predicated region
    $region38: #{bilstm_forward.1} parent=1 // pred_check
      _
    $region39: #{bilstm_forward.1} parent=1 // pred_check_branch
      %78 = sbr.rel (0) target = $region41
    $region40: #{bilstm_forward.1} parent=1 // pred_region
      _
    $region41: #{bilstm_forward.1} parent=1 // pred_fallthru
      _
    // Predicated region
    $region42: #{bilstm_forward.1} parent=1 // pred_check
      _
    $region43: #{bilstm_forward.1} parent=1 // pred_check_branch
      %80 = sbr.rel (0) target = $region45
    $region44: #{bilstm_forward.1} parent=1 // pred_region
      _
    $region45: #{bilstm_forward.1} parent=1 // pred_fallthru
      _
    // Predicated region
    $region46: #{bilstm_forward.1} parent=1 // pred_check
      _
    $region47: #{bilstm_forward.1} parent=1 // pred_check_branch
      %82 = sbr.rel (0) target = $region49
    $region48: #{bilstm_forward.1} parent=1 // pred_region
      %83 = dma.done [#allocation5], 512
    $region49: #{bilstm_forward.1} parent=1 // pred_fallthru
      _
    // Predicated region
    $region50: #{bilstm_forward.1} parent=1 // pred_check
      _
    $region51: #{bilstm_forward.1} parent=1 // pred_check_branch
      %85 = sbr.rel (0) target = $region53
    $region52: #{bilstm_forward.1} parent=1 // pred_region
      %86 = dma.done [#allocation7], 2048
    $region53: #{bilstm_forward.1} parent=1 // pred_fallthru
      _
    // Predicated region
    $region54: #{bilstm_forward.1} parent=1 // pred_check
      _
    $region55: #{bilstm_forward.1} parent=1 // pred_check_branch
      %88 = sbr.rel (0) target = $region57
    $region56: #{bilstm_forward.1} parent=1 // pred_region
      %89 = dma.done [#allocation7], 512
    $region57: #{bilstm_forward.1} parent=1 // pred_fallthru
      _
    // Predicated region
    $region58: #{bilstm_forward.1} parent=1 // pred_check
      _
    $region59: #{bilstm_forward.1} parent=1 // pred_check_branch
      %91 = sbr.rel (0) target = $region61
    $region60: #{bilstm_forward.1} parent=1 // pred_region
      %92 = dma.done [#allocation10], 512
    $region61: #{bilstm_forward.1} parent=1 // pred_fallthru
      _
    %v93 = vld [vmem:[%s1] sm:$0xff]
    %v94 = vld [vmem:[%s1 + $0x8] sm:$0xff]
    %v95 = vld [vmem:[%s1 + $0x10] sm:$0xff]
    %v96 = vld [vmem:[%s1 + $0x18] sm:$0xff]
    %v97 = vld [vmem:[%s1 + $0x20] sm:$0xff]
    %v98 = vld [vmem:[%s1 + $0x28] sm:$0xff]
    %v99 = vld [vmem:[%s1 + $0x30] sm:$0xff]
    %v100 = vld [vmem:[%s1 + $0x38] sm:$0xff]
    %v101 = vld [vmem:[%s2] sm:$0xff]
    %v102 = vld [vmem:[%s2 + $0x8] sm:$0xff]
    %v103 = vld [vmem:[%s2 + $0x10] sm:$0xff]
    %v104 = vld [vmem:[%s2 + $0x18] sm:$0xff]
    %v105 = vld [vmem:[%s4] sm:$0x3]
    %v106 = vld [vmem:[%s0] sm:$0xff]
    %v107 = vld [vmem:[%s0 + $0x8] sm:$0xff]
    %v109 = vlaneseq
    %v110 = vshrl.u32 %v109, 7
    %v111 = vsub.s32 0, %v110
    %v112 = vrot.slane %v105, %v111
    %v113 = vlaneseq
    %v114 = vshrl.u32 %v113, 7
    %v115 = vsub.s32 1, %v114
    %v116 = vrot.slane %v105, %v115
    %vm119 = vcmask 261120
    %v121 = vsel %vm119, %v106, 0
    %v124 = vsel %vm119, %v107, 0
    %126 = vmatprep.subr.mxu0 0.0
    %127 = vmatpush1.msra.mxu0 0.0
    %128 = vmatprep.subr.mxu0 0.0
    %129 = vmatpush1.msra.mxu0 0.0
    %130 = vmatprep.subr.mxu0 0.0
    %131 = vmatpush1.msra.mxu0 0.0
    %132 = vmatprep.subr.mxu0 0.0
    %133 = vmatpush1.msra.mxu0 0.0
    %134 = vmatprep.subr.mxu0 0.0
    %135 = vmatpush1.msra.mxu0 0.0
    %136 = vmatprep.subr.mxu0 0.0
    %137 = vmatpush1.msra.mxu0 0.0
    %138 = vmatprep.subr.mxu0 0.0
    %139 = vmatpush1.msra.mxu0 0.0
    %140 = vmatprep.subr.mxu0 0.0
    %141 = vmatpush1.msra.mxu0 0.0
    %142 = vmatprep.subr.mxu0 0.0
    %143 = vmatpush1.msra.mxu0 0.0
    %144 = vmatprep.subr.mxu0 0.0
    %145 = vmatpush1.msra.mxu0 0.0
    %146 = vmatprep.subr.mxu0 0.0
    %147 = vmatpush1.msra.mxu0 0.0
    %148 = vmatprep.subr.mxu0 0.0
    %149 = vmatpush1.msra.mxu0 0.0
    %150 = vmatprep.subr.mxu0 %v100
    %151 = vmatpush1.msra.mxu0 %v99
    %152 = vmatprep.subr.mxu0 %v98
    %153 = vmatpush1.msra.mxu0 %v97
    %154 = vmatprep.subr.mxu0 %v96
    %155 = vmatpush1.msra.mxu0 %v95
    %156 = vmatprep.subr.mxu0 %v94
    %157 = vmatpush1.msra.mxu0 %v93
    %158 = vmatprep.subr.mxu0 0.0
    %159 = vmatpush2.msra.mxu0 0.0
    %160 = vmatprep.subr.mxu0 0.0
    %161 = vmatpush2.msra.mxu0 0.0
    %162 = vmatprep.subr.mxu0 0.0
    %163 = vmatpush2.msra.mxu0 0.0
    %164 = vmatprep.subr.mxu0 0.0
    %165 = vmatpush2.msra.mxu0 0.0
    %166 = vmatprep.subr.mxu0 0.0
    %167 = vmatpush2.msra.mxu0 0.0
    %168 = vmatprep.subr.mxu0 0.0
    %169 = vmatpush2.msra.mxu0 0.0
    %170 = vmatprep.subr.mxu0 0.0
    %171 = vmatpush2.msra.mxu0 0.0
    %172 = vmatprep.subr.mxu0 0.0
    %173 = vmatpush2.msra.mxu0 0.0
    %174 = vmatprep.subr.mxu0 0.0
    %175 = vmatpush2.msra.mxu0 0.0
    %176 = vmatprep.subr.mxu0 0.0
    %177 = vmatpush2.msra.mxu0 0.0
    %178 = vmatprep.subr.mxu0 0.0
    %179 = vmatpush2.msra.mxu0 0.0
    %180 = vmatprep.subr.mxu0 0.0
    %181 = vmatpush2.msra.mxu0 0.0
    %182 = vmatprep.subr.mxu0 0.0
    %183 = vmatpush2.msra.mxu0 0.0
    %184 = vmatprep.subr.mxu0 0.0
    %185 = vmatpush2.msra.mxu0 0.0
    %186 = vmatprep.subr.mxu0 0.0
    %187 = vmatpush2.msra.mxu0 0.0
    %188 = vmatprep.subr.mxu0 0.0
    %189 = vmatpush2.msra.mxu0 0.0
    %190 = vmatprep.mubr.f32.mxu0 0.0
    %191 = vmatmul.mubr.f32.gmra.mxu0 %v121
    %v192 = vpop.f32.mrf.mxu0
    %v193 = vadd.f32 %v112, %v192
    %v194 = vpop.f32.mrf.mxu0
    %v195 = vadd.f32 %v116, %v194
    %196 = vmatprep.mubr.f32.mxu0 0.0
    %197 = vmatmul.mubr.f32.gmra.mxu0 %v124
    %v198 = vpop.f32.mrf.mxu0
    %v199 = vadd.f32 %v112, %v198
    %v200 = vpop.f32.mrf.mxu0
    %v201 = vadd.f32 %v116, %v200
    %202 = vdwg.mxu0
    %v203 = vld [vmem:[#allocation4] sm:$0xff]
    %v204 = vld [vmem:[#allocation4 + $0x8] sm:$0xff]
    %v205 = vld [vmem:[#allocation4 + $0x10] sm:$0xff]
    %v206 = vld [vmem:[#allocation4 + $0x18] sm:$0xff]
    %v208 = vsel %vm119, 0.0, 0
    %210 = vmatprep.subr.mxu0 0.0
    %211 = vmatpush1.msra.mxu0 0.0
    %212 = vmatprep.subr.mxu0 0.0
    %213 = vmatpush1.msra.mxu0 0.0
    %214 = vmatprep.subr.mxu0 0.0
    %215 = vmatpush1.msra.mxu0 0.0
    %216 = vmatprep.subr.mxu0 0.0
    %217 = vmatpush1.msra.mxu0 0.0
    %218 = vmatprep.subr.mxu0 0.0
    %219 = vmatpush1.msra.mxu0 0.0
    %220 = vmatprep.subr.mxu0 0.0
    %221 = vmatpush1.msra.mxu0 0.0
    %222 = vmatprep.subr.mxu0 0.0
    %223 = vmatpush1.msra.mxu0 0.0
    %224 = vmatprep.subr.mxu0 0.0
    %225 = vmatpush1.msra.mxu0 0.0
    %226 = vmatprep.subr.mxu0 0.0
    %227 = vmatpush1.msra.mxu0 0.0
    %228 = vmatprep.subr.mxu0 0.0
    %229 = vmatpush1.msra.mxu0 0.0
    %230 = vmatprep.subr.mxu0 0.0
    %231 = vmatpush1.msra.mxu0 0.0
    %232 = vmatprep.subr.mxu0 0.0
    %233 = vmatpush1.msra.mxu0 0.0
    %234 = vmatprep.subr.mxu0 0.0
    %235 = vmatpush1.msra.mxu0 %v104
    %236 = vmatprep.subr.mxu0 0.0
    %237 = vmatpush1.msra.mxu0 %v103
    %238 = vmatprep.subr.mxu0 0.0
    %239 = vmatpush1.msra.mxu0 %v102
    %240 = vmatprep.subr.mxu0 0.0
    %241 = vmatpush1.msra.mxu0 %v101
    %242 = vmatprep.subr.mxu0 0.0
    %243 = vmatpush2.msra.mxu0 0.0
    %244 = vmatprep.subr.mxu0 0.0
    %245 = vmatpush2.msra.mxu0 0.0
    %246 = vmatprep.subr.mxu0 0.0
    %247 = vmatpush2.msra.mxu0 0.0
    %248 = vmatprep.subr.mxu0 0.0
    %249 = vmatpush2.msra.mxu0 0.0
    %250 = vmatprep.subr.mxu0 0.0
    %251 = vmatpush2.msra.mxu0 0.0
    %252 = vmatprep.subr.mxu0 0.0
    %253 = vmatpush2.msra.mxu0 0.0
    %254 = vmatprep.subr.mxu0 0.0
    %255 = vmatpush2.msra.mxu0 0.0
    %256 = vmatprep.subr.mxu0 0.0
    %257 = vmatpush2.msra.mxu0 0.0
    %258 = vmatprep.subr.mxu0 0.0
    %259 = vmatpush2.msra.mxu0 0.0
    %260 = vmatprep.subr.mxu0 0.0
    %261 = vmatpush2.msra.mxu0 0.0
    %262 = vmatprep.subr.mxu0 0.0
    %263 = vmatpush2.msra.mxu0 0.0
    %264 = vmatprep.subr.mxu0 0.0
    %265 = vmatpush2.msra.mxu0 0.0
    %266 = vmatprep.subr.mxu0 0.0
    %267 = vmatpush2.msra.mxu0 0.0
    %268 = vmatprep.subr.mxu0 0.0
    %269 = vmatpush2.msra.mxu0 0.0
    %270 = vmatprep.subr.mxu0 0.0
    %271 = vmatpush2.msra.mxu0 0.0
    %272 = vmatprep.subr.mxu0 0.0
    %273 = vmatpush2.msra.mxu0 0.0
    %274 = vmatprep.mubr.f32.mxu0 0.0
    %275 = vmatmul.mubr.f32.gmra.mxu0 %v208
    %v276 = vpop.f32.mrf.mxu0
    %v277 = vadd.f32 0.0, %v276
    %v278 = vpop.f32.mrf.mxu0
    %279 = vdwg.mxu0
    %v280 = vadd.f32 %v193, %v277
    %v281 = vxor.u32 %v280, 2147483648
    %v282 = vmul.f32 %v281, 1.442695
    %v283 = vpow.pop %v282
    %v284 = vadd.f32 %v283, 1.0
    %v285 = vrcp.pop %v284
    %v286 = vmul.f32 1.0, %v285
    %v287 = vtanh.pop %v280
    %v288 = vmul.f32 %v286, 0.0
    %290 = vrot.lane.b32.xlu0 %v287, 32
    %v291 = vpop.permute.xlu0 %290
    %v293 = vmul.f32 %v286, %v291
    %295 = vrot.lane.b32.xlu0 %v293, 32
    %v296 = vpop.permute.xlu0 %295
    %v298 = vadd.f32 %v288, %v296
    %v299 = vtanh.pop %v298
    %301 = vrot.lane.b32.xlu0 %v299, 32
    %v302 = vpop.permute.xlu0 %301
    %v304 = vmul.f32 %v286, %v302
    %305 = vmatprep.subr.mxu0 0.0
    %306 = vmatpush1.msra.mxu0 0.0
    %307 = vmatprep.subr.mxu0 0.0
    %308 = vmatpush1.msra.mxu0 0.0
    %309 = vmatprep.subr.mxu0 0.0
    %310 = vmatpush1.msra.mxu0 0.0
    %311 = vmatprep.subr.mxu0 0.0
    %312 = vmatpush1.msra.mxu0 0.0
    %313 = vmatprep.subr.mxu0 0.0
    %314 = vmatpush1.msra.mxu0 0.0
    %315 = vmatprep.subr.mxu0 0.0
    %316 = vmatpush1.msra.mxu0 0.0
    %317 = vmatprep.subr.mxu0 0.0
    %318 = vmatpush1.msra.mxu0 0.0
    %319 = vmatprep.subr.mxu0 0.0
    %320 = vmatpush1.msra.mxu0 0.0
    %321 = vmatprep.subr.mxu0 0.0
    %322 = vmatpush1.msra.mxu0 0.0
    %323 = vmatprep.subr.mxu0 0.0
    %324 = vmatpush1.msra.mxu0 0.0
    %325 = vmatprep.subr.mxu0 0.0
    %326 = vmatpush1.msra.mxu0 0.0
    %327 = vmatprep.subr.mxu0 0.0
    %328 = vmatpush1.msra.mxu0 0.0
    %329 = vmatprep.subr.mxu0 0.0
    %330 = vmatpush1.msra.mxu0 %v206
    %331 = vmatprep.subr.mxu0 0.0
    %332 = vmatpush1.msra.mxu0 %v205
    %333 = vmatprep.subr.mxu0 0.0
    %334 = vmatpush1.msra.mxu0 %v204
    %335 = vmatprep.subr.mxu0 0.0
    %336 = vmatpush1.msra.mxu0 %v203
    %337 = vmatprep.subr.mxu0 0.0
    %338 = vmatpush2.msra.mxu0 0.0
    %339 = vmatprep.subr.mxu0 0.0
    %340 = vmatpush2.msra.mxu0 0.0
    %341 = vmatprep.subr.mxu0 0.0
    %342 = vmatpush2.msra.mxu0 0.0
    %343 = vmatprep.subr.mxu0 0.0
    %344 = vmatpush2.msra.mxu0 0.0
    %345 = vmatprep.subr.mxu0 0.0
    %346 = vmatpush2.msra.mxu0 0.0
    %347 = vmatprep.subr.mxu0 0.0
    %348 = vmatpush2.msra.mxu0 0.0
    %349 = vmatprep.subr.mxu0 0.0
    %350 = vmatpush2.msra.mxu0 0.0
    %351 = vmatprep.subr.mxu0 0.0
    %352 = vmatpush2.msra.mxu0 0.0
    %353 = vmatprep.subr.mxu0 0.0
    %354 = vmatpush2.msra.mxu0 0.0
    %355 = vmatprep.subr.mxu0 0.0
    %356 = vmatpush2.msra.mxu0 0.0
    %357 = vmatprep.subr.mxu0 0.0
    %358 = vmatpush2.msra.mxu0 0.0
    %359 = vmatprep.subr.mxu0 0.0
    %360 = vmatpush2.msra.mxu0 0.0
    %361 = vmatprep.subr.mxu0 0.0
    %362 = vmatpush2.msra.mxu0 0.0
    %363 = vmatprep.subr.mxu0 0.0
    %364 = vmatpush2.msra.mxu0 0.0
    %365 = vmatprep.subr.mxu0 0.0
    %366 = vmatpush2.msra.mxu0 0.0
    %367 = vmatprep.subr.mxu0 0.0
    %368 = vmatpush2.msra.mxu0 0.0
    %369 = vmatprep.mubr.f32.mxu0 0.0
    %370 = vmatmul.mubr.f32.gmra.mxu0 %v208
    %v371 = vpop.f32.mrf.mxu0
    %v372 = vadd.f32 0.0, %v371
    %v373 = vpop.f32.mrf.mxu0
    %374 = vdwg.mxu0
    %v376 = vrot.slane %v372, 2
    %v378 = vadd.f32 %v201, %v376
    %v379 = vxor.u32 %v378, 2147483648
    %v380 = vmul.f32 %v379, 1.442695
    %v381 = vpow.pop %v380
    %v382 = vadd.f32 %v381, 1.0
    %v383 = vrcp.pop %v382
    %v384 = vmul.f32 1.0, %v383
    %v385 = vtanh.pop %v378
    %v386 = vmul.f32 %v384, 0.0
    %388 = vrot.lane.b32.xlu0 %v385, 32
    %v389 = vpop.permute.xlu0 %388
    %v391 = vmul.f32 %v384, %v389
    %393 = vrot.lane.b32.xlu0 %v391, 32
    %v394 = vpop.permute.xlu0 %393
    %v396 = vadd.f32 %v386, %v394
    %v397 = vtanh.pop %v396
    %399 = vrot.lane.b32.xlu0 %v397, 32
    %v400 = vpop.permute.xlu0 %399
    %v402 = vmul.f32 %v384, %v400
    %404 = vrot.lane.b32.xlu0 %v304, 64
    %v405 = vpop.permute.xlu0 %404
    %vm407 = vcmask 254976
    %408 = vst.msk [vmem:[#allocation2] sm:$0x3] %vm407, %v405
    %410 = vrot.lane.b32.xlu0 %v402, 64
    %v411 = vpop.permute.xlu0 %410
    %vm413 = vcmask 261126
    %414 = vst.msk [vmem:[#allocation3 + $0x8] sm:$0xc0] %vm413, %v411
    %v415 = vsel %vm119, %v405, 0
    %417 = vmatprep.subr.mxu0 0.0
    %418 = vmatpush1.msra.mxu0 0.0
    %419 = vmatprep.subr.mxu0 0.0
    %420 = vmatpush1.msra.mxu0 0.0
    %421 = vmatprep.subr.mxu0 0.0
    %422 = vmatpush1.msra.mxu0 0.0
    %423 = vmatprep.subr.mxu0 0.0
    %424 = vmatpush1.msra.mxu0 0.0
    %425 = vmatprep.subr.mxu0 0.0
    %426 = vmatpush1.msra.mxu0 0.0
    %427 = vmatprep.subr.mxu0 0.0
    %428 = vmatpush1.msra.mxu0 0.0
    %429 = vmatprep.subr.mxu0 0.0
    %430 = vmatpush1.msra.mxu0 0.0
    %431 = vmatprep.subr.mxu0 0.0
    %432 = vmatpush1.msra.mxu0 0.0
    %433 = vmatprep.subr.mxu0 0.0
    %434 = vmatpush1.msra.mxu0 0.0
    %435 = vmatprep.subr.mxu0 0.0
    %436 = vmatpush1.msra.mxu0 0.0
    %437 = vmatprep.subr.mxu0 0.0
    %438 = vmatpush1.msra.mxu0 0.0
    %439 = vmatprep.subr.mxu0 0.0
    %440 = vmatpush1.msra.mxu0 0.0
    %441 = vmatprep.subr.mxu0 0.0
    %442 = vmatpush1.msra.mxu0 %v104
    %443 = vmatprep.subr.mxu0 0.0
    %444 = vmatpush1.msra.mxu0 %v103
    %445 = vmatprep.subr.mxu0 0.0
    %446 = vmatpush1.msra.mxu0 %v102
    %447 = vmatprep.subr.mxu0 0.0
    %448 = vmatpush1.msra.mxu0 %v101
    %449 = vmatprep.subr.mxu0 0.0
    %450 = vmatpush2.msra.mxu0 0.0
    %451 = vmatprep.subr.mxu0 0.0
    %452 = vmatpush2.msra.mxu0 0.0
    %453 = vmatprep.subr.mxu0 0.0
    %454 = vmatpush2.msra.mxu0 0.0
    %455 = vmatprep.subr.mxu0 0.0
    %456 = vmatpush2.msra.mxu0 0.0
    %457 = vmatprep.subr.mxu0 0.0
    %458 = vmatpush2.msra.mxu0 0.0
    %459 = vmatprep.subr.mxu0 0.0
    %460 = vmatpush2.msra.mxu0 0.0
    %461 = vmatprep.subr.mxu0 0.0
    %462 = vmatpush2.msra.mxu0 0.0
    %463 = vmatprep.subr.mxu0 0.0
    %464 = vmatpush2.msra.mxu0 0.0
    %465 = vmatprep.subr.mxu0 0.0
    %466 = vmatpush2.msra.mxu0 0.0
    %467 = vmatprep.subr.mxu0 0.0
    %468 = vmatpush2.msra.mxu0 0.0
    %469 = vmatprep.subr.mxu0 0.0
    %470 = vmatpush2.msra.mxu0 0.0
    %471 = vmatprep.subr.mxu0 0.0
    %472 = vmatpush2.msra.mxu0 0.0
    %473 = vmatprep.subr.mxu0 0.0
    %474 = vmatpush2.msra.mxu0 0.0
    %475 = vmatprep.subr.mxu0 0.0
    %476 = vmatpush2.msra.mxu0 0.0
    %477 = vmatprep.subr.mxu0 0.0
    %478 = vmatpush2.msra.mxu0 0.0
    %479 = vmatprep.subr.mxu0 0.0
    %480 = vmatpush2.msra.mxu0 0.0
    %481 = vmatprep.mubr.f32.mxu0 0.0
    %482 = vmatmul.mubr.f32.gmra.mxu0 %v415
    %v483 = vpop.f32.mrf.mxu0
    %v484 = vadd.f32 0.0, %v483
    %v485 = vpop.f32.mrf.mxu0
    %486 = vdwg.mxu0
    %v488 = vrot.slane %v484, 6
    %v490 = vadd.f32 %v193, %v488
    %v491 = vxor.u32 %v490, 2147483648
    %v492 = vmul.f32 %v491, 1.442695
    %v493 = vpow.pop %v492
    %v494 = vadd.f32 %v493, 1.0
    %v495 = vrcp.pop %v494
    %v496 = vmul.f32 1.0, %v495
    %v497 = vtanh.pop %v490
    %v499 = vrot.slane %v298, 6
    %v501 = vmul.f32 %v496, %v499
    %503 = vrot.lane.b32.xlu0 %v497, 32
    %v504 = vpop.permute.xlu0 %503
    %v506 = vmul.f32 %v496, %v504
    %508 = vrot.lane.b32.xlu0 %v506, 32
    %v509 = vpop.permute.xlu0 %508
    %v511 = vadd.f32 %v501, %v509
    %v512 = vtanh.pop %v511
    %514 = vrot.lane.b32.xlu0 %v512, 32
    %v515 = vpop.permute.xlu0 %514
    %v517 = vmul.f32 %v496, %v515
    %v518 = vrot.slane %v402, 6
    %519 = vrot.lane.b32.xlu0 %v518, 64
    %v520 = vpop.permute.xlu0 %519
    %v521 = vsel %vm119, %v520, 0
    %523 = vmatprep.subr.mxu0 0.0
    %524 = vmatpush1.msra.mxu0 0.0
    %525 = vmatprep.subr.mxu0 0.0
    %526 = vmatpush1.msra.mxu0 0.0
    %527 = vmatprep.subr.mxu0 0.0
    %528 = vmatpush1.msra.mxu0 0.0
    %529 = vmatprep.subr.mxu0 0.0
    %530 = vmatpush1.msra.mxu0 0.0
    %531 = vmatprep.subr.mxu0 0.0
    %532 = vmatpush1.msra.mxu0 0.0
    %533 = vmatprep.subr.mxu0 0.0
    %534 = vmatpush1.msra.mxu0 0.0
    %535 = vmatprep.subr.mxu0 0.0
    %536 = vmatpush1.msra.mxu0 0.0
    %537 = vmatprep.subr.mxu0 0.0
    %538 = vmatpush1.msra.mxu0 0.0
    %539 = vmatprep.subr.mxu0 0.0
    %540 = vmatpush1.msra.mxu0 0.0
    %541 = vmatprep.subr.mxu0 0.0
    %542 = vmatpush1.msra.mxu0 0.0
    %543 = vmatprep.subr.mxu0 0.0
    %544 = vmatpush1.msra.mxu0 0.0
    %545 = vmatprep.subr.mxu0 0.0
    %546 = vmatpush1.msra.mxu0 0.0
    %547 = vmatprep.subr.mxu0 0.0
    %548 = vmatpush1.msra.mxu0 %v206
    %549 = vmatprep.subr.mxu0 0.0
    %550 = vmatpush1.msra.mxu0 %v205
    %551 = vmatprep.subr.mxu0 0.0
    %552 = vmatpush1.msra.mxu0 %v204
    %553 = vmatprep.subr.mxu0 0.0
    %554 = vmatpush1.msra.mxu0 %v203
    %555 = vmatprep.subr.mxu0 0.0
    %556 = vmatpush2.msra.mxu0 0.0
    %557 = vmatprep.subr.mxu0 0.0
    %558 = vmatpush2.msra.mxu0 0.0
    %559 = vmatprep.subr.mxu0 0.0
    %560 = vmatpush2.msra.mxu0 0.0
    %561 = vmatprep.subr.mxu0 0.0
    %562 = vmatpush2.msra.mxu0 0.0
    %563 = vmatprep.subr.mxu0 0.0
    %564 = vmatpush2.msra.mxu0 0.0
    %565 = vmatprep.subr.mxu0 0.0
    %566 = vmatpush2.msra.mxu0 0.0
    %567 = vmatprep.subr.mxu0 0.0
    %568 = vmatpush2.msra.mxu0 0.0
    %569 = vmatprep.subr.mxu0 0.0
    %570 = vmatpush2.msra.mxu0 0.0
    %571 = vmatprep.subr.mxu0 0.0
    %572 = vmatpush2.msra.mxu0 0.0
    %573 = vmatprep.subr.mxu0 0.0
    %574 = vmatpush2.msra.mxu0 0.0
    %575 = vmatprep.subr.mxu0 0.0
    %576 = vmatpush2.msra.mxu0 0.0
    %577 = vmatprep.subr.mxu0 0.0
    %578 = vmatpush2.msra.mxu0 0.0
    %579 = vmatprep.subr.mxu0 0.0
    %580 = vmatpush2.msra.mxu0 0.0
    %581 = vmatprep.subr.mxu0 0.0
    %582 = vmatpush2.msra.mxu0 0.0
    %583 = vmatprep.subr.mxu0 0.0
    %584 = vmatpush2.msra.mxu0 0.0
    %585 = vmatprep.subr.mxu0 0.0
    %586 = vmatpush2.msra.mxu0 0.0
    %587 = vmatprep.mubr.f32.mxu0 0.0
    %588 = vmatmul.mubr.f32.gmra.mxu0 %v521
    %v589 = vpop.f32.mrf.mxu0
    %v590 = vadd.f32 0.0, %v589
    %v591 = vpop.f32.mrf.mxu0
    %592 = vdwg.mxu0
    %v594 = vrot.slane %v590, 4
    %v596 = vadd.f32 %v201, %v594
    %v597 = vxor.u32 %v596, 2147483648
    %v598 = vmul.f32 %v597, 1.442695
    %v599 = vpow.pop %v598
    %v600 = vadd.f32 %v599, 1.0
    %v601 = vrcp.pop %v600
    %v602 = vmul.f32 1.0, %v601
    %v603 = vtanh.pop %v596
    %v605 = vrot.slane %v396, 2
    %v607 = vmul.f32 %v602, %v605
    %609 = vrot.lane.b32.xlu0 %v603, 32
    %v610 = vpop.permute.xlu0 %609
    %v612 = vmul.f32 %v602, %v610
    %614 = vrot.lane.b32.xlu0 %v612, 32
    %v615 = vpop.permute.xlu0 %614
    %v617 = vadd.f32 %v607, %v615
    %v618 = vtanh.pop %v617
    %620 = vrot.lane.b32.xlu0 %v618, 32
    %v621 = vpop.permute.xlu0 %620
    %v623 = vmul.f32 %v602, %v621
    %625 = vrot.lane.b32.xlu0 %v517, 64
    %v626 = vpop.permute.xlu0 %625
    %vm628 = vcmask 257026
    %629 = vst.msk [vmem:[#allocation2] sm:$0xc] %vm628, %v626
    %631 = vrot.lane.b32.xlu0 %v623, 64
    %v632 = vpop.permute.xlu0 %631
    %vm634 = vcmask 259076
    %635 = vst.msk [vmem:[#allocation3 + $0x8] sm:$0x30] %vm634, %v632
    %v636 = vrot.slane %v517, 2
    %637 = vrot.lane.b32.xlu0 %v636, 64
    %v638 = vpop.permute.xlu0 %637
    %v639 = vsel %vm119, %v638, 0
    %641 = vmatprep.subr.mxu0 0.0
    %642 = vmatpush1.msra.mxu0 0.0
    %643 = vmatprep.subr.mxu0 0.0
    %644 = vmatpush1.msra.mxu0 0.0
    %645 = vmatprep.subr.mxu0 0.0
    %646 = vmatpush1.msra.mxu0 0.0
    %647 = vmatprep.subr.mxu0 0.0
    %648 = vmatpush1.msra.mxu0 0.0
    %649 = vmatprep.subr.mxu0 0.0
    %650 = vmatpush1.msra.mxu0 0.0
    %651 = vmatprep.subr.mxu0 0.0
    %652 = vmatpush1.msra.mxu0 0.0
    %653 = vmatprep.subr.mxu0 0.0
    %654 = vmatpush1.msra.mxu0 0.0
    %655 = vmatprep.subr.mxu0 0.0
    %656 = vmatpush1.msra.mxu0 0.0
    %657 = vmatprep.subr.mxu0 0.0
    %658 = vmatpush1.msra.mxu0 0.0
    %659 = vmatprep.subr.mxu0 0.0
    %660 = vmatpush1.msra.mxu0 0.0
    %661 = vmatprep.subr.mxu0 0.0
    %662 = vmatpush1.msra.mxu0 0.0
    %663 = vmatprep.subr.mxu0 0.0
    %664 = vmatpush1.msra.mxu0 0.0
    %665 = vmatprep.subr.mxu0 0.0
    %666 = vmatpush1.msra.mxu0 %v104
    %667 = vmatprep.subr.mxu0 0.0
    %668 = vmatpush1.msra.mxu0 %v103
    %669 = vmatprep.subr.mxu0 0.0
    %670 = vmatpush1.msra.mxu0 %v102
    %671 = vmatprep.subr.mxu0 0.0
    %672 = vmatpush1.msra.mxu0 %v101
    %673 = vmatprep.subr.mxu0 0.0
    %674 = vmatpush2.msra.mxu0 0.0
    %675 = vmatprep.subr.mxu0 0.0
    %676 = vmatpush2.msra.mxu0 0.0
    %677 = vmatprep.subr.mxu0 0.0
    %678 = vmatpush2.msra.mxu0 0.0
    %679 = vmatprep.subr.mxu0 0.0
    %680 = vmatpush2.msra.mxu0 0.0
    %681 = vmatprep.subr.mxu0 0.0
    %682 = vmatpush2.msra.mxu0 0.0
    %683 = vmatprep.subr.mxu0 0.0
    %684 = vmatpush2.msra.mxu0 0.0
    %685 = vmatprep.subr.mxu0 0.0
    %686 = vmatpush2.msra.mxu0 0.0
    %687 = vmatprep.subr.mxu0 0.0
    %688 = vmatpush2.msra.mxu0 0.0
    %689 = vmatprep.subr.mxu0 0.0
    %690 = vmatpush2.msra.mxu0 0.0
    %691 = vmatprep.subr.mxu0 0.0
    %692 = vmatpush2.msra.mxu0 0.0
    %693 = vmatprep.subr.mxu0 0.0
    %694 = vmatpush2.msra.mxu0 0.0
    %695 = vmatprep.subr.mxu0 0.0
    %696 = vmatpush2.msra.mxu0 0.0
    %697 = vmatprep.subr.mxu0 0.0
    %698 = vmatpush2.msra.mxu0 0.0
    %699 = vmatprep.subr.mxu0 0.0
    %700 = vmatpush2.msra.mxu0 0.0
    %701 = vmatprep.subr.mxu0 0.0
    %702 = vmatpush2.msra.mxu0 0.0
    %703 = vmatprep.subr.mxu0 0.0
    %704 = vmatpush2.msra.mxu0 0.0
    %705 = vmatprep.mubr.f32.mxu0 0.0
    %706 = vmatmul.mubr.f32.gmra.mxu0 %v639
    %v707 = vpop.f32.mrf.mxu0
    %v708 = vadd.f32 0.0, %v707
    %v709 = vpop.f32.mrf.mxu0
    %710 = vdwg.mxu0
    %v712 = vrot.slane %v708, 4
    %v714 = vadd.f32 %v193, %v712
    %v715 = vxor.u32 %v714, 2147483648
    %v716 = vmul.f32 %v715, 1.442695
    %v717 = vpow.pop %v716
    %v718 = vadd.f32 %v717, 1.0
    %v719 = vrcp.pop %v718
    %v720 = vmul.f32 1.0, %v719
    %v721 = vtanh.pop %v714
    %v723 = vrot.slane %v511, 6
    %v725 = vmul.f32 %v720, %v723
    %727 = vrot.lane.b32.xlu0 %v721, 32
    %v728 = vpop.permute.xlu0 %727
    %v730 = vmul.f32 %v720, %v728
    %732 = vrot.lane.b32.xlu0 %v730, 32
    %v733 = vpop.permute.xlu0 %732
    %v735 = vadd.f32 %v725, %v733
    %v736 = vtanh.pop %v735
    %738 = vrot.lane.b32.xlu0 %v736, 32
    %v739 = vpop.permute.xlu0 %738
    %v741 = vmul.f32 %v720, %v739
    %v742 = vrot.slane %v623, 4
    %743 = vrot.lane.b32.xlu0 %v742, 64
    %v744 = vpop.permute.xlu0 %743
    %v745 = vsel %vm119, %v744, 0
    %747 = vmatprep.subr.mxu0 0.0
    %748 = vmatpush1.msra.mxu0 0.0
    %749 = vmatprep.subr.mxu0 0.0
    %750 = vmatpush1.msra.mxu0 0.0
    %751 = vmatprep.subr.mxu0 0.0
    %752 = vmatpush1.msra.mxu0 0.0
    %753 = vmatprep.subr.mxu0 0.0
    %754 = vmatpush1.msra.mxu0 0.0
    %755 = vmatprep.subr.mxu0 0.0
    %756 = vmatpush1.msra.mxu0 0.0
    %757 = vmatprep.subr.mxu0 0.0
    %758 = vmatpush1.msra.mxu0 0.0
    %759 = vmatprep.subr.mxu0 0.0
    %760 = vmatpush1.msra.mxu0 0.0
    %761 = vmatprep.subr.mxu0 0.0
    %762 = vmatpush1.msra.mxu0 0.0
    %763 = vmatprep.subr.mxu0 0.0
    %764 = vmatpush1.msra.mxu0 0.0
    %765 = vmatprep.subr.mxu0 0.0
    %766 = vmatpush1.msra.mxu0 0.0
    %767 = vmatprep.subr.mxu0 0.0
    %768 = vmatpush1.msra.mxu0 0.0
    %769 = vmatprep.subr.mxu0 0.0
    %770 = vmatpush1.msra.mxu0 0.0
    %771 = vmatprep.subr.mxu0 0.0
    %772 = vmatpush1.msra.mxu0 %v206
    %773 = vmatprep.subr.mxu0 0.0
    %774 = vmatpush1.msra.mxu0 %v205
    %775 = vmatprep.subr.mxu0 0.0
    %776 = vmatpush1.msra.mxu0 %v204
    %777 = vmatprep.subr.mxu0 0.0
    %778 = vmatpush1.msra.mxu0 %v203
    %779 = vmatprep.subr.mxu0 0.0
    %780 = vmatpush2.msra.mxu0 0.0
    %781 = vmatprep.subr.mxu0 0.0
    %782 = vmatpush2.msra.mxu0 0.0
    %783 = vmatprep.subr.mxu0 0.0
    %784 = vmatpush2.msra.mxu0 0.0
    %785 = vmatprep.subr.mxu0 0.0
    %786 = vmatpush2.msra.mxu0 0.0
    %787 = vmatprep.subr.mxu0 0.0
    %788 = vmatpush2.msra.mxu0 0.0
    %789 = vmatprep.subr.mxu0 0.0
    %790 = vmatpush2.msra.mxu0 0.0
    %791 = vmatprep.subr.mxu0 0.0
    %792 = vmatpush2.msra.mxu0 0.0
    %793 = vmatprep.subr.mxu0 0.0
    %794 = vmatpush2.msra.mxu0 0.0
    %795 = vmatprep.subr.mxu0 0.0
    %796 = vmatpush2.msra.mxu0 0.0
    %797 = vmatprep.subr.mxu0 0.0
    %798 = vmatpush2.msra.mxu0 0.0
    %799 = vmatprep.subr.mxu0 0.0
    %800 = vmatpush2.msra.mxu0 0.0
    %801 = vmatprep.subr.mxu0 0.0
    %802 = vmatpush2.msra.mxu0 0.0
    %803 = vmatprep.subr.mxu0 0.0
    %804 = vmatpush2.msra.mxu0 0.0
    %805 = vmatprep.subr.mxu0 0.0
    %806 = vmatpush2.msra.mxu0 0.0
    %807 = vmatprep.subr.mxu0 0.0
    %808 = vmatpush2.msra.mxu0 0.0
    %809 = vmatprep.subr.mxu0 0.0
    %810 = vmatpush2.msra.mxu0 0.0
    %811 = vmatprep.mubr.f32.mxu0 0.0
    %812 = vmatmul.mubr.f32.gmra.mxu0 %v745
    %v813 = vpop.f32.mrf.mxu0
    %v814 = vadd.f32 0.0, %v813
    %v815 = vpop.f32.mrf.mxu0
    %816 = vdwg.mxu0
    %v818 = vrot.slane %v814, 6
    %v820 = vadd.f32 %v201, %v818
    %v821 = vxor.u32 %v820, 2147483648
    %v822 = vmul.f32 %v821, 1.442695
    %v823 = vpow.pop %v822
    %v824 = vadd.f32 %v823, 1.0
    %v825 = vrcp.pop %v824
    %v826 = vmul.f32 1.0, %v825
    %v827 = vtanh.pop %v820
    %v829 = vrot.slane %v617, 2
    %v831 = vmul.f32 %v826, %v829
    %833 = vrot.lane.b32.xlu0 %v827, 32
    %v834 = vpop.permute.xlu0 %833
    %v836 = vmul.f32 %v826, %v834
    %838 = vrot.lane.b32.xlu0 %v836, 32
    %v839 = vpop.permute.xlu0 %838
    %v841 = vadd.f32 %v831, %v839
    %v842 = vtanh.pop %v841
    %844 = vrot.lane.b32.xlu0 %v842, 32
    %v845 = vpop.permute.xlu0 %844
    %v847 = vmul.f32 %v826, %v845
    %849 = vrot.lane.b32.xlu0 %v741, 64
    %v850 = vpop.permute.xlu0 %849
    %852 = vst.msk [vmem:[#allocation2] sm:$0x30] %vm634, %v850
    %854 = vrot.lane.b32.xlu0 %v847, 64
    %v855 = vpop.permute.xlu0 %854
    %857 = vst.msk [vmem:[#allocation3 + $0x8] sm:$0xc] %vm628, %v855
    %v858 = vrot.slane %v741, 4
    %859 = vrot.lane.b32.xlu0 %v858, 64
    %v860 = vpop.permute.xlu0 %859
    %v861 = vsel %vm119, %v860, 0
    %863 = vmatprep.subr.mxu0 0.0
    %864 = vmatpush1.msra.mxu0 0.0
    %865 = vmatprep.subr.mxu0 0.0
    %866 = vmatpush1.msra.mxu0 0.0
    %867 = vmatprep.subr.mxu0 0.0
    %868 = vmatpush1.msra.mxu0 0.0
    %869 = vmatprep.subr.mxu0 0.0
    %870 = vmatpush1.msra.mxu0 0.0
    %871 = vmatprep.subr.mxu0 0.0
    %872 = vmatpush1.msra.mxu0 0.0
    %873 = vmatprep.subr.mxu0 0.0
    %874 = vmatpush1.msra.mxu0 0.0
    %875 = vmatprep.subr.mxu0 0.0
    %876 = vmatpush1.msra.mxu0 0.0
    %877 = vmatprep.subr.mxu0 0.0
    %878 = vmatpush1.msra.mxu0 0.0
    %879 = vmatprep.subr.mxu0 0.0
    %880 = vmatpush1.msra.mxu0 0.0
    %881 = vmatprep.subr.mxu0 0.0
    %882 = vmatpush1.msra.mxu0 0.0
    %883 = vmatprep.subr.mxu0 0.0
    %884 = vmatpush1.msra.mxu0 0.0
    %885 = vmatprep.subr.mxu0 0.0
    %886 = vmatpush1.msra.mxu0 0.0
    %887 = vmatprep.subr.mxu0 0.0
    %888 = vmatpush1.msra.mxu0 %v104
    %889 = vmatprep.subr.mxu0 0.0
    %890 = vmatpush1.msra.mxu0 %v103
    %891 = vmatprep.subr.mxu0 0.0
    %892 = vmatpush1.msra.mxu0 %v102
    %893 = vmatprep.subr.mxu0 0.0
    %894 = vmatpush1.msra.mxu0 %v101
    %895 = vmatprep.subr.mxu0 0.0
    %896 = vmatpush2.msra.mxu0 0.0
    %897 = vmatprep.subr.mxu0 0.0
    %898 = vmatpush2.msra.mxu0 0.0
    %899 = vmatprep.subr.mxu0 0.0
    %900 = vmatpush2.msra.mxu0 0.0
    %901 = vmatprep.subr.mxu0 0.0
    %902 = vmatpush2.msra.mxu0 0.0
    %903 = vmatprep.subr.mxu0 0.0
    %904 = vmatpush2.msra.mxu0 0.0
    %905 = vmatprep.subr.mxu0 0.0
    %906 = vmatpush2.msra.mxu0 0.0
    %907 = vmatprep.subr.mxu0 0.0
    %908 = vmatpush2.msra.mxu0 0.0
    %909 = vmatprep.subr.mxu0 0.0
    %910 = vmatpush2.msra.mxu0 0.0
    %911 = vmatprep.subr.mxu0 0.0
    %912 = vmatpush2.msra.mxu0 0.0
    %913 = vmatprep.subr.mxu0 0.0
    %914 = vmatpush2.msra.mxu0 0.0
    %915 = vmatprep.subr.mxu0 0.0
    %916 = vmatpush2.msra.mxu0 0.0
    %917 = vmatprep.subr.mxu0 0.0
    %918 = vmatpush2.msra.mxu0 0.0
    %919 = vmatprep.subr.mxu0 0.0
    %920 = vmatpush2.msra.mxu0 0.0
    %921 = vmatprep.subr.mxu0 0.0
    %922 = vmatpush2.msra.mxu0 0.0
    %923 = vmatprep.subr.mxu0 0.0
    %924 = vmatpush2.msra.mxu0 0.0
    %925 = vmatprep.subr.mxu0 0.0
    %926 = vmatpush2.msra.mxu0 0.0
    %927 = vmatprep.mubr.f32.mxu0 0.0
    %928 = vmatmul.mubr.f32.gmra.mxu0 %v861
    %v929 = vpop.f32.mrf.mxu0
    %v930 = vadd.f32 0.0, %v929
    %v931 = vpop.f32.mrf.mxu0
    %932 = vdwg.mxu0
    %v934 = vrot.slane %v930, 2
    %v936 = vadd.f32 %v193, %v934
    %v937 = vxor.u32 %v936, 2147483648
    %v938 = vmul.f32 %v937, 1.442695
    %v939 = vpow.pop %v938
    %v940 = vadd.f32 %v939, 1.0
    %v941 = vrcp.pop %v940
    %v942 = vmul.f32 1.0, %v941
    %v943 = vtanh.pop %v936
    %v945 = vrot.slane %v735, 6
    %v947 = vmul.f32 %v942, %v945
    %949 = vrot.lane.b32.xlu0 %v943, 32
    %v950 = vpop.permute.xlu0 %949
    %v952 = vmul.f32 %v942, %v950
    %954 = vrot.lane.b32.xlu0 %v952, 32
    %v955 = vpop.permute.xlu0 %954
    %v957 = vadd.f32 %v947, %v955
    %v958 = vtanh.pop %v957
    %960 = vrot.lane.b32.xlu0 %v958, 32
    %v961 = vpop.permute.xlu0 %960
    %v963 = vmul.f32 %v942, %v961
    %v964 = vrot.slane %v847, 2
    %965 = vrot.lane.b32.xlu0 %v964, 64
    %v966 = vpop.permute.xlu0 %965
    %v967 = vsel %vm119, %v966, 0
    %969 = vmatprep.subr.mxu0 0.0
    %970 = vmatpush1.msra.mxu0 0.0
    %971 = vmatprep.subr.mxu0 0.0
    %972 = vmatpush1.msra.mxu0 0.0
    %973 = vmatprep.subr.mxu0 0.0
    %974 = vmatpush1.msra.mxu0 0.0
    %975 = vmatprep.subr.mxu0 0.0
    %976 = vmatpush1.msra.mxu0 0.0
    %977 = vmatprep.subr.mxu0 0.0
    %978 = vmatpush1.msra.mxu0 0.0
    %979 = vmatprep.subr.mxu0 0.0
    %980 = vmatpush1.msra.mxu0 0.0
    %981 = vmatprep.subr.mxu0 0.0
    %982 = vmatpush1.msra.mxu0 0.0
    %983 = vmatprep.subr.mxu0 0.0
    %984 = vmatpush1.msra.mxu0 0.0
    %985 = vmatprep.subr.mxu0 0.0
    %986 = vmatpush1.msra.mxu0 0.0
    %987 = vmatprep.subr.mxu0 0.0
    %988 = vmatpush1.msra.mxu0 0.0
    %989 = vmatprep.subr.mxu0 0.0
    %990 = vmatpush1.msra.mxu0 0.0
    %991 = vmatprep.subr.mxu0 0.0
    %992 = vmatpush1.msra.mxu0 0.0
    %993 = vmatprep.subr.mxu0 0.0
    %994 = vmatpush1.msra.mxu0 %v206
    %995 = vmatprep.subr.mxu0 0.0
    %996 = vmatpush1.msra.mxu0 %v205
    %997 = vmatprep.subr.mxu0 0.0
    %998 = vmatpush1.msra.mxu0 %v204
    %999 = vmatprep.subr.mxu0 0.0
    %1000 = vmatpush1.msra.mxu0 %v203
    %1001 = vmatprep.subr.mxu0 0.0
    %1002 = vmatpush2.msra.mxu0 0.0
    %1003 = vmatprep.subr.mxu0 0.0
    %1004 = vmatpush2.msra.mxu0 0.0
    %1005 = vmatprep.subr.mxu0 0.0
    %1006 = vmatpush2.msra.mxu0 0.0
    %1007 = vmatprep.subr.mxu0 0.0
    %1008 = vmatpush2.msra.mxu0 0.0
    %1009 = vmatprep.subr.mxu0 0.0
    %1010 = vmatpush2.msra.mxu0 0.0
    %1011 = vmatprep.subr.mxu0 0.0
    %1012 = vmatpush2.msra.mxu0 0.0
    %1013 = vmatprep.subr.mxu0 0.0
    %1014 = vmatpush2.msra.mxu0 0.0
    %1015 = vmatprep.subr.mxu0 0.0
    %1016 = vmatpush2.msra.mxu0 0.0
    %1017 = vmatprep.subr.mxu0 0.0
    %1018 = vmatpush2.msra.mxu0 0.0
    %1019 = vmatprep.subr.mxu0 0.0
    %1020 = vmatpush2.msra.mxu0 0.0
    %1021 = vmatprep.subr.mxu0 0.0
    %1022 = vmatpush2.msra.mxu0 0.0
    %1023 = vmatprep.subr.mxu0 0.0
    %1024 = vmatpush2.msra.mxu0 0.0
    %1025 = vmatprep.subr.mxu0 0.0
    %1026 = vmatpush2.msra.mxu0 0.0
    %1027 = vmatprep.subr.mxu0 0.0
    %1028 = vmatpush2.msra.mxu0 0.0
    %1029 = vmatprep.subr.mxu0 0.0
    %1030 = vmatpush2.msra.mxu0 0.0
    %1031 = vmatprep.subr.mxu0 0.0
    %1032 = vmatpush2.msra.mxu0 0.0
    %1033 = vmatprep.mubr.f32.mxu0 0.0
    %1034 = vmatmul.mubr.f32.gmra.mxu0 %v967
    %v1035 = vpop.f32.mrf.mxu0
    %v1036 = vadd.f32 0.0, %v1035
    %v1037 = vpop.f32.mrf.mxu0
    %1038 = vdwg.mxu0
    %v1039 = vadd.f32 %v201, %v1036
    %v1040 = vxor.u32 %v1039, 2147483648
    %v1041 = vmul.f32 %v1040, 1.442695
    %v1042 = vpow.pop %v1041
    %v1043 = vadd.f32 %v1042, 1.0
    %v1044 = vrcp.pop %v1043
    %v1045 = vmul.f32 1.0, %v1044
    %v1046 = vtanh.pop %v1039
    %v1048 = vrot.slane %v841, 2
    %v1050 = vmul.f32 %v1045, %v1048
    %1052 = vrot.lane.b32.xlu0 %v1046, 32
    %v1053 = vpop.permute.xlu0 %1052
    %v1055 = vmul.f32 %v1045, %v1053
    %1057 = vrot.lane.b32.xlu0 %v1055, 32
    %v1058 = vpop.permute.xlu0 %1057
    %v1060 = vadd.f32 %v1050, %v1058
    %v1061 = vtanh.pop %v1060
    %1063 = vrot.lane.b32.xlu0 %v1061, 32
    %v1064 = vpop.permute.xlu0 %1063
    %v1066 = vmul.f32 %v1045, %v1064
    %1068 = vrot.lane.b32.xlu0 %v963, 64
    %v1069 = vpop.permute.xlu0 %1068
    %1071 = vst.msk [vmem:[#allocation2] sm:$0xc0] %vm413, %v1069
    %1073 = vrot.lane.b32.xlu0 %v1066, 64
    %v1074 = vpop.permute.xlu0 %1073
    %1076 = vst.msk [vmem:[#allocation3 + $0x8] sm:$0x3] %vm407, %v1074
    %v1077 = vrot.slane %v963, 6
    %1078 = vrot.lane.b32.xlu0 %v1077, 64
    %v1079 = vpop.permute.xlu0 %1078
    %v1080 = vsel %vm119, %v1079, 0
    %1082 = vmatprep.subr.mxu0 0.0
    %1083 = vmatpush1.msra.mxu0 0.0
    %1084 = vmatprep.subr.mxu0 0.0
    %1085 = vmatpush1.msra.mxu0 0.0
    %1086 = vmatprep.subr.mxu0 0.0
    %1087 = vmatpush1.msra.mxu0 0.0
    %1088 = vmatprep.subr.mxu0 0.0
    %1089 = vmatpush1.msra.mxu0 0.0
    %1090 = vmatprep.subr.mxu0 0.0
    %1091 = vmatpush1.msra.mxu0 0.0
    %1092 = vmatprep.subr.mxu0 0.0
    %1093 = vmatpush1.msra.mxu0 0.0
    %1094 = vmatprep.subr.mxu0 0.0
    %1095 = vmatpush1.msra.mxu0 0.0
    %1096 = vmatprep.subr.mxu0 0.0
    %1097 = vmatpush1.msra.mxu0 0.0
    %1098 = vmatprep.subr.mxu0 0.0
    %1099 = vmatpush1.msra.mxu0 0.0
    %1100 = vmatprep.subr.mxu0 0.0
    %1101 = vmatpush1.msra.mxu0 0.0
    %1102 = vmatprep.subr.mxu0 0.0
    %1103 = vmatpush1.msra.mxu0 0.0
    %1104 = vmatprep.subr.mxu0 0.0
    %1105 = vmatpush1.msra.mxu0 0.0
    %1106 = vmatprep.subr.mxu0 0.0
    %1107 = vmatpush1.msra.mxu0 %v104
    %1108 = vmatprep.subr.mxu0 0.0
    %1109 = vmatpush1.msra.mxu0 %v103
    %1110 = vmatprep.subr.mxu0 0.0
    %1111 = vmatpush1.msra.mxu0 %v102
    %1112 = vmatprep.subr.mxu0 0.0
    %1113 = vmatpush1.msra.mxu0 %v101
    %1114 = vmatprep.subr.mxu0 0.0
    %1115 = vmatpush2.msra.mxu0 0.0
    %1116 = vmatprep.subr.mxu0 0.0
    %1117 = vmatpush2.msra.mxu0 0.0
    %1118 = vmatprep.subr.mxu0 0.0
    %1119 = vmatpush2.msra.mxu0 0.0
    %1120 = vmatprep.subr.mxu0 0.0
    %1121 = vmatpush2.msra.mxu0 0.0
    %1122 = vmatprep.subr.mxu0 0.0
    %1123 = vmatpush2.msra.mxu0 0.0
    %1124 = vmatprep.subr.mxu0 0.0
    %1125 = vmatpush2.msra.mxu0 0.0
    %1126 = vmatprep.subr.mxu0 0.0
    %1127 = vmatpush2.msra.mxu0 0.0
    %1128 = vmatprep.subr.mxu0 0.0
    %1129 = vmatpush2.msra.mxu0 0.0
    %1130 = vmatprep.subr.mxu0 0.0
    %1131 = vmatpush2.msra.mxu0 0.0
    %1132 = vmatprep.subr.mxu0 0.0
    %1133 = vmatpush2.msra.mxu0 0.0
    %1134 = vmatprep.subr.mxu0 0.0
    %1135 = vmatpush2.msra.mxu0 0.0
    %1136 = vmatprep.subr.mxu0 0.0
    %1137 = vmatpush2.msra.mxu0 0.0
    %1138 = vmatprep.subr.mxu0 0.0
    %1139 = vmatpush2.msra.mxu0 0.0
    %1140 = vmatprep.subr.mxu0 0.0
    %1141 = vmatpush2.msra.mxu0 0.0
    %1142 = vmatprep.subr.mxu0 0.0
    %1143 = vmatpush2.msra.mxu0 0.0
    %1144 = vmatprep.subr.mxu0 0.0
    %1145 = vmatpush2.msra.mxu0 0.0
    %1146 = vmatprep.mubr.f32.mxu0 0.0
    %1147 = vmatmul.mubr.f32.gmra.mxu0 %v1080
    %v1148 = vpop.f32.mrf.mxu0
    %v1149 = vadd.f32 0.0, %v1148
    %v1150 = vpop.f32.mrf.mxu0
    %1151 = vdwg.mxu0
    %v1152 = vadd.f32 %v199, %v1149
    %v1153 = vxor.u32 %v1152, 2147483648
    %v1154 = vmul.f32 %v1153, 1.442695
    %v1155 = vpow.pop %v1154
    %v1156 = vadd.f32 %v1155, 1.0
    %v1157 = vrcp.pop %v1156
    %v1158 = vmul.f32 1.0, %v1157
    %v1159 = vtanh.pop %v1152
    %v1161 = vrot.slane %v957, 6
    %v1163 = vmul.f32 %v1158, %v1161
    %1165 = vrot.lane.b32.xlu0 %v1159, 32
    %v1166 = vpop.permute.xlu0 %1165
    %v1168 = vmul.f32 %v1158, %v1166
    %1170 = vrot.lane.b32.xlu0 %v1168, 32
    %v1171 = vpop.permute.xlu0 %1170
    %v1173 = vadd.f32 %v1163, %v1171
    %v1174 = vtanh.pop %v1173
    %1176 = vrot.lane.b32.xlu0 %v1174, 32
    %v1177 = vpop.permute.xlu0 %1176
    %v1179 = vmul.f32 %v1158, %v1177
    %v1180 = vsel %vm119, %v1074, 0
    %1182 = vmatprep.subr.mxu0 0.0
    %1183 = vmatpush1.msra.mxu0 0.0
    %1184 = vmatprep.subr.mxu0 0.0
    %1185 = vmatpush1.msra.mxu0 0.0
    %1186 = vmatprep.subr.mxu0 0.0
    %1187 = vmatpush1.msra.mxu0 0.0
    %1188 = vmatprep.subr.mxu0 0.0
    %1189 = vmatpush1.msra.mxu0 0.0
    %1190 = vmatprep.subr.mxu0 0.0
    %1191 = vmatpush1.msra.mxu0 0.0
    %1192 = vmatprep.subr.mxu0 0.0
    %1193 = vmatpush1.msra.mxu0 0.0
    %1194 = vmatprep.subr.mxu0 0.0
    %1195 = vmatpush1.msra.mxu0 0.0
    %1196 = vmatprep.subr.mxu0 0.0
    %1197 = vmatpush1.msra.mxu0 0.0
    %1198 = vmatprep.subr.mxu0 0.0
    %1199 = vmatpush1.msra.mxu0 0.0
    %1200 = vmatprep.subr.mxu0 0.0
    %1201 = vmatpush1.msra.mxu0 0.0
    %1202 = vmatprep.subr.mxu0 0.0
    %1203 = vmatpush1.msra.mxu0 0.0
    %1204 = vmatprep.subr.mxu0 0.0
    %1205 = vmatpush1.msra.mxu0 0.0
    %1206 = vmatprep.subr.mxu0 0.0
    %1207 = vmatpush1.msra.mxu0 %v206
    %1208 = vmatprep.subr.mxu0 0.0
    %1209 = vmatpush1.msra.mxu0 %v205
    %1210 = vmatprep.subr.mxu0 0.0
    %1211 = vmatpush1.msra.mxu0 %v204
    %1212 = vmatprep.subr.mxu0 0.0
    %1213 = vmatpush1.msra.mxu0 %v203
    %1214 = vmatprep.subr.mxu0 0.0
    %1215 = vmatpush2.msra.mxu0 0.0
    %1216 = vmatprep.subr.mxu0 0.0
    %1217 = vmatpush2.msra.mxu0 0.0
    %1218 = vmatprep.subr.mxu0 0.0
    %1219 = vmatpush2.msra.mxu0 0.0
    %1220 = vmatprep.subr.mxu0 0.0
    %1221 = vmatpush2.msra.mxu0 0.0
    %1222 = vmatprep.subr.mxu0 0.0
    %1223 = vmatpush2.msra.mxu0 0.0
    %1224 = vmatprep.subr.mxu0 0.0
    %1225 = vmatpush2.msra.mxu0 0.0
    %1226 = vmatprep.subr.mxu0 0.0
    %1227 = vmatpush2.msra.mxu0 0.0
    %1228 = vmatprep.subr.mxu0 0.0
    %1229 = vmatpush2.msra.mxu0 0.0
    %1230 = vmatprep.subr.mxu0 0.0
    %1231 = vmatpush2.msra.mxu0 0.0
    %1232 = vmatprep.subr.mxu0 0.0
    %1233 = vmatpush2.msra.mxu0 0.0
    %1234 = vmatprep.subr.mxu0 0.0
    %1235 = vmatpush2.msra.mxu0 0.0
    %1236 = vmatprep.subr.mxu0 0.0
    %1237 = vmatpush2.msra.mxu0 0.0
    %1238 = vmatprep.subr.mxu0 0.0
    %1239 = vmatpush2.msra.mxu0 0.0
    %1240 = vmatprep.subr.mxu0 0.0
    %1241 = vmatpush2.msra.mxu0 0.0
    %1242 = vmatprep.subr.mxu0 0.0
    %1243 = vmatpush2.msra.mxu0 0.0
    %1244 = vmatprep.subr.mxu0 0.0
    %1245 = vmatpush2.msra.mxu0 0.0
    %1246 = vmatprep.mubr.f32.mxu0 0.0
    %1247 = vmatmul.mubr.f32.gmra.mxu0 %v1180
    %v1248 = vpop.f32.mrf.mxu0
    %v1249 = vadd.f32 0.0, %v1248
    %v1250 = vpop.f32.mrf.mxu0
    %1251 = vdwg.mxu0
    %v1253 = vrot.slane %v1249, 2
    %v1255 = vadd.f32 %v195, %v1253
    %v1256 = vxor.u32 %v1255, 2147483648
    %v1257 = vmul.f32 %v1256, 1.442695
    %v1258 = vpow.pop %v1257
    %v1259 = vadd.f32 %v1258, 1.0
    %v1260 = vrcp.pop %v1259
    %v1261 = vmul.f32 1.0, %v1260
    %v1262 = vtanh.pop %v1255
    %v1264 = vrot.slane %v1060, 2
    %v1266 = vmul.f32 %v1261, %v1264
    %1268 = vrot.lane.b32.xlu0 %v1262, 32
    %v1269 = vpop.permute.xlu0 %1268
    %v1271 = vmul.f32 %v1261, %v1269
    %1273 = vrot.lane.b32.xlu0 %v1271, 32
    %v1274 = vpop.permute.xlu0 %1273
    %v1276 = vadd.f32 %v1266, %v1274
    %v1277 = vtanh.pop %v1276
    %1279 = vrot.lane.b32.xlu0 %v1277, 32
    %v1280 = vpop.permute.xlu0 %1279
    %v1282 = vmul.f32 %v1261, %v1280
    %1284 = vrot.lane.b32.xlu0 %v1179, 64
    %v1285 = vpop.permute.xlu0 %1284
    %1287 = vst.msk [vmem:[#allocation2 + $0x8] sm:$0x3] %vm407, %v1285
    %1289 = vrot.lane.b32.xlu0 %v1282, 64
    %v1290 = vpop.permute.xlu0 %1289
    %1292 = vst.msk [vmem:[#allocation3] sm:$0xc0] %vm413, %v1290
    %v1293 = vsel %vm119, %v1285, 0
    %1295 = vmatprep.subr.mxu0 0.0
    %1296 = vmatpush1.msra.mxu0 0.0
    %1297 = vmatprep.subr.mxu0 0.0
    %1298 = vmatpush1.msra.mxu0 0.0
    %1299 = vmatprep.subr.mxu0 0.0
    %1300 = vmatpush1.msra.mxu0 0.0
    %1301 = vmatprep.subr.mxu0 0.0
    %1302 = vmatpush1.msra.mxu0 0.0
    %1303 = vmatprep.subr.mxu0 0.0
    %1304 = vmatpush1.msra.mxu0 0.0
    %1305 = vmatprep.subr.mxu0 0.0
    %1306 = vmatpush1.msra.mxu0 0.0
    %1307 = vmatprep.subr.mxu0 0.0
    %1308 = vmatpush1.msra.mxu0 0.0
    %1309 = vmatprep.subr.mxu0 0.0
    %1310 = vmatpush1.msra.mxu0 0.0
    %1311 = vmatprep.subr.mxu0 0.0
    %1312 = vmatpush1.msra.mxu0 0.0
    %1313 = vmatprep.subr.mxu0 0.0
    %1314 = vmatpush1.msra.mxu0 0.0
    %1315 = vmatprep.subr.mxu0 0.0
    %1316 = vmatpush1.msra.mxu0 0.0
    %1317 = vmatprep.subr.mxu0 0.0
    %1318 = vmatpush1.msra.mxu0 0.0
    %1319 = vmatprep.subr.mxu0 0.0
    %1320 = vmatpush1.msra.mxu0 %v104
    %1321 = vmatprep.subr.mxu0 0.0
    %1322 = vmatpush1.msra.mxu0 %v103
    %1323 = vmatprep.subr.mxu0 0.0
    %1324 = vmatpush1.msra.mxu0 %v102
    %1325 = vmatprep.subr.mxu0 0.0
    %1326 = vmatpush1.msra.mxu0 %v101
    %1327 = vmatprep.subr.mxu0 0.0
    %1328 = vmatpush2.msra.mxu0 0.0
    %1329 = vmatprep.subr.mxu0 0.0
    %1330 = vmatpush2.msra.mxu0 0.0
    %1331 = vmatprep.subr.mxu0 0.0
    %1332 = vmatpush2.msra.mxu0 0.0
    %1333 = vmatprep.subr.mxu0 0.0
    %1334 = vmatpush2.msra.mxu0 0.0
    %1335 = vmatprep.subr.mxu0 0.0
    %1336 = vmatpush2.msra.mxu0 0.0
    %1337 = vmatprep.subr.mxu0 0.0
    %1338 = vmatpush2.msra.mxu0 0.0
    %1339 = vmatprep.subr.mxu0 0.0
    %1340 = vmatpush2.msra.mxu0 0.0
    %1341 = vmatprep.subr.mxu0 0.0
    %1342 = vmatpush2.msra.mxu0 0.0
    %1343 = vmatprep.subr.mxu0 0.0
    %1344 = vmatpush2.msra.mxu0 0.0
    %1345 = vmatprep.subr.mxu0 0.0
    %1346 = vmatpush2.msra.mxu0 0.0
    %1347 = vmatprep.subr.mxu0 0.0
    %1348 = vmatpush2.msra.mxu0 0.0
    %1349 = vmatprep.subr.mxu0 0.0
    %1350 = vmatpush2.msra.mxu0 0.0
    %1351 = vmatprep.subr.mxu0 0.0
    %1352 = vmatpush2.msra.mxu0 0.0
    %1353 = vmatprep.subr.mxu0 0.0
    %1354 = vmatpush2.msra.mxu0 0.0
    %1355 = vmatprep.subr.mxu0 0.0
    %1356 = vmatpush2.msra.mxu0 0.0
    %1357 = vmatprep.subr.mxu0 0.0
    %1358 = vmatpush2.msra.mxu0 0.0
    %1359 = vmatprep.mubr.f32.mxu0 0.0
    %1360 = vmatmul.mubr.f32.gmra.mxu0 %v1293
    %v1361 = vpop.f32.mrf.mxu0
    %v1362 = vadd.f32 0.0, %v1361
    %v1363 = vpop.f32.mrf.mxu0
    %1364 = vdwg.mxu0
    %v1366 = vrot.slane %v1362, 6
    %v1368 = vadd.f32 %v199, %v1366
    %v1369 = vxor.u32 %v1368, 2147483648
    %v1370 = vmul.f32 %v1369, 1.442695
    %v1371 = vpow.pop %v1370
    %v1372 = vadd.f32 %v1371, 1.0
    %v1373 = vrcp.pop %v1372
    %v1374 = vmul.f32 1.0, %v1373
    %v1375 = vtanh.pop %v1368
    %v1377 = vrot.slane %v1173, 6
    %v1379 = vmul.f32 %v1374, %v1377
    %1381 = vrot.lane.b32.xlu0 %v1375, 32
    %v1382 = vpop.permute.xlu0 %1381
    %v1384 = vmul.f32 %v1374, %v1382
    %1386 = vrot.lane.b32.xlu0 %v1384, 32
    %v1387 = vpop.permute.xlu0 %1386
    %v1389 = vadd.f32 %v1379, %v1387
    %v1390 = vtanh.pop %v1389
    %1392 = vrot.lane.b32.xlu0 %v1390, 32
    %v1393 = vpop.permute.xlu0 %1392
    %v1395 = vmul.f32 %v1374, %v1393
    %v1396 = vrot.slane %v1282, 6
    %1397 = vrot.lane.b32.xlu0 %v1396, 64
    %v1398 = vpop.permute.xlu0 %1397
    %v1399 = vsel %vm119, %v1398, 0
    %1401 = vmatprep.subr.mxu0 0.0
    %1402 = vmatpush1.msra.mxu0 0.0
    %1403 = vmatprep.subr.mxu0 0.0
    %1404 = vmatpush1.msra.mxu0 0.0
    %1405 = vmatprep.subr.mxu0 0.0
    %1406 = vmatpush1.msra.mxu0 0.0
    %1407 = vmatprep.subr.mxu0 0.0
    %1408 = vmatpush1.msra.mxu0 0.0
    %1409 = vmatprep.subr.mxu0 0.0
    %1410 = vmatpush1.msra.mxu0 0.0
    %1411 = vmatprep.subr.mxu0 0.0
    %1412 = vmatpush1.msra.mxu0 0.0
    %1413 = vmatprep.subr.mxu0 0.0
    %1414 = vmatpush1.msra.mxu0 0.0
    %1415 = vmatprep.subr.mxu0 0.0
    %1416 = vmatpush1.msra.mxu0 0.0
    %1417 = vmatprep.subr.mxu0 0.0
    %1418 = vmatpush1.msra.mxu0 0.0
    %1419 = vmatprep.subr.mxu0 0.0
    %1420 = vmatpush1.msra.mxu0 0.0
    %1421 = vmatprep.subr.mxu0 0.0
    %1422 = vmatpush1.msra.mxu0 0.0
    %1423 = vmatprep.subr.mxu0 0.0
    %1424 = vmatpush1.msra.mxu0 0.0
    %1425 = vmatprep.subr.mxu0 0.0
    %1426 = vmatpush1.msra.mxu0 %v206
    %1427 = vmatprep.subr.mxu0 0.0
    %1428 = vmatpush1.msra.mxu0 %v205
    %1429 = vmatprep.subr.mxu0 0.0
    %1430 = vmatpush1.msra.mxu0 %v204
    %1431 = vmatprep.subr.mxu0 0.0
    %1432 = vmatpush1.msra.mxu0 %v203
    %1433 = vmatprep.subr.mxu0 0.0
    %1434 = vmatpush2.msra.mxu0 0.0
    %1435 = vmatprep.subr.mxu0 0.0
    %1436 = vmatpush2.msra.mxu0 0.0
    %1437 = vmatprep.subr.mxu0 0.0
    %1438 = vmatpush2.msra.mxu0 0.0
    %1439 = vmatprep.subr.mxu0 0.0
    %1440 = vmatpush2.msra.mxu0 0.0
    %1441 = vmatprep.subr.mxu0 0.0
    %1442 = vmatpush2.msra.mxu0 0.0
    %1443 = vmatprep.subr.mxu0 0.0
    %1444 = vmatpush2.msra.mxu0 0.0
    %1445 = vmatprep.subr.mxu0 0.0
    %1446 = vmatpush2.msra.mxu0 0.0
    %1447 = vmatprep.subr.mxu0 0.0
    %1448 = vmatpush2.msra.mxu0 0.0
    %1449 = vmatprep.subr.mxu0 0.0
    %1450 = vmatpush2.msra.mxu0 0.0
    %1451 = vmatprep.subr.mxu0 0.0
    %1452 = vmatpush2.msra.mxu0 0.0
    %1453 = vmatprep.subr.mxu0 0.0
    %1454 = vmatpush2.msra.mxu0 0.0
    %1455 = vmatprep.subr.mxu0 0.0
    %1456 = vmatpush2.msra.mxu0 0.0
    %1457 = vmatprep.subr.mxu0 0.0
    %1458 = vmatpush2.msra.mxu0 0.0
    %1459 = vmatprep.subr.mxu0 0.0
    %1460 = vmatpush2.msra.mxu0 0.0
    %1461 = vmatprep.subr.mxu0 0.0
    %1462 = vmatpush2.msra.mxu0 0.0
    %1463 = vmatprep.subr.mxu0 0.0
    %1464 = vmatpush2.msra.mxu0 0.0
    %1465 = vmatprep.mubr.f32.mxu0 0.0
    %1466 = vmatmul.mubr.f32.gmra.mxu0 %v1399
    %v1467 = vpop.f32.mrf.mxu0
    %v1468 = vadd.f32 0.0, %v1467
    %v1469 = vpop.f32.mrf.mxu0
    %1470 = vdwg.mxu0
    %v1472 = vrot.slane %v1468, 4
    %v1474 = vadd.f32 %v195, %v1472
    %v1475 = vxor.u32 %v1474, 2147483648
    %v1476 = vmul.f32 %v1475, 1.442695
    %v1477 = vpow.pop %v1476
    %v1478 = vadd.f32 %v1477, 1.0
    %v1479 = vrcp.pop %v1478
    %v1480 = vmul.f32 1.0, %v1479
    %v1481 = vtanh.pop %v1474
    %v1483 = vrot.slane %v1276, 2
    %v1485 = vmul.f32 %v1480, %v1483
    %1487 = vrot.lane.b32.xlu0 %v1481, 32
    %v1488 = vpop.permute.xlu0 %1487
    %v1490 = vmul.f32 %v1480, %v1488
    %1492 = vrot.lane.b32.xlu0 %v1490, 32
    %v1493 = vpop.permute.xlu0 %1492
    %v1495 = vadd.f32 %v1485, %v1493
    %v1496 = vtanh.pop %v1495
    %1498 = vrot.lane.b32.xlu0 %v1496, 32
    %v1499 = vpop.permute.xlu0 %1498
    %v1501 = vmul.f32 %v1480, %v1499
    %1503 = vrot.lane.b32.xlu0 %v1395, 64
    %v1504 = vpop.permute.xlu0 %1503
    %1506 = vst.msk [vmem:[#allocation2 + $0x8] sm:$0xc] %vm628, %v1504
    %1508 = vrot.lane.b32.xlu0 %v1501, 64
    %v1509 = vpop.permute.xlu0 %1508
    %1511 = vst.msk [vmem:[#allocation3] sm:$0x30] %vm634, %v1509
    %v1512 = vrot.slane %v1395, 2
    %1513 = vrot.lane.b32.xlu0 %v1512, 64
    %v1514 = vpop.permute.xlu0 %1513
    %v1515 = vsel %vm119, %v1514, 0
    %1517 = vmatprep.subr.mxu0 0.0
    %1518 = vmatpush1.msra.mxu0 0.0
    %1519 = vmatprep.subr.mxu0 0.0
    %1520 = vmatpush1.msra.mxu0 0.0
    %1521 = vmatprep.subr.mxu0 0.0
    %1522 = vmatpush1.msra.mxu0 0.0
    %1523 = vmatprep.subr.mxu0 0.0
    %1524 = vmatpush1.msra.mxu0 0.0
    %1525 = vmatprep.subr.mxu0 0.0
    %1526 = vmatpush1.msra.mxu0 0.0
    %1527 = vmatprep.subr.mxu0 0.0
    %1528 = vmatpush1.msra.mxu0 0.0
    %1529 = vmatprep.subr.mxu0 0.0
    %1530 = vmatpush1.msra.mxu0 0.0
    %1531 = vmatprep.subr.mxu0 0.0
    %1532 = vmatpush1.msra.mxu0 0.0
    %1533 = vmatprep.subr.mxu0 0.0
    %1534 = vmatpush1.msra.mxu0 0.0
    %1535 = vmatprep.subr.mxu0 0.0
    %1536 = vmatpush1.msra.mxu0 0.0
    %1537 = vmatprep.subr.mxu0 0.0
    %1538 = vmatpush1.msra.mxu0 0.0
    %1539 = vmatprep.subr.mxu0 0.0
    %1540 = vmatpush1.msra.mxu0 0.0
    %1541 = vmatprep.subr.mxu0 0.0
    %1542 = vmatpush1.msra.mxu0 %v104
    %1543 = vmatprep.subr.mxu0 0.0
    %1544 = vmatpush1.msra.mxu0 %v103
    %1545 = vmatprep.subr.mxu0 0.0
    %1546 = vmatpush1.msra.mxu0 %v102
    %1547 = vmatprep.subr.mxu0 0.0
    %1548 = vmatpush1.msra.mxu0 %v101
    %1549 = vmatprep.subr.mxu0 0.0
    %1550 = vmatpush2.msra.mxu0 0.0
    %1551 = vmatprep.subr.mxu0 0.0
    %1552 = vmatpush2.msra.mxu0 0.0
    %1553 = vmatprep.subr.mxu0 0.0
    %1554 = vmatpush2.msra.mxu0 0.0
    %1555 = vmatprep.subr.mxu0 0.0
    %1556 = vmatpush2.msra.mxu0 0.0
    %1557 = vmatprep.subr.mxu0 0.0
    %1558 = vmatpush2.msra.mxu0 0.0
    %1559 = vmatprep.subr.mxu0 0.0
    %1560 = vmatpush2.msra.mxu0 0.0
    %1561 = vmatprep.subr.mxu0 0.0
    %1562 = vmatpush2.msra.mxu0 0.0
    %1563 = vmatprep.subr.mxu0 0.0
    %1564 = vmatpush2.msra.mxu0 0.0
    %1565 = vmatprep.subr.mxu0 0.0
    %1566 = vmatpush2.msra.mxu0 0.0
    %1567 = vmatprep.subr.mxu0 0.0
    %1568 = vmatpush2.msra.mxu0 0.0
    %1569 = vmatprep.subr.mxu0 0.0
    %1570 = vmatpush2.msra.mxu0 0.0
    %1571 = vmatprep.subr.mxu0 0.0
    %1572 = vmatpush2.msra.mxu0 0.0
    %1573 = vmatprep.subr.mxu0 0.0
    %1574 = vmatpush2.msra.mxu0 0.0
    %1575 = vmatprep.subr.mxu0 0.0
    %1576 = vmatpush2.msra.mxu0 0.0
    %1577 = vmatprep.subr.mxu0 0.0
    %1578 = vmatpush2.msra.mxu0 0.0
    %1579 = vmatprep.subr.mxu0 0.0
    %1580 = vmatpush2.msra.mxu0 0.0
    %1581 = vmatprep.mubr.f32.mxu0 0.0
    %1582 = vmatmul.mubr.f32.gmra.mxu0 %v1515
    %v1583 = vpop.f32.mrf.mxu0
    %v1584 = vadd.f32 0.0, %v1583
    %v1585 = vpop.f32.mrf.mxu0
    %1586 = vdwg.mxu0
    %v1588 = vrot.slane %v1584, 4
    %v1590 = vadd.f32 %v199, %v1588
    %v1591 = vxor.u32 %v1590, 2147483648
    %v1592 = vmul.f32 %v1591, 1.442695
    %v1593 = vpow.pop %v1592
    %v1594 = vadd.f32 %v1593, 1.0
    %v1595 = vrcp.pop %v1594
    %v1596 = vmul.f32 1.0, %v1595
    %v1597 = vtanh.pop %v1590
    %v1599 = vrot.slane %v1389, 6
    %v1601 = vmul.f32 %v1596, %v1599
    %1603 = vrot.lane.b32.xlu0 %v1597, 32
    %v1604 = vpop.permute.xlu0 %1603
    %v1606 = vmul.f32 %v1596, %v1604
    %1608 = vrot.lane.b32.xlu0 %v1606, 32
    %v1609 = vpop.permute.xlu0 %1608
    %v1611 = vadd.f32 %v1601, %v1609
    %v1612 = vtanh.pop %v1611
    %1614 = vrot.lane.b32.xlu0 %v1612, 32
    %v1615 = vpop.permute.xlu0 %1614
    %v1617 = vmul.f32 %v1596, %v1615
    %v1618 = vrot.slane %v1501, 4
    %1619 = vrot.lane.b32.xlu0 %v1618, 64
    %v1620 = vpop.permute.xlu0 %1619
    %v1621 = vsel %vm119, %v1620, 0
    %1623 = vmatprep.subr.mxu0 0.0
    %1624 = vmatpush1.msra.mxu0 0.0
    %1625 = vmatprep.subr.mxu0 0.0
    %1626 = vmatpush1.msra.mxu0 0.0
    %1627 = vmatprep.subr.mxu0 0.0
    %1628 = vmatpush1.msra.mxu0 0.0
    %1629 = vmatprep.subr.mxu0 0.0
    %1630 = vmatpush1.msra.mxu0 0.0
    %1631 = vmatprep.subr.mxu0 0.0
    %1632 = vmatpush1.msra.mxu0 0.0
    %1633 = vmatprep.subr.mxu0 0.0
    %1634 = vmatpush1.msra.mxu0 0.0
    %1635 = vmatprep.subr.mxu0 0.0
    %1636 = vmatpush1.msra.mxu0 0.0
    %1637 = vmatprep.subr.mxu0 0.0
    %1638 = vmatpush1.msra.mxu0 0.0
    %1639 = vmatprep.subr.mxu0 0.0
    %1640 = vmatpush1.msra.mxu0 0.0
    %1641 = vmatprep.subr.mxu0 0.0
    %1642 = vmatpush1.msra.mxu0 0.0
    %1643 = vmatprep.subr.mxu0 0.0
    %1644 = vmatpush1.msra.mxu0 0.0
    %1645 = vmatprep.subr.mxu0 0.0
    %1646 = vmatpush1.msra.mxu0 0.0
    %1647 = vmatprep.subr.mxu0 0.0
    %1648 = vmatpush1.msra.mxu0 %v206
    %1649 = vmatprep.subr.mxu0 0.0
    %1650 = vmatpush1.msra.mxu0 %v205
    %1651 = vmatprep.subr.mxu0 0.0
    %1652 = vmatpush1.msra.mxu0 %v204
    %1653 = vmatprep.subr.mxu0 0.0
    %1654 = vmatpush1.msra.mxu0 %v203
    %1655 = vmatprep.subr.mxu0 0.0
    %1656 = vmatpush2.msra.mxu0 0.0
    %1657 = vmatprep.subr.mxu0 0.0
    %1658 = vmatpush2.msra.mxu0 0.0
    %1659 = vmatprep.subr.mxu0 0.0
    %1660 = vmatpush2.msra.mxu0 0.0
    %1661 = vmatprep.subr.mxu0 0.0
    %1662 = vmatpush2.msra.mxu0 0.0
    %1663 = vmatprep.subr.mxu0 0.0
    %1664 = vmatpush2.msra.mxu0 0.0
    %1665 = vmatprep.subr.mxu0 0.0
    %1666 = vmatpush2.msra.mxu0 0.0
    %1667 = vmatprep.subr.mxu0 0.0
    %1668 = vmatpush2.msra.mxu0 0.0
    %1669 = vmatprep.subr.mxu0 0.0
    %1670 = vmatpush2.msra.mxu0 0.0
    %1671 = vmatprep.subr.mxu0 0.0
    %1672 = vmatpush2.msra.mxu0 0.0
    %1673 = vmatprep.subr.mxu0 0.0
    %1674 = vmatpush2.msra.mxu0 0.0
    %1675 = vmatprep.subr.mxu0 0.0
    %1676 = vmatpush2.msra.mxu0 0.0
    %1677 = vmatprep.subr.mxu0 0.0
    %1678 = vmatpush2.msra.mxu0 0.0
    %1679 = vmatprep.subr.mxu0 0.0
    %1680 = vmatpush2.msra.mxu0 0.0
    %1681 = vmatprep.subr.mxu0 0.0
    %1682 = vmatpush2.msra.mxu0 0.0
    %1683 = vmatprep.subr.mxu0 0.0
    %1684 = vmatpush2.msra.mxu0 0.0
    %1685 = vmatprep.subr.mxu0 0.0
    %1686 = vmatpush2.msra.mxu0 0.0
    %1687 = vmatprep.mubr.f32.mxu0 0.0
    %1688 = vmatmul.mubr.f32.gmra.mxu0 %v1621
    %v1689 = vpop.f32.mrf.mxu0
    %v1690 = vadd.f32 0.0, %v1689
    %v1691 = vpop.f32.mrf.mxu0
    %1692 = vdwg.mxu0
    %v1694 = vrot.slane %v1690, 6
    %v1696 = vadd.f32 %v195, %v1694
    %v1697 = vxor.u32 %v1696, 2147483648
    %v1698 = vmul.f32 %v1697, 1.442695
    %v1699 = vpow.pop %v1698
    %v1700 = vadd.f32 %v1699, 1.0
    %v1701 = vrcp.pop %v1700
    %v1702 = vmul.f32 1.0, %v1701
    %v1703 = vtanh.pop %v1696
    %v1705 = vrot.slane %v1495, 2
    %v1707 = vmul.f32 %v1702, %v1705
    %1709 = vrot.lane.b32.xlu0 %v1703, 32
    %v1710 = vpop.permute.xlu0 %1709
    %v1712 = vmul.f32 %v1702, %v1710
    %1714 = vrot.lane.b32.xlu0 %v1712, 32
    %v1715 = vpop.permute.xlu0 %1714
    %v1717 = vadd.f32 %v1707, %v1715
    %v1718 = vtanh.pop %v1717
    %1720 = vrot.lane.b32.xlu0 %v1718, 32
    %v1721 = vpop.permute.xlu0 %1720
    %v1723 = vmul.f32 %v1702, %v1721
    %1725 = vrot.lane.b32.xlu0 %v1617, 64
    %v1726 = vpop.permute.xlu0 %1725
    %1728 = vst.msk [vmem:[#allocation2 + $0x8] sm:$0x30] %vm634, %v1726
    %1730 = vrot.lane.b32.xlu0 %v1723, 64
    %v1731 = vpop.permute.xlu0 %1730
    %1733 = vst.msk [vmem:[#allocation3] sm:$0xc] %vm628, %v1731
    %v1734 = vrot.slane %v1617, 4
    %1735 = vrot.lane.b32.xlu0 %v1734, 64
    %v1736 = vpop.permute.xlu0 %1735
    %v1737 = vsel %vm119, %v1736, 0
    %1739 = vmatprep.subr.mxu0 0.0
    %1740 = vmatpush1.msra.mxu0 0.0
    %1741 = vmatprep.subr.mxu0 0.0
    %1742 = vmatpush1.msra.mxu0 0.0
    %1743 = vmatprep.subr.mxu0 0.0
    %1744 = vmatpush1.msra.mxu0 0.0
    %1745 = vmatprep.subr.mxu0 0.0
    %1746 = vmatpush1.msra.mxu0 0.0
    %1747 = vmatprep.subr.mxu0 0.0
    %1748 = vmatpush1.msra.mxu0 0.0
    %1749 = vmatprep.subr.mxu0 0.0
    %1750 = vmatpush1.msra.mxu0 0.0
    %1751 = vmatprep.subr.mxu0 0.0
    %1752 = vmatpush1.msra.mxu0 0.0
    %1753 = vmatprep.subr.mxu0 0.0
    %1754 = vmatpush1.msra.mxu0 0.0
    %1755 = vmatprep.subr.mxu0 0.0
    %1756 = vmatpush1.msra.mxu0 0.0
    %1757 = vmatprep.subr.mxu0 0.0
    %1758 = vmatpush1.msra.mxu0 0.0
    %1759 = vmatprep.subr.mxu0 0.0
    %1760 = vmatpush1.msra.mxu0 0.0
    %1761 = vmatprep.subr.mxu0 0.0
    %1762 = vmatpush1.msra.mxu0 0.0
    %1763 = vmatprep.subr.mxu0 0.0
    %1764 = vmatpush1.msra.mxu0 %v104
    %1765 = vmatprep.subr.mxu0 0.0
    %1766 = vmatpush1.msra.mxu0 %v103
    %1767 = vmatprep.subr.mxu0 0.0
    %1768 = vmatpush1.msra.mxu0 %v102
    %1769 = vmatprep.subr.mxu0 0.0
    %1770 = vmatpush1.msra.mxu0 %v101
    %1771 = vmatprep.subr.mxu0 0.0
    %1772 = vmatpush2.msra.mxu0 0.0
    %1773 = vmatprep.subr.mxu0 0.0
    %1774 = vmatpush2.msra.mxu0 0.0
    %1775 = vmatprep.subr.mxu0 0.0
    %1776 = vmatpush2.msra.mxu0 0.0
    %1777 = vmatprep.subr.mxu0 0.0
    %1778 = vmatpush2.msra.mxu0 0.0
    %1779 = vmatprep.subr.mxu0 0.0
    %1780 = vmatpush2.msra.mxu0 0.0
    %1781 = vmatprep.subr.mxu0 0.0
    %1782 = vmatpush2.msra.mxu0 0.0
    %1783 = vmatprep.subr.mxu0 0.0
    %1784 = vmatpush2.msra.mxu0 0.0
    %1785 = vmatprep.subr.mxu0 0.0
    %1786 = vmatpush2.msra.mxu0 0.0
    %1787 = vmatprep.subr.mxu0 0.0
    %1788 = vmatpush2.msra.mxu0 0.0
    %1789 = vmatprep.subr.mxu0 0.0
    %1790 = vmatpush2.msra.mxu0 0.0
    %1791 = vmatprep.subr.mxu0 0.0
    %1792 = vmatpush2.msra.mxu0 0.0
    %1793 = vmatprep.subr.mxu0 0.0
    %1794 = vmatpush2.msra.mxu0 0.0
    %1795 = vmatprep.subr.mxu0 0.0
    %1796 = vmatpush2.msra.mxu0 0.0
    %1797 = vmatprep.subr.mxu0 0.0
    %1798 = vmatpush2.msra.mxu0 0.0
    %1799 = vmatprep.subr.mxu0 0.0
    %1800 = vmatpush2.msra.mxu0 0.0
    %1801 = vmatprep.subr.mxu0 0.0
    %1802 = vmatpush2.msra.mxu0 0.0
    %1803 = vmatprep.mubr.f32.mxu0 0.0
    %1804 = vmatmul.mubr.f32.gmra.mxu0 %v1737
    %v1805 = vpop.f32.mrf.mxu0
    %v1806 = vadd.f32 0.0, %v1805
    %v1807 = vpop.f32.mrf.mxu0
    %1808 = vdwg.mxu0
    %v1810 = vrot.slane %v1806, 2
    %v1812 = vadd.f32 %v199, %v1810
    %v1813 = vxor.u32 %v1812, 2147483648
    %v1814 = vmul.f32 %v1813, 1.442695
    %v1815 = vpow.pop %v1814
    %v1816 = vadd.f32 %v1815, 1.0
    %v1817 = vrcp.pop %v1816
    %v1818 = vmul.f32 1.0, %v1817
    %v1819 = vtanh.pop %v1812
    %v1821 = vrot.slane %v1611, 6
    %v1823 = vmul.f32 %v1818, %v1821
    %1825 = vrot.lane.b32.xlu0 %v1819, 32
    %v1826 = vpop.permute.xlu0 %1825
    %v1828 = vmul.f32 %v1818, %v1826
    %1830 = vrot.lane.b32.xlu0 %v1828, 32
    %v1831 = vpop.permute.xlu0 %1830
    %v1833 = vadd.f32 %v1823, %v1831
    %v1834 = vtanh.pop %v1833
    %1836 = vrot.lane.b32.xlu0 %v1834, 32
    %v1837 = vpop.permute.xlu0 %1836
    %v1839 = vmul.f32 %v1818, %v1837
    %v1840 = vrot.slane %v1723, 2
    %1841 = vrot.lane.b32.xlu0 %v1840, 64
    %v1842 = vpop.permute.xlu0 %1841
    %v1843 = vsel %vm119, %v1842, 0
    %1845 = vmatprep.subr.mxu0 0.0
    %1846 = vmatpush1.msra.mxu0 0.0
    %1847 = vmatprep.subr.mxu0 0.0
    %1848 = vmatpush1.msra.mxu0 0.0
    %1849 = vmatprep.subr.mxu0 0.0
    %1850 = vmatpush1.msra.mxu0 0.0
    %1851 = vmatprep.subr.mxu0 0.0
    %1852 = vmatpush1.msra.mxu0 0.0
    %1853 = vmatprep.subr.mxu0 0.0
    %1854 = vmatpush1.msra.mxu0 0.0
    %1855 = vmatprep.subr.mxu0 0.0
    %1856 = vmatpush1.msra.mxu0 0.0
    %1857 = vmatprep.subr.mxu0 0.0
    %1858 = vmatpush1.msra.mxu0 0.0
    %1859 = vmatprep.subr.mxu0 0.0
    %1860 = vmatpush1.msra.mxu0 0.0
    %1861 = vmatprep.subr.mxu0 0.0
    %1862 = vmatpush1.msra.mxu0 0.0
    %1863 = vmatprep.subr.mxu0 0.0
    %1864 = vmatpush1.msra.mxu0 0.0
    %1865 = vmatprep.subr.mxu0 0.0
    %1866 = vmatpush1.msra.mxu0 0.0
    %1867 = vmatprep.subr.mxu0 0.0
    %1868 = vmatpush1.msra.mxu0 0.0
    %1869 = vmatprep.subr.mxu0 0.0
    %1870 = vmatpush1.msra.mxu0 %v206
    %1871 = vmatprep.subr.mxu0 0.0
    %1872 = vmatpush1.msra.mxu0 %v205
    %1873 = vmatprep.subr.mxu0 0.0
    %1874 = vmatpush1.msra.mxu0 %v204
    %1875 = vmatprep.subr.mxu0 0.0
    %1876 = vmatpush1.msra.mxu0 %v203
    %1877 = vmatprep.subr.mxu0 0.0
    %1878 = vmatpush2.msra.mxu0 0.0
    %1879 = vmatprep.subr.mxu0 0.0
    %1880 = vmatpush2.msra.mxu0 0.0
    %1881 = vmatprep.subr.mxu0 0.0
    %1882 = vmatpush2.msra.mxu0 0.0
    %1883 = vmatprep.subr.mxu0 0.0
    %1884 = vmatpush2.msra.mxu0 0.0
    %1885 = vmatprep.subr.mxu0 0.0
    %1886 = vmatpush2.msra.mxu0 0.0
    %1887 = vmatprep.subr.mxu0 0.0
    %1888 = vmatpush2.msra.mxu0 0.0
    %1889 = vmatprep.subr.mxu0 0.0
    %1890 = vmatpush2.msra.mxu0 0.0
    %1891 = vmatprep.subr.mxu0 0.0
    %1892 = vmatpush2.msra.mxu0 0.0
    %1893 = vmatprep.subr.mxu0 0.0
    %1894 = vmatpush2.msra.mxu0 0.0
    %1895 = vmatprep.subr.mxu0 0.0
    %1896 = vmatpush2.msra.mxu0 0.0
    %1897 = vmatprep.subr.mxu0 0.0
    %1898 = vmatpush2.msra.mxu0 0.0
    %1899 = vmatprep.subr.mxu0 0.0
    %1900 = vmatpush2.msra.mxu0 0.0
    %1901 = vmatprep.subr.mxu0 0.0
    %1902 = vmatpush2.msra.mxu0 0.0
    %1903 = vmatprep.subr.mxu0 0.0
    %1904 = vmatpush2.msra.mxu0 0.0
    %1905 = vmatprep.subr.mxu0 0.0
    %1906 = vmatpush2.msra.mxu0 0.0
    %1907 = vmatprep.subr.mxu0 0.0
    %1908 = vmatpush2.msra.mxu0 0.0
    %1909 = vmatprep.mubr.f32.mxu0 0.0
    %1910 = vmatmul.mubr.f32.gmra.mxu0 %v1843
    %v1911 = vpop.f32.mrf.mxu0
    %v1912 = vadd.f32 0.0, %v1911
    %v1913 = vpop.f32.mrf.mxu0
    %1914 = vdwg.mxu0
    %v1915 = vadd.f32 %v195, %v1912
    %v1916 = vxor.u32 %v1915, 2147483648
    %v1917 = vmul.f32 %v1916, 1.442695
    %v1918 = vpow.pop %v1917
    %v1919 = vadd.f32 %v1918, 1.0
    %v1920 = vrcp.pop %v1919
    %v1921 = vmul.f32 1.0, %v1920
    %v1922 = vtanh.pop %v1915
    %v1924 = vrot.slane %v1717, 2
    %v1926 = vmul.f32 %v1921, %v1924
    %1928 = vrot.lane.b32.xlu0 %v1922, 32
    %v1929 = vpop.permute.xlu0 %1928
    %v1931 = vmul.f32 %v1921, %v1929
    %1933 = vrot.lane.b32.xlu0 %v1931, 32
    %v1934 = vpop.permute.xlu0 %1933
    %v1936 = vadd.f32 %v1926, %v1934
    %v1937 = vtanh.pop %v1936
    %1939 = vrot.lane.b32.xlu0 %v1937, 32
    %v1940 = vpop.permute.xlu0 %1939
    %v1942 = vmul.f32 %v1921, %v1940
    %1944 = vrot.lane.b32.xlu0 %v1839, 64
    %v1945 = vpop.permute.xlu0 %1944
    %1947 = vst.msk [vmem:[#allocation2 + $0x8] sm:$0xc0] %vm413, %v1945
    %1949 = vrot.lane.b32.xlu0 %v1942, 64
    %v1950 = vpop.permute.xlu0 %1949
    %1952 = vst.msk [vmem:[#allocation3] sm:$0x3] %vm407, %v1950
    %v1953 = vld [vmem:[#allocation6] sm:$0xff]
    %v1954 = vld [vmem:[#allocation6 + $0x8] sm:$0xff]
    %v1955 = vld [vmem:[#allocation6 + $0x10] sm:$0xff]
    %v1956 = vld [vmem:[#allocation6 + $0x18] sm:$0xff]
    %v1957 = vld [vmem:[#allocation6 + $0x20] sm:$0xff]
    %v1958 = vld [vmem:[#allocation6 + $0x28] sm:$0xff]
    %v1959 = vld [vmem:[#allocation6 + $0x30] sm:$0xff]
    %v1960 = vld [vmem:[#allocation6 + $0x38] sm:$0xff]
    %v1961 = vld [vmem:[#allocation6 + $0x40] sm:$0xff]
    %v1962 = vld [vmem:[#allocation6 + $0x48] sm:$0xff]
    %v1963 = vld [vmem:[#allocation6 + $0x50] sm:$0xff]
    %v1964 = vld [vmem:[#allocation6 + $0x58] sm:$0xff]
    %v1965 = vld [vmem:[#allocation6 + $0x60] sm:$0xff]
    %v1966 = vld [vmem:[#allocation6 + $0x68] sm:$0xff]
    %v1967 = vld [vmem:[#allocation6 + $0x70] sm:$0xff]
    %v1968 = vld [vmem:[#allocation6 + $0x78] sm:$0xff]
    %v1969 = vld [vmem:[#allocation8] sm:$0xff]
    %v1970 = vld [vmem:[#allocation8 + $0x8] sm:$0xff]
    %v1971 = vld [vmem:[#allocation8 + $0x10] sm:$0xff]
    %v1972 = vld [vmem:[#allocation8 + $0x18] sm:$0xff]
    %v1973 = vld [vmem:[%s8] sm:$0x3]
    %v1974 = vld [vmem:[#allocation2] sm:$0xff]
    %v1975 = vld [vmem:[#allocation2 + $0x8] sm:$0xff]
    %v1976 = vld [vmem:[#allocation3] sm:$0xff]
    %v1977 = vld [vmem:[#allocation3 + $0x8] sm:$0xff]
    %v1979 = vsel %vm119, %v1976, 0
    %v1982 = vsel %vm119, %v1977, 0
    %1984 = vmatprep.subr.mxu0 0.0
    %1985 = vmatpush1.msra.mxu0 0.0
    %1986 = vmatprep.subr.mxu0 0.0
    %1987 = vmatpush1.msra.mxu0 0.0
    %1988 = vmatprep.subr.mxu0 0.0
    %1989 = vmatpush1.msra.mxu0 0.0
    %1990 = vmatprep.subr.mxu0 0.0
    %1991 = vmatpush1.msra.mxu0 0.0
    %1992 = vmatprep.subr.mxu0 0.0
    %1993 = vmatpush1.msra.mxu0 0.0
    %1994 = vmatprep.subr.mxu0 0.0
    %1995 = vmatpush1.msra.mxu0 0.0
    %1996 = vmatprep.subr.mxu0 0.0
    %1997 = vmatpush1.msra.mxu0 0.0
    %1998 = vmatprep.subr.mxu0 0.0
    %1999 = vmatpush1.msra.mxu0 0.0
    %2000 = vmatprep.subr.mxu0 0.0
    %2001 = vmatpush1.msra.mxu0 0.0
    %2002 = vmatprep.subr.mxu0 0.0
    %2003 = vmatpush1.msra.mxu0 0.0
    %2004 = vmatprep.subr.mxu0 0.0
    %2005 = vmatpush1.msra.mxu0 0.0
    %2006 = vmatprep.subr.mxu0 0.0
    %2007 = vmatpush1.msra.mxu0 0.0
    %2008 = vmatprep.subr.mxu0 %v1968
    %2009 = vmatpush1.msra.mxu0 %v1967
    %2010 = vmatprep.subr.mxu0 %v1966
    %2011 = vmatpush1.msra.mxu0 %v1965
    %2012 = vmatprep.subr.mxu0 %v1964
    %2013 = vmatpush1.msra.mxu0 %v1963
    %2014 = vmatprep.subr.mxu0 %v1962
    %2015 = vmatpush1.msra.mxu0 %v1961
    %2016 = vmatprep.subr.mxu0 0.0
    %2017 = vmatpush2.msra.mxu0 0.0
    %2018 = vmatprep.subr.mxu0 0.0
    %2019 = vmatpush2.msra.mxu0 0.0
    %2020 = vmatprep.subr.mxu0 0.0
    %2021 = vmatpush2.msra.mxu0 0.0
    %2022 = vmatprep.subr.mxu0 0.0
    %2023 = vmatpush2.msra.mxu0 0.0
    %2024 = vmatprep.subr.mxu0 0.0
    %2025 = vmatpush2.msra.mxu0 0.0
    %2026 = vmatprep.subr.mxu0 0.0
    %2027 = vmatpush2.msra.mxu0 0.0
    %2028 = vmatprep.subr.mxu0 0.0
    %2029 = vmatpush2.msra.mxu0 0.0
    %2030 = vmatprep.subr.mxu0 0.0
    %2031 = vmatpush2.msra.mxu0 0.0
    %2032 = vmatprep.subr.mxu0 0.0
    %2033 = vmatpush2.msra.mxu0 0.0
    %2034 = vmatprep.subr.mxu0 0.0
    %2035 = vmatpush2.msra.mxu0 0.0
    %2036 = vmatprep.subr.mxu0 0.0
    %2037 = vmatpush2.msra.mxu0 0.0
    %2038 = vmatprep.subr.mxu0 0.0
    %2039 = vmatpush2.msra.mxu0 0.0
    %2040 = vmatprep.subr.mxu0 0.0
    %2041 = vmatpush2.msra.mxu0 0.0
    %2042 = vmatprep.subr.mxu0 0.0
    %2043 = vmatpush2.msra.mxu0 0.0
    %2044 = vmatprep.subr.mxu0 0.0
    %2045 = vmatpush2.msra.mxu0 0.0
    %2046 = vmatprep.subr.mxu0 0.0
    %2047 = vmatpush2.msra.mxu0 0.0
    %2048 = vmatprep.mubr.f32.mxu0 0.0
    %2049 = vmatmul.mubr.f32.gmra.mxu0 %v1979
    %v2050 = vpop.f32.mrf.mxu0
    %v2051 = vadd.f32 0.0, %v2050
    %v2052 = vpop.f32.mrf.mxu0
    %2053 = vmatprep.mubr.f32.mxu0 0.0
    %2054 = vmatmul.mubr.f32.gmra.mxu0 %v1982
    %v2055 = vpop.f32.mrf.mxu0
    %v2056 = vadd.f32 0.0, %v2055
    %v2057 = vpop.f32.mrf.mxu0
    %v2058 = vadd.f32 0.0, %v2057
    %2059 = vdwg.mxu0
    %v2061 = vsel %vm119, %v1974, 0
    %v2064 = vsel %vm119, %v1975, 0
    %2066 = vmatprep.subr.mxu0 0.0
    %2067 = vmatpush1.msra.mxu0 0.0
    %2068 = vmatprep.subr.mxu0 0.0
    %2069 = vmatpush1.msra.mxu0 0.0
    %2070 = vmatprep.subr.mxu0 0.0
    %2071 = vmatpush1.msra.mxu0 0.0
    %2072 = vmatprep.subr.mxu0 0.0
    %2073 = vmatpush1.msra.mxu0 0.0
    %2074 = vmatprep.subr.mxu0 0.0
    %2075 = vmatpush1.msra.mxu0 0.0
    %2076 = vmatprep.subr.mxu0 0.0
    %2077 = vmatpush1.msra.mxu0 0.0
    %2078 = vmatprep.subr.mxu0 0.0
    %2079 = vmatpush1.msra.mxu0 0.0
    %2080 = vmatprep.subr.mxu0 0.0
    %2081 = vmatpush1.msra.mxu0 0.0
    %2082 = vmatprep.subr.mxu0 0.0
    %2083 = vmatpush1.msra.mxu0 0.0
    %2084 = vmatprep.subr.mxu0 0.0
    %2085 = vmatpush1.msra.mxu0 0.0
    %2086 = vmatprep.subr.mxu0 0.0
    %2087 = vmatpush1.msra.mxu0 0.0
    %2088 = vmatprep.subr.mxu0 0.0
    %2089 = vmatpush1.msra.mxu0 0.0
    %2090 = vmatprep.subr.mxu0 %v1960
    %2091 = vmatpush1.msra.mxu0 %v1959
    %2092 = vmatprep.subr.mxu0 %v1958
    %2093 = vmatpush1.msra.mxu0 %v1957
    %2094 = vmatprep.subr.mxu0 %v1956
    %2095 = vmatpush1.msra.mxu0 %v1955
    %2096 = vmatprep.subr.mxu0 %v1954
    %2097 = vmatpush1.msra.mxu0 %v1953
    %2098 = vmatprep.subr.mxu0 0.0
    %2099 = vmatpush2.msra.mxu0 0.0
    %2100 = vmatprep.subr.mxu0 0.0
    %2101 = vmatpush2.msra.mxu0 0.0
    %2102 = vmatprep.subr.mxu0 0.0
    %2103 = vmatpush2.msra.mxu0 0.0
    %2104 = vmatprep.subr.mxu0 0.0
    %2105 = vmatpush2.msra.mxu0 0.0
    %2106 = vmatprep.subr.mxu0 0.0
    %2107 = vmatpush2.msra.mxu0 0.0
    %2108 = vmatprep.subr.mxu0 0.0
    %2109 = vmatpush2.msra.mxu0 0.0
    %2110 = vmatprep.subr.mxu0 0.0
    %2111 = vmatpush2.msra.mxu0 0.0
    %2112 = vmatprep.subr.mxu0 0.0
    %2113 = vmatpush2.msra.mxu0 0.0
    %2114 = vmatprep.subr.mxu0 0.0
    %2115 = vmatpush2.msra.mxu0 0.0
    %2116 = vmatprep.subr.mxu0 0.0
    %2117 = vmatpush2.msra.mxu0 0.0
    %2118 = vmatprep.subr.mxu0 0.0
    %2119 = vmatpush2.msra.mxu0 0.0
    %2120 = vmatprep.subr.mxu0 0.0
    %2121 = vmatpush2.msra.mxu0 0.0
    %2122 = vmatprep.subr.mxu0 0.0
    %2123 = vmatpush2.msra.mxu0 0.0
    %2124 = vmatprep.subr.mxu0 0.0
    %2125 = vmatpush2.msra.mxu0 0.0
    %2126 = vmatprep.subr.mxu0 0.0
    %2127 = vmatpush2.msra.mxu0 0.0
    %2128 = vmatprep.subr.mxu0 0.0
    %2129 = vmatpush2.msra.mxu0 0.0
    %2130 = vmatprep.mubr.f32.mxu0 0.0
    %2131 = vmatmul.mubr.f32.gmra.mxu0 %v2061
    %v2132 = vpop.f32.mrf.mxu0
    %v2133 = vadd.f32 %v2051, %v2132
    %v2134 = vpop.f32.mrf.mxu0
    %2135 = vmatprep.mubr.f32.mxu0 0.0
    %2136 = vmatmul.mubr.f32.gmra.mxu0 %v2064
    %v2137 = vpop.f32.mrf.mxu0
    %v2138 = vadd.f32 %v2056, %v2137
    %v2139 = vpop.f32.mrf.mxu0
    %v2140 = vadd.f32 %v2058, %v2139
    %2141 = vdwg.mxu0
    %v2143 = vlaneseq
    %v2144 = vshrl.u32 %v2143, 7
    %v2145 = vsub.s32 0, %v2144
    %v2146 = vrot.slane %v1973, %v2145
    %v2147 = vlaneseq
    %v2148 = vshrl.u32 %v2147, 7
    %v2149 = vsub.s32 1, %v2148
    %v2150 = vrot.slane %v1973, %v2149
    %v2153 = vadd.f32 %v2133, %v2146
    %v2154 = vadd.f32 %v2138, %v2146
    %v2155 = vadd.f32 %v2140, %v2150
    %2156 = vmatprep.subr.mxu0 0.0
    %2157 = vmatpush1.msra.mxu0 0.0
    %2158 = vmatprep.subr.mxu0 0.0
    %2159 = vmatpush1.msra.mxu0 0.0
    %2160 = vmatprep.subr.mxu0 0.0
    %2161 = vmatpush1.msra.mxu0 0.0
    %2162 = vmatprep.subr.mxu0 0.0
    %2163 = vmatpush1.msra.mxu0 0.0
    %2164 = vmatprep.subr.mxu0 0.0
    %2165 = vmatpush1.msra.mxu0 0.0
    %2166 = vmatprep.subr.mxu0 0.0
    %2167 = vmatpush1.msra.mxu0 0.0
    %2168 = vmatprep.subr.mxu0 0.0
    %2169 = vmatpush1.msra.mxu0 0.0
    %2170 = vmatprep.subr.mxu0 0.0
    %2171 = vmatpush1.msra.mxu0 0.0
    %2172 = vmatprep.subr.mxu0 0.0
    %2173 = vmatpush1.msra.mxu0 0.0
    %2174 = vmatprep.subr.mxu0 0.0
    %2175 = vmatpush1.msra.mxu0 0.0
    %2176 = vmatprep.subr.mxu0 0.0
    %2177 = vmatpush1.msra.mxu0 0.0
    %2178 = vmatprep.subr.mxu0 0.0
    %2179 = vmatpush1.msra.mxu0 0.0
    %2180 = vmatprep.subr.mxu0 0.0
    %2181 = vmatpush1.msra.mxu0 %v1972
    %2182 = vmatprep.subr.mxu0 0.0
    %2183 = vmatpush1.msra.mxu0 %v1971
    %2184 = vmatprep.subr.mxu0 0.0
    %2185 = vmatpush1.msra.mxu0 %v1970
    %2186 = vmatprep.subr.mxu0 0.0
    %2187 = vmatpush1.msra.mxu0 %v1969
    %2188 = vmatprep.subr.mxu0 0.0
    %2189 = vmatpush2.msra.mxu0 0.0
    %2190 = vmatprep.subr.mxu0 0.0
    %2191 = vmatpush2.msra.mxu0 0.0
    %2192 = vmatprep.subr.mxu0 0.0
    %2193 = vmatpush2.msra.mxu0 0.0
    %2194 = vmatprep.subr.mxu0 0.0
    %2195 = vmatpush2.msra.mxu0 0.0
    %2196 = vmatprep.subr.mxu0 0.0
    %2197 = vmatpush2.msra.mxu0 0.0
    %2198 = vmatprep.subr.mxu0 0.0
    %2199 = vmatpush2.msra.mxu0 0.0
    %2200 = vmatprep.subr.mxu0 0.0
    %2201 = vmatpush2.msra.mxu0 0.0
    %2202 = vmatprep.subr.mxu0 0.0
    %2203 = vmatpush2.msra.mxu0 0.0
    %2204 = vmatprep.subr.mxu0 0.0
    %2205 = vmatpush2.msra.mxu0 0.0
    %2206 = vmatprep.subr.mxu0 0.0
    %2207 = vmatpush2.msra.mxu0 0.0
    %2208 = vmatprep.subr.mxu0 0.0
    %2209 = vmatpush2.msra.mxu0 0.0
    %2210 = vmatprep.subr.mxu0 0.0
    %2211 = vmatpush2.msra.mxu0 0.0
    %2212 = vmatprep.subr.mxu0 0.0
    %2213 = vmatpush2.msra.mxu0 0.0
    %2214 = vmatprep.subr.mxu0 0.0
    %2215 = vmatpush2.msra.mxu0 0.0
    %2216 = vmatprep.subr.mxu0 0.0
    %2217 = vmatpush2.msra.mxu0 0.0
    %2218 = vmatprep.subr.mxu0 0.0
    %2219 = vmatpush2.msra.mxu0 0.0
    %2220 = vmatprep.mubr.f32.mxu0 0.0
    %2221 = vmatmul.mubr.f32.gmra.mxu0 %v208
    %v2222 = vpop.f32.mrf.mxu0
    %v2223 = vadd.f32 0.0, %v2222
    %v2224 = vpop.f32.mrf.mxu0
    %2225 = vdwg.mxu0
    %v2226 = vadd.f32 %v2153, %v2223
    %v2227 = vxor.u32 %v2226, 2147483648
    %v2228 = vmul.f32 %v2227, 1.442695
    %v2229 = vpow.pop %v2228
    %v2230 = vadd.f32 %v2229, 1.0
    %v2231 = vrcp.pop %v2230
    %v2232 = vmul.f32 1.0, %v2231
    %v2233 = vtanh.pop %v2226
    %v2234 = vmul.f32 %v2232, 0.0
    %2236 = vrot.lane.b32.xlu0 %v2233, 32
    %v2237 = vpop.permute.xlu0 %2236
    %v2239 = vmul.f32 %v2232, %v2237
    %2241 = vrot.lane.b32.xlu0 %v2239, 32
    %v2242 = vpop.permute.xlu0 %2241
    %v2244 = vadd.f32 %v2234, %v2242
    %v2245 = vtanh.pop %v2244
    %2247 = vrot.lane.b32.xlu0 %v2245, 32
    %v2248 = vpop.permute.xlu0 %2247
    %v2250 = vmul.f32 %v2232, %v2248
    %2252 = vrot.lane.b32.xlu0 %v2250, 64
    %v2253 = vpop.permute.xlu0 %2252
    %v2254 = vsel %vm119, %v2253, 0
    %2256 = vmatprep.subr.mxu0 0.0
    %2257 = vmatpush1.msra.mxu0 0.0
    %2258 = vmatprep.subr.mxu0 0.0
    %2259 = vmatpush1.msra.mxu0 0.0
    %2260 = vmatprep.subr.mxu0 0.0
    %2261 = vmatpush1.msra.mxu0 0.0
    %2262 = vmatprep.subr.mxu0 0.0
    %2263 = vmatpush1.msra.mxu0 0.0
    %2264 = vmatprep.subr.mxu0 0.0
    %2265 = vmatpush1.msra.mxu0 0.0
    %2266 = vmatprep.subr.mxu0 0.0
    %2267 = vmatpush1.msra.mxu0 0.0
    %2268 = vmatprep.subr.mxu0 0.0
    %2269 = vmatpush1.msra.mxu0 0.0
    %2270 = vmatprep.subr.mxu0 0.0
    %2271 = vmatpush1.msra.mxu0 0.0
    %2272 = vmatprep.subr.mxu0 0.0
    %2273 = vmatpush1.msra.mxu0 0.0
    %2274 = vmatprep.subr.mxu0 0.0
    %2275 = vmatpush1.msra.mxu0 0.0
    %2276 = vmatprep.subr.mxu0 0.0
    %2277 = vmatpush1.msra.mxu0 0.0
    %2278 = vmatprep.subr.mxu0 0.0
    %2279 = vmatpush1.msra.mxu0 0.0
    %2280 = vmatprep.subr.mxu0 0.0
    %2281 = vmatpush1.msra.mxu0 %v1972
    %2282 = vmatprep.subr.mxu0 0.0
    %2283 = vmatpush1.msra.mxu0 %v1971
    %2284 = vmatprep.subr.mxu0 0.0
    %2285 = vmatpush1.msra.mxu0 %v1970
    %2286 = vmatprep.subr.mxu0 0.0
    %2287 = vmatpush1.msra.mxu0 %v1969
    %2288 = vmatprep.subr.mxu0 0.0
    %2289 = vmatpush2.msra.mxu0 0.0
    %2290 = vmatprep.subr.mxu0 0.0
    %2291 = vmatpush2.msra.mxu0 0.0
    %2292 = vmatprep.subr.mxu0 0.0
    %2293 = vmatpush2.msra.mxu0 0.0
    %2294 = vmatprep.subr.mxu0 0.0
    %2295 = vmatpush2.msra.mxu0 0.0
    %2296 = vmatprep.subr.mxu0 0.0
    %2297 = vmatpush2.msra.mxu0 0.0
    %2298 = vmatprep.subr.mxu0 0.0
    %2299 = vmatpush2.msra.mxu0 0.0
    %2300 = vmatprep.subr.mxu0 0.0
    %2301 = vmatpush2.msra.mxu0 0.0
    %2302 = vmatprep.subr.mxu0 0.0
    %2303 = vmatpush2.msra.mxu0 0.0
    %2304 = vmatprep.subr.mxu0 0.0
    %2305 = vmatpush2.msra.mxu0 0.0
    %2306 = vmatprep.subr.mxu0 0.0
    %2307 = vmatpush2.msra.mxu0 0.0
    %2308 = vmatprep.subr.mxu0 0.0
    %2309 = vmatpush2.msra.mxu0 0.0
    %2310 = vmatprep.subr.mxu0 0.0
    %2311 = vmatpush2.msra.mxu0 0.0
    %2312 = vmatprep.subr.mxu0 0.0
    %2313 = vmatpush2.msra.mxu0 0.0
    %2314 = vmatprep.subr.mxu0 0.0
    %2315 = vmatpush2.msra.mxu0 0.0
    %2316 = vmatprep.subr.mxu0 0.0
    %2317 = vmatpush2.msra.mxu0 0.0
    %2318 = vmatprep.subr.mxu0 0.0
    %2319 = vmatpush2.msra.mxu0 0.0
    %2320 = vmatprep.mubr.f32.mxu0 0.0
    %2321 = vmatmul.mubr.f32.gmra.mxu0 %v2254
    %v2322 = vpop.f32.mrf.mxu0
    %v2323 = vadd.f32 0.0, %v2322
    %v2324 = vpop.f32.mrf.mxu0
    %2325 = vdwg.mxu0
    %v2327 = vrot.slane %v2323, 6
    %v2329 = vadd.f32 %v2153, %v2327
    %v2330 = vxor.u32 %v2329, 2147483648
    %v2331 = vmul.f32 %v2330, 1.442695
    %v2332 = vpow.pop %v2331
    %v2333 = vadd.f32 %v2332, 1.0
    %v2334 = vrcp.pop %v2333
    %v2335 = vmul.f32 1.0, %v2334
    %v2336 = vtanh.pop %v2329
    %v2338 = vrot.slane %v2244, 6
    %v2340 = vmul.f32 %v2335, %v2338
    %2342 = vrot.lane.b32.xlu0 %v2336, 32
    %v2343 = vpop.permute.xlu0 %2342
    %v2345 = vmul.f32 %v2335, %v2343
    %2347 = vrot.lane.b32.xlu0 %v2345, 32
    %v2348 = vpop.permute.xlu0 %2347
    %v2350 = vadd.f32 %v2340, %v2348
    %v2351 = vtanh.pop %v2350
    %2353 = vrot.lane.b32.xlu0 %v2351, 32
    %v2354 = vpop.permute.xlu0 %2353
    %v2356 = vmul.f32 %v2335, %v2354
    %v2358 = vrot.slane %v2356, 2
    %2359 = vrot.lane.b32.xlu0 %v2358, 64
    %v2360 = vpop.permute.xlu0 %2359
    %v2361 = vsel %vm119, %v2360, 0
    %2363 = vmatprep.subr.mxu0 0.0
    %2364 = vmatpush1.msra.mxu0 0.0
    %2365 = vmatprep.subr.mxu0 0.0
    %2366 = vmatpush1.msra.mxu0 0.0
    %2367 = vmatprep.subr.mxu0 0.0
    %2368 = vmatpush1.msra.mxu0 0.0
    %2369 = vmatprep.subr.mxu0 0.0
    %2370 = vmatpush1.msra.mxu0 0.0
    %2371 = vmatprep.subr.mxu0 0.0
    %2372 = vmatpush1.msra.mxu0 0.0
    %2373 = vmatprep.subr.mxu0 0.0
    %2374 = vmatpush1.msra.mxu0 0.0
    %2375 = vmatprep.subr.mxu0 0.0
    %2376 = vmatpush1.msra.mxu0 0.0
    %2377 = vmatprep.subr.mxu0 0.0
    %2378 = vmatpush1.msra.mxu0 0.0
    %2379 = vmatprep.subr.mxu0 0.0
    %2380 = vmatpush1.msra.mxu0 0.0
    %2381 = vmatprep.subr.mxu0 0.0
    %2382 = vmatpush1.msra.mxu0 0.0
    %2383 = vmatprep.subr.mxu0 0.0
    %2384 = vmatpush1.msra.mxu0 0.0
    %2385 = vmatprep.subr.mxu0 0.0
    %2386 = vmatpush1.msra.mxu0 0.0
    %2387 = vmatprep.subr.mxu0 0.0
    %2388 = vmatpush1.msra.mxu0 %v1972
    %2389 = vmatprep.subr.mxu0 0.0
    %2390 = vmatpush1.msra.mxu0 %v1971
    %2391 = vmatprep.subr.mxu0 0.0
    %2392 = vmatpush1.msra.mxu0 %v1970
    %2393 = vmatprep.subr.mxu0 0.0
    %2394 = vmatpush1.msra.mxu0 %v1969
    %2395 = vmatprep.subr.mxu0 0.0
    %2396 = vmatpush2.msra.mxu0 0.0
    %2397 = vmatprep.subr.mxu0 0.0
    %2398 = vmatpush2.msra.mxu0 0.0
    %2399 = vmatprep.subr.mxu0 0.0
    %2400 = vmatpush2.msra.mxu0 0.0
    %2401 = vmatprep.subr.mxu0 0.0
    %2402 = vmatpush2.msra.mxu0 0.0
    %2403 = vmatprep.subr.mxu0 0.0
    %2404 = vmatpush2.msra.mxu0 0.0
    %2405 = vmatprep.subr.mxu0 0.0
    %2406 = vmatpush2.msra.mxu0 0.0
    %2407 = vmatprep.subr.mxu0 0.0
    %2408 = vmatpush2.msra.mxu0 0.0
    %2409 = vmatprep.subr.mxu0 0.0
    %2410 = vmatpush2.msra.mxu0 0.0
    %2411 = vmatprep.subr.mxu0 0.0
    %2412 = vmatpush2.msra.mxu0 0.0
    %2413 = vmatprep.subr.mxu0 0.0
    %2414 = vmatpush2.msra.mxu0 0.0
    %2415 = vmatprep.subr.mxu0 0.0
    %2416 = vmatpush2.msra.mxu0 0.0
    %2417 = vmatprep.subr.mxu0 0.0
    %2418 = vmatpush2.msra.mxu0 0.0
    %2419 = vmatprep.subr.mxu0 0.0
    %2420 = vmatpush2.msra.mxu0 0.0
    %2421 = vmatprep.subr.mxu0 0.0
    %2422 = vmatpush2.msra.mxu0 0.0
    %2423 = vmatprep.subr.mxu0 0.0
    %2424 = vmatpush2.msra.mxu0 0.0
    %2425 = vmatprep.subr.mxu0 0.0
    %2426 = vmatpush2.msra.mxu0 0.0
    %2427 = vmatprep.mubr.f32.mxu0 0.0
    %2428 = vmatmul.mubr.f32.gmra.mxu0 %v2361
    %v2429 = vpop.f32.mrf.mxu0
    %v2430 = vadd.f32 0.0, %v2429
    %v2431 = vpop.f32.mrf.mxu0
    %2432 = vdwg.mxu0
    %v2434 = vrot.slane %v2430, 4
    %v2436 = vadd.f32 %v2153, %v2434
    %v2437 = vxor.u32 %v2436, 2147483648
    %v2438 = vmul.f32 %v2437, 1.442695
    %v2439 = vpow.pop %v2438
    %v2440 = vadd.f32 %v2439, 1.0
    %v2441 = vrcp.pop %v2440
    %v2442 = vmul.f32 1.0, %v2441
    %v2443 = vtanh.pop %v2436
    %v2445 = vrot.slane %v2350, 6
    %v2447 = vmul.f32 %v2442, %v2445
    %2449 = vrot.lane.b32.xlu0 %v2443, 32
    %v2450 = vpop.permute.xlu0 %2449
    %v2452 = vmul.f32 %v2442, %v2450
    %2454 = vrot.lane.b32.xlu0 %v2452, 32
    %v2455 = vpop.permute.xlu0 %2454
    %v2457 = vadd.f32 %v2447, %v2455
    %v2458 = vtanh.pop %v2457
    %2460 = vrot.lane.b32.xlu0 %v2458, 32
    %v2461 = vpop.permute.xlu0 %2460
    %v2463 = vmul.f32 %v2442, %v2461
    %v2465 = vrot.slane %v2463, 4
    %2466 = vrot.lane.b32.xlu0 %v2465, 64
    %v2467 = vpop.permute.xlu0 %2466
    %v2468 = vsel %vm119, %v2467, 0
    %2470 = vmatprep.subr.mxu0 0.0
    %2471 = vmatpush1.msra.mxu0 0.0
    %2472 = vmatprep.subr.mxu0 0.0
    %2473 = vmatpush1.msra.mxu0 0.0
    %2474 = vmatprep.subr.mxu0 0.0
    %2475 = vmatpush1.msra.mxu0 0.0
    %2476 = vmatprep.subr.mxu0 0.0
    %2477 = vmatpush1.msra.mxu0 0.0
    %2478 = vmatprep.subr.mxu0 0.0
    %2479 = vmatpush1.msra.mxu0 0.0
    %2480 = vmatprep.subr.mxu0 0.0
    %2481 = vmatpush1.msra.mxu0 0.0
    %2482 = vmatprep.subr.mxu0 0.0
    %2483 = vmatpush1.msra.mxu0 0.0
    %2484 = vmatprep.subr.mxu0 0.0
    %2485 = vmatpush1.msra.mxu0 0.0
    %2486 = vmatprep.subr.mxu0 0.0
    %2487 = vmatpush1.msra.mxu0 0.0
    %2488 = vmatprep.subr.mxu0 0.0
    %2489 = vmatpush1.msra.mxu0 0.0
    %2490 = vmatprep.subr.mxu0 0.0
    %2491 = vmatpush1.msra.mxu0 0.0
    %2492 = vmatprep.subr.mxu0 0.0
    %2493 = vmatpush1.msra.mxu0 0.0
    %2494 = vmatprep.subr.mxu0 0.0
    %2495 = vmatpush1.msra.mxu0 %v1972
    %2496 = vmatprep.subr.mxu0 0.0
    %2497 = vmatpush1.msra.mxu0 %v1971
    %2498 = vmatprep.subr.mxu0 0.0
    %2499 = vmatpush1.msra.mxu0 %v1970
    %2500 = vmatprep.subr.mxu0 0.0
    %2501 = vmatpush1.msra.mxu0 %v1969
    %2502 = vmatprep.subr.mxu0 0.0
    %2503 = vmatpush2.msra.mxu0 0.0
    %2504 = vmatprep.subr.mxu0 0.0
    %2505 = vmatpush2.msra.mxu0 0.0
    %2506 = vmatprep.subr.mxu0 0.0
    %2507 = vmatpush2.msra.mxu0 0.0
    %2508 = vmatprep.subr.mxu0 0.0
    %2509 = vmatpush2.msra.mxu0 0.0
    %2510 = vmatprep.subr.mxu0 0.0
    %2511 = vmatpush2.msra.mxu0 0.0
    %2512 = vmatprep.subr.mxu0 0.0
    %2513 = vmatpush2.msra.mxu0 0.0
    %2514 = vmatprep.subr.mxu0 0.0
    %2515 = vmatpush2.msra.mxu0 0.0
    %2516 = vmatprep.subr.mxu0 0.0
    %2517 = vmatpush2.msra.mxu0 0.0
    %2518 = vmatprep.subr.mxu0 0.0
    %2519 = vmatpush2.msra.mxu0 0.0
    %2520 = vmatprep.subr.mxu0 0.0
    %2521 = vmatpush2.msra.mxu0 0.0
    %2522 = vmatprep.subr.mxu0 0.0
    %2523 = vmatpush2.msra.mxu0 0.0
    %2524 = vmatprep.subr.mxu0 0.0
    %2525 = vmatpush2.msra.mxu0 0.0
    %2526 = vmatprep.subr.mxu0 0.0
    %2527 = vmatpush2.msra.mxu0 0.0
    %2528 = vmatprep.subr.mxu0 0.0
    %2529 = vmatpush2.msra.mxu0 0.0
    %2530 = vmatprep.subr.mxu0 0.0
    %2531 = vmatpush2.msra.mxu0 0.0
    %2532 = vmatprep.subr.mxu0 0.0
    %2533 = vmatpush2.msra.mxu0 0.0
    %2534 = vmatprep.mubr.f32.mxu0 0.0
    %2535 = vmatmul.mubr.f32.gmra.mxu0 %v2468
    %v2536 = vpop.f32.mrf.mxu0
    %v2537 = vadd.f32 0.0, %v2536
    %v2538 = vpop.f32.mrf.mxu0
    %2539 = vdwg.mxu0
    %v2541 = vrot.slane %v2537, 2
    %v2543 = vadd.f32 %v2153, %v2541
    %v2544 = vxor.u32 %v2543, 2147483648
    %v2545 = vmul.f32 %v2544, 1.442695
    %v2546 = vpow.pop %v2545
    %v2547 = vadd.f32 %v2546, 1.0
    %v2548 = vrcp.pop %v2547
    %v2549 = vmul.f32 1.0, %v2548
    %v2550 = vtanh.pop %v2543
    %v2552 = vrot.slane %v2457, 6
    %v2554 = vmul.f32 %v2549, %v2552
    %2556 = vrot.lane.b32.xlu0 %v2550, 32
    %v2557 = vpop.permute.xlu0 %2556
    %v2559 = vmul.f32 %v2549, %v2557
    %2561 = vrot.lane.b32.xlu0 %v2559, 32
    %v2562 = vpop.permute.xlu0 %2561
    %v2564 = vadd.f32 %v2554, %v2562
    %v2565 = vtanh.pop %v2564
    %2567 = vrot.lane.b32.xlu0 %v2565, 32
    %v2568 = vpop.permute.xlu0 %2567
    %v2570 = vmul.f32 %v2549, %v2568
    %v2572 = vrot.slane %v2570, 6
    %2573 = vrot.lane.b32.xlu0 %v2572, 64
    %v2574 = vpop.permute.xlu0 %2573
    %v2575 = vsel %vm119, %v2574, 0
    %2577 = vmatprep.subr.mxu0 0.0
    %2578 = vmatpush1.msra.mxu0 0.0
    %2579 = vmatprep.subr.mxu0 0.0
    %2580 = vmatpush1.msra.mxu0 0.0
    %2581 = vmatprep.subr.mxu0 0.0
    %2582 = vmatpush1.msra.mxu0 0.0
    %2583 = vmatprep.subr.mxu0 0.0
    %2584 = vmatpush1.msra.mxu0 0.0
    %2585 = vmatprep.subr.mxu0 0.0
    %2586 = vmatpush1.msra.mxu0 0.0
    %2587 = vmatprep.subr.mxu0 0.0
    %2588 = vmatpush1.msra.mxu0 0.0
    %2589 = vmatprep.subr.mxu0 0.0
    %2590 = vmatpush1.msra.mxu0 0.0
    %2591 = vmatprep.subr.mxu0 0.0
    %2592 = vmatpush1.msra.mxu0 0.0
    %2593 = vmatprep.subr.mxu0 0.0
    %2594 = vmatpush1.msra.mxu0 0.0
    %2595 = vmatprep.subr.mxu0 0.0
    %2596 = vmatpush1.msra.mxu0 0.0
    %2597 = vmatprep.subr.mxu0 0.0
    %2598 = vmatpush1.msra.mxu0 0.0
    %2599 = vmatprep.subr.mxu0 0.0
    %2600 = vmatpush1.msra.mxu0 0.0
    %2601 = vmatprep.subr.mxu0 0.0
    %2602 = vmatpush1.msra.mxu0 %v1972
    %2603 = vmatprep.subr.mxu0 0.0
    %2604 = vmatpush1.msra.mxu0 %v1971
    %2605 = vmatprep.subr.mxu0 0.0
    %2606 = vmatpush1.msra.mxu0 %v1970
    %2607 = vmatprep.subr.mxu0 0.0
    %2608 = vmatpush1.msra.mxu0 %v1969
    %2609 = vmatprep.subr.mxu0 0.0
    %2610 = vmatpush2.msra.mxu0 0.0
    %2611 = vmatprep.subr.mxu0 0.0
    %2612 = vmatpush2.msra.mxu0 0.0
    %2613 = vmatprep.subr.mxu0 0.0
    %2614 = vmatpush2.msra.mxu0 0.0
    %2615 = vmatprep.subr.mxu0 0.0
    %2616 = vmatpush2.msra.mxu0 0.0
    %2617 = vmatprep.subr.mxu0 0.0
    %2618 = vmatpush2.msra.mxu0 0.0
    %2619 = vmatprep.subr.mxu0 0.0
    %2620 = vmatpush2.msra.mxu0 0.0
    %2621 = vmatprep.subr.mxu0 0.0
    %2622 = vmatpush2.msra.mxu0 0.0
    %2623 = vmatprep.subr.mxu0 0.0
    %2624 = vmatpush2.msra.mxu0 0.0
    %2625 = vmatprep.subr.mxu0 0.0
    %2626 = vmatpush2.msra.mxu0 0.0
    %2627 = vmatprep.subr.mxu0 0.0
    %2628 = vmatpush2.msra.mxu0 0.0
    %2629 = vmatprep.subr.mxu0 0.0
    %2630 = vmatpush2.msra.mxu0 0.0
    %2631 = vmatprep.subr.mxu0 0.0
    %2632 = vmatpush2.msra.mxu0 0.0
    %2633 = vmatprep.subr.mxu0 0.0
    %2634 = vmatpush2.msra.mxu0 0.0
    %2635 = vmatprep.subr.mxu0 0.0
    %2636 = vmatpush2.msra.mxu0 0.0
    %2637 = vmatprep.subr.mxu0 0.0
    %2638 = vmatpush2.msra.mxu0 0.0
    %2639 = vmatprep.subr.mxu0 0.0
    %2640 = vmatpush2.msra.mxu0 0.0
    %2641 = vmatprep.mubr.f32.mxu0 0.0
    %2642 = vmatmul.mubr.f32.gmra.mxu0 %v2575
    %v2643 = vpop.f32.mrf.mxu0
    %v2644 = vadd.f32 0.0, %v2643
    %v2645 = vpop.f32.mrf.mxu0
    %2646 = vdwg.mxu0
    %v2647 = vadd.f32 %v2154, %v2644
    %v2648 = vxor.u32 %v2647, 2147483648
    %v2649 = vmul.f32 %v2648, 1.442695
    %v2650 = vpow.pop %v2649
    %v2651 = vadd.f32 %v2650, 1.0
    %v2652 = vrcp.pop %v2651
    %v2653 = vmul.f32 1.0, %v2652
    %v2654 = vtanh.pop %v2647
    %v2656 = vrot.slane %v2564, 6
    %v2658 = vmul.f32 %v2653, %v2656
    %2660 = vrot.lane.b32.xlu0 %v2654, 32
    %v2661 = vpop.permute.xlu0 %2660
    %v2663 = vmul.f32 %v2653, %v2661
    %2665 = vrot.lane.b32.xlu0 %v2663, 32
    %v2666 = vpop.permute.xlu0 %2665
    %v2668 = vadd.f32 %v2658, %v2666
    %v2669 = vtanh.pop %v2668
    %2671 = vrot.lane.b32.xlu0 %v2669, 32
    %v2672 = vpop.permute.xlu0 %2671
    %v2674 = vmul.f32 %v2653, %v2672
    %2676 = vrot.lane.b32.xlu0 %v2674, 64
    %v2677 = vpop.permute.xlu0 %2676
    %v2678 = vsel %vm119, %v2677, 0
    %2680 = vmatprep.subr.mxu0 0.0
    %2681 = vmatpush1.msra.mxu0 0.0
    %2682 = vmatprep.subr.mxu0 0.0
    %2683 = vmatpush1.msra.mxu0 0.0
    %2684 = vmatprep.subr.mxu0 0.0
    %2685 = vmatpush1.msra.mxu0 0.0
    %2686 = vmatprep.subr.mxu0 0.0
    %2687 = vmatpush1.msra.mxu0 0.0
    %2688 = vmatprep.subr.mxu0 0.0
    %2689 = vmatpush1.msra.mxu0 0.0
    %2690 = vmatprep.subr.mxu0 0.0
    %2691 = vmatpush1.msra.mxu0 0.0
    %2692 = vmatprep.subr.mxu0 0.0
    %2693 = vmatpush1.msra.mxu0 0.0
    %2694 = vmatprep.subr.mxu0 0.0
    %2695 = vmatpush1.msra.mxu0 0.0
    %2696 = vmatprep.subr.mxu0 0.0
    %2697 = vmatpush1.msra.mxu0 0.0
    %2698 = vmatprep.subr.mxu0 0.0
    %2699 = vmatpush1.msra.mxu0 0.0
    %2700 = vmatprep.subr.mxu0 0.0
    %2701 = vmatpush1.msra.mxu0 0.0
    %2702 = vmatprep.subr.mxu0 0.0
    %2703 = vmatpush1.msra.mxu0 0.0
    %2704 = vmatprep.subr.mxu0 0.0
    %2705 = vmatpush1.msra.mxu0 %v1972
    %2706 = vmatprep.subr.mxu0 0.0
    %2707 = vmatpush1.msra.mxu0 %v1971
    %2708 = vmatprep.subr.mxu0 0.0
    %2709 = vmatpush1.msra.mxu0 %v1970
    %2710 = vmatprep.subr.mxu0 0.0
    %2711 = vmatpush1.msra.mxu0 %v1969
    %2712 = vmatprep.subr.mxu0 0.0
    %2713 = vmatpush2.msra.mxu0 0.0
    %2714 = vmatprep.subr.mxu0 0.0
    %2715 = vmatpush2.msra.mxu0 0.0
    %2716 = vmatprep.subr.mxu0 0.0
    %2717 = vmatpush2.msra.mxu0 0.0
    %2718 = vmatprep.subr.mxu0 0.0
    %2719 = vmatpush2.msra.mxu0 0.0
    %2720 = vmatprep.subr.mxu0 0.0
    %2721 = vmatpush2.msra.mxu0 0.0
    %2722 = vmatprep.subr.mxu0 0.0
    %2723 = vmatpush2.msra.mxu0 0.0
    %2724 = vmatprep.subr.mxu0 0.0
    %2725 = vmatpush2.msra.mxu0 0.0
    %2726 = vmatprep.subr.mxu0 0.0
    %2727 = vmatpush2.msra.mxu0 0.0
    %2728 = vmatprep.subr.mxu0 0.0
    %2729 = vmatpush2.msra.mxu0 0.0
    %2730 = vmatprep.subr.mxu0 0.0
    %2731 = vmatpush2.msra.mxu0 0.0
    %2732 = vmatprep.subr.mxu0 0.0
    %2733 = vmatpush2.msra.mxu0 0.0
    %2734 = vmatprep.subr.mxu0 0.0
    %2735 = vmatpush2.msra.mxu0 0.0
    %2736 = vmatprep.subr.mxu0 0.0
    %2737 = vmatpush2.msra.mxu0 0.0
    %2738 = vmatprep.subr.mxu0 0.0
    %2739 = vmatpush2.msra.mxu0 0.0
    %2740 = vmatprep.subr.mxu0 0.0
    %2741 = vmatpush2.msra.mxu0 0.0
    %2742 = vmatprep.subr.mxu0 0.0
    %2743 = vmatpush2.msra.mxu0 0.0
    %2744 = vmatprep.mubr.f32.mxu0 0.0
    %2745 = vmatmul.mubr.f32.gmra.mxu0 %v2678
    %v2746 = vpop.f32.mrf.mxu0
    %v2747 = vadd.f32 0.0, %v2746
    %v2748 = vpop.f32.mrf.mxu0
    %2749 = vdwg.mxu0
    %v2751 = vrot.slane %v2747, 6
    %v2753 = vadd.f32 %v2154, %v2751
    %v2754 = vxor.u32 %v2753, 2147483648
    %v2755 = vmul.f32 %v2754, 1.442695
    %v2756 = vpow.pop %v2755
    %v2757 = vadd.f32 %v2756, 1.0
    %v2758 = vrcp.pop %v2757
    %v2759 = vmul.f32 1.0, %v2758
    %v2760 = vtanh.pop %v2753
    %v2762 = vrot.slane %v2668, 6
    %v2764 = vmul.f32 %v2759, %v2762
    %2766 = vrot.lane.b32.xlu0 %v2760, 32
    %v2767 = vpop.permute.xlu0 %2766
    %v2769 = vmul.f32 %v2759, %v2767
    %2771 = vrot.lane.b32.xlu0 %v2769, 32
    %v2772 = vpop.permute.xlu0 %2771
    %v2774 = vadd.f32 %v2764, %v2772
    %v2775 = vtanh.pop %v2774
    %2777 = vrot.lane.b32.xlu0 %v2775, 32
    %v2778 = vpop.permute.xlu0 %2777
    %v2780 = vmul.f32 %v2759, %v2778
    %v2782 = vrot.slane %v2780, 2
    %2783 = vrot.lane.b32.xlu0 %v2782, 64
    %v2784 = vpop.permute.xlu0 %2783
    %v2785 = vsel %vm119, %v2784, 0
    %2787 = vmatprep.subr.mxu0 0.0
    %2788 = vmatpush1.msra.mxu0 0.0
    %2789 = vmatprep.subr.mxu0 0.0
    %2790 = vmatpush1.msra.mxu0 0.0
    %2791 = vmatprep.subr.mxu0 0.0
    %2792 = vmatpush1.msra.mxu0 0.0
    %2793 = vmatprep.subr.mxu0 0.0
    %2794 = vmatpush1.msra.mxu0 0.0
    %2795 = vmatprep.subr.mxu0 0.0
    %2796 = vmatpush1.msra.mxu0 0.0
    %2797 = vmatprep.subr.mxu0 0.0
    %2798 = vmatpush1.msra.mxu0 0.0
    %2799 = vmatprep.subr.mxu0 0.0
    %2800 = vmatpush1.msra.mxu0 0.0
    %2801 = vmatprep.subr.mxu0 0.0
    %2802 = vmatpush1.msra.mxu0 0.0
    %2803 = vmatprep.subr.mxu0 0.0
    %2804 = vmatpush1.msra.mxu0 0.0
    %2805 = vmatprep.subr.mxu0 0.0
    %2806 = vmatpush1.msra.mxu0 0.0
    %2807 = vmatprep.subr.mxu0 0.0
    %2808 = vmatpush1.msra.mxu0 0.0
    %2809 = vmatprep.subr.mxu0 0.0
    %2810 = vmatpush1.msra.mxu0 0.0
    %2811 = vmatprep.subr.mxu0 0.0
    %2812 = vmatpush1.msra.mxu0 %v1972
    %2813 = vmatprep.subr.mxu0 0.0
    %2814 = vmatpush1.msra.mxu0 %v1971
    %2815 = vmatprep.subr.mxu0 0.0
    %2816 = vmatpush1.msra.mxu0 %v1970
    %2817 = vmatprep.subr.mxu0 0.0
    %2818 = vmatpush1.msra.mxu0 %v1969
    %2819 = vmatprep.subr.mxu0 0.0
    %2820 = vmatpush2.msra.mxu0 0.0
    %2821 = vmatprep.subr.mxu0 0.0
    %2822 = vmatpush2.msra.mxu0 0.0
    %2823 = vmatprep.subr.mxu0 0.0
    %2824 = vmatpush2.msra.mxu0 0.0
    %2825 = vmatprep.subr.mxu0 0.0
    %2826 = vmatpush2.msra.mxu0 0.0
    %2827 = vmatprep.subr.mxu0 0.0
    %2828 = vmatpush2.msra.mxu0 0.0
    %2829 = vmatprep.subr.mxu0 0.0
    %2830 = vmatpush2.msra.mxu0 0.0
    %2831 = vmatprep.subr.mxu0 0.0
    %2832 = vmatpush2.msra.mxu0 0.0
    %2833 = vmatprep.subr.mxu0 0.0
    %2834 = vmatpush2.msra.mxu0 0.0
    %2835 = vmatprep.subr.mxu0 0.0
    %2836 = vmatpush2.msra.mxu0 0.0
    %2837 = vmatprep.subr.mxu0 0.0
    %2838 = vmatpush2.msra.mxu0 0.0
    %2839 = vmatprep.subr.mxu0 0.0
    %2840 = vmatpush2.msra.mxu0 0.0
    %2841 = vmatprep.subr.mxu0 0.0
    %2842 = vmatpush2.msra.mxu0 0.0
    %2843 = vmatprep.subr.mxu0 0.0
    %2844 = vmatpush2.msra.mxu0 0.0
    %2845 = vmatprep.subr.mxu0 0.0
    %2846 = vmatpush2.msra.mxu0 0.0
    %2847 = vmatprep.subr.mxu0 0.0
    %2848 = vmatpush2.msra.mxu0 0.0
    %2849 = vmatprep.subr.mxu0 0.0
    %2850 = vmatpush2.msra.mxu0 0.0
    %2851 = vmatprep.mubr.f32.mxu0 0.0
    %2852 = vmatmul.mubr.f32.gmra.mxu0 %v2785
    %v2853 = vpop.f32.mrf.mxu0
    %v2854 = vadd.f32 0.0, %v2853
    %v2855 = vpop.f32.mrf.mxu0
    %2856 = vdwg.mxu0
    %v2858 = vrot.slane %v2854, 4
    %v2860 = vadd.f32 %v2154, %v2858
    %v2861 = vxor.u32 %v2860, 2147483648
    %v2862 = vmul.f32 %v2861, 1.442695
    %v2863 = vpow.pop %v2862
    %v2864 = vadd.f32 %v2863, 1.0
    %v2865 = vrcp.pop %v2864
    %v2866 = vmul.f32 1.0, %v2865
    %v2867 = vtanh.pop %v2860
    %v2869 = vrot.slane %v2774, 6
    %v2871 = vmul.f32 %v2866, %v2869
    %2873 = vrot.lane.b32.xlu0 %v2867, 32
    %v2874 = vpop.permute.xlu0 %2873
    %v2876 = vmul.f32 %v2866, %v2874
    %2878 = vrot.lane.b32.xlu0 %v2876, 32
    %v2879 = vpop.permute.xlu0 %2878
    %v2881 = vadd.f32 %v2871, %v2879
    %v2882 = vtanh.pop %v2881
    %2884 = vrot.lane.b32.xlu0 %v2882, 32
    %v2885 = vpop.permute.xlu0 %2884
    %v2887 = vmul.f32 %v2866, %v2885
    %v2889 = vrot.slane %v2887, 4
    %2890 = vrot.lane.b32.xlu0 %v2889, 64
    %v2891 = vpop.permute.xlu0 %2890
    %v2892 = vsel %vm119, %v2891, 0
    %2894 = vmatprep.subr.mxu0 0.0
    %2895 = vmatpush1.msra.mxu0 0.0
    %2896 = vmatprep.subr.mxu0 0.0
    %2897 = vmatpush1.msra.mxu0 0.0
    %2898 = vmatprep.subr.mxu0 0.0
    %2899 = vmatpush1.msra.mxu0 0.0
    %2900 = vmatprep.subr.mxu0 0.0
    %2901 = vmatpush1.msra.mxu0 0.0
    %2902 = vmatprep.subr.mxu0 0.0
    %2903 = vmatpush1.msra.mxu0 0.0
    %2904 = vmatprep.subr.mxu0 0.0
    %2905 = vmatpush1.msra.mxu0 0.0
    %2906 = vmatprep.subr.mxu0 0.0
    %2907 = vmatpush1.msra.mxu0 0.0
    %2908 = vmatprep.subr.mxu0 0.0
    %2909 = vmatpush1.msra.mxu0 0.0
    %2910 = vmatprep.subr.mxu0 0.0
    %2911 = vmatpush1.msra.mxu0 0.0
    %2912 = vmatprep.subr.mxu0 0.0
    %2913 = vmatpush1.msra.mxu0 0.0
    %2914 = vmatprep.subr.mxu0 0.0
    %2915 = vmatpush1.msra.mxu0 0.0
    %2916 = vmatprep.subr.mxu0 0.0
    %2917 = vmatpush1.msra.mxu0 0.0
    %2918 = vmatprep.subr.mxu0 0.0
    %2919 = vmatpush1.msra.mxu0 %v1972
    %2920 = vmatprep.subr.mxu0 0.0
    %2921 = vmatpush1.msra.mxu0 %v1971
    %2922 = vmatprep.subr.mxu0 0.0
    %2923 = vmatpush1.msra.mxu0 %v1970
    %2924 = vmatprep.subr.mxu0 0.0
    %2925 = vmatpush1.msra.mxu0 %v1969
    %2926 = vmatprep.subr.mxu0 0.0
    %2927 = vmatpush2.msra.mxu0 0.0
    %2928 = vmatprep.subr.mxu0 0.0
    %2929 = vmatpush2.msra.mxu0 0.0
    %2930 = vmatprep.subr.mxu0 0.0
    %2931 = vmatpush2.msra.mxu0 0.0
    %2932 = vmatprep.subr.mxu0 0.0
    %2933 = vmatpush2.msra.mxu0 0.0
    %2934 = vmatprep.subr.mxu0 0.0
    %2935 = vmatpush2.msra.mxu0 0.0
    %2936 = vmatprep.subr.mxu0 0.0
    %2937 = vmatpush2.msra.mxu0 0.0
    %2938 = vmatprep.subr.mxu0 0.0
    %2939 = vmatpush2.msra.mxu0 0.0
    %2940 = vmatprep.subr.mxu0 0.0
    %2941 = vmatpush2.msra.mxu0 0.0
    %2942 = vmatprep.subr.mxu0 0.0
    %2943 = vmatpush2.msra.mxu0 0.0
    %2944 = vmatprep.subr.mxu0 0.0
    %2945 = vmatpush2.msra.mxu0 0.0
    %2946 = vmatprep.subr.mxu0 0.0
    %2947 = vmatpush2.msra.mxu0 0.0
    %2948 = vmatprep.subr.mxu0 0.0
    %2949 = vmatpush2.msra.mxu0 0.0
    %2950 = vmatprep.subr.mxu0 0.0
    %2951 = vmatpush2.msra.mxu0 0.0
    %2952 = vmatprep.subr.mxu0 0.0
    %2953 = vmatpush2.msra.mxu0 0.0
    %2954 = vmatprep.subr.mxu0 0.0
    %2955 = vmatpush2.msra.mxu0 0.0
    %2956 = vmatprep.subr.mxu0 0.0
    %2957 = vmatpush2.msra.mxu0 0.0
    %2958 = vmatprep.mubr.f32.mxu0 0.0
    %2959 = vmatmul.mubr.f32.gmra.mxu0 %v2892
    %v2960 = vpop.f32.mrf.mxu0
    %v2961 = vadd.f32 0.0, %v2960
    %v2962 = vpop.f32.mrf.mxu0
    %2963 = vdwg.mxu0
    %v2965 = vrot.slane %v2961, 2
    %v2967 = vadd.f32 %v2154, %v2965
    %v2968 = vxor.u32 %v2967, 2147483648
    %v2969 = vmul.f32 %v2968, 1.442695
    %v2970 = vpow.pop %v2969
    %v2971 = vadd.f32 %v2970, 1.0
    %v2972 = vrcp.pop %v2971
    %v2973 = vmul.f32 1.0, %v2972
    %v2974 = vtanh.pop %v2967
    %v2976 = vrot.slane %v2881, 6
    %v2978 = vmul.f32 %v2973, %v2976
    %2980 = vrot.lane.b32.xlu0 %v2974, 32
    %v2981 = vpop.permute.xlu0 %2980
    %v2983 = vmul.f32 %v2973, %v2981
    %2985 = vrot.lane.b32.xlu0 %v2983, 32
    %v2986 = vpop.permute.xlu0 %2985
    %v2988 = vadd.f32 %v2978, %v2986
    %v2989 = vtanh.pop %v2988
    %2991 = vrot.lane.b32.xlu0 %v2989, 32
    %v2992 = vpop.permute.xlu0 %2991
    %v2994 = vmul.f32 %v2973, %v2992
    %v2995 = vxor.u32 %v2155, 2147483648
    %v2996 = vmul.f32 %v2995, 1.442695
    %v2997 = vpow.pop %v2996
    %v2998 = vadd.f32 %v2997, 1.0
    %v2999 = vrcp.pop %v2998
    %v3000 = vmul.f32 1.0, %v2999
    %v3001 = vtanh.pop %v2155
    %v3002 = vmul.f32 %v3000, 0.0
    %3004 = vrot.lane.b32.xlu0 %v3001, 32
    %v3005 = vpop.permute.xlu0 %3004
    %v3007 = vmul.f32 %v3000, %v3005
    %3009 = vrot.lane.b32.xlu0 %v3007, 32
    %v3010 = vpop.permute.xlu0 %3009
    %v3012 = vadd.f32 %v3002, %v3010
    %v3013 = vtanh.pop %v3012
    %3015 = vrot.lane.b32.xlu0 %v3013, 32
    %v3016 = vpop.permute.xlu0 %3015
    %v3018 = vmul.f32 %v3000, %v3016
    %v3019 = vld [vmem:[%s9] sm:$0xff]
    %v3020 = vld [vmem:[%s9 + $0x8] sm:$0xff]
    %v3021 = vld [vmem:[%s9 + $0x10] sm:$0xff]
    %v3022 = vld [vmem:[%s9 + $0x18] sm:$0xff]
    %v3023 = vld [vmem:[%s9 + $0x20] sm:$0xff]
    %v3024 = vld [vmem:[%s9 + $0x28] sm:$0xff]
    %v3025 = vld [vmem:[%s9 + $0x30] sm:$0xff]
    %v3026 = vld [vmem:[%s9 + $0x38] sm:$0xff]
    %v3028 = vrot.slane %v3018, 6
    %3029 = vrot.lane.b32.xlu0 %v3028, 64
    %v3030 = vpop.permute.xlu0 %3029
    %v3031 = vsel %vm119, %v3030, 0
    %3033 = vmatprep.subr.mxu0 0.0
    %3034 = vmatpush1.msra.mxu0 0.0
    %3035 = vmatprep.subr.mxu0 0.0
    %3036 = vmatpush1.msra.mxu0 0.0
    %3037 = vmatprep.subr.mxu0 0.0
    %3038 = vmatpush1.msra.mxu0 0.0
    %3039 = vmatprep.subr.mxu0 0.0
    %3040 = vmatpush1.msra.mxu0 0.0
    %3041 = vmatprep.subr.mxu0 0.0
    %3042 = vmatpush1.msra.mxu0 0.0
    %3043 = vmatprep.subr.mxu0 0.0
    %3044 = vmatpush1.msra.mxu0 0.0
    %3045 = vmatprep.subr.mxu0 0.0
    %3046 = vmatpush1.msra.mxu0 0.0
    %3047 = vmatprep.subr.mxu0 0.0
    %3048 = vmatpush1.msra.mxu0 0.0
    %3049 = vmatprep.subr.mxu0 0.0
    %3050 = vmatpush1.msra.mxu0 0.0
    %3051 = vmatprep.subr.mxu0 0.0
    %3052 = vmatpush1.msra.mxu0 0.0
    %3053 = vmatprep.subr.mxu0 0.0
    %3054 = vmatpush1.msra.mxu0 0.0
    %3055 = vmatprep.subr.mxu0 0.0
    %3056 = vmatpush1.msra.mxu0 0.0
    %3057 = vmatprep.subr.mxu0 0.0
    %3058 = vmatpush1.msra.mxu0 %v3026
    %3059 = vmatprep.subr.mxu0 0.0
    %3060 = vmatpush1.msra.mxu0 %v3025
    %3061 = vmatprep.subr.mxu0 0.0
    %3062 = vmatpush1.msra.mxu0 %v3024
    %3063 = vmatprep.subr.mxu0 0.0
    %3064 = vmatpush1.msra.mxu0 %v3023
    %3065 = vmatprep.subr.mxu0 0.0
    %3066 = vmatpush2.msra.mxu0 0.0
    %3067 = vmatprep.subr.mxu0 0.0
    %3068 = vmatpush2.msra.mxu0 0.0
    %3069 = vmatprep.subr.mxu0 0.0
    %3070 = vmatpush2.msra.mxu0 0.0
    %3071 = vmatprep.subr.mxu0 0.0
    %3072 = vmatpush2.msra.mxu0 0.0
    %3073 = vmatprep.subr.mxu0 0.0
    %3074 = vmatpush2.msra.mxu0 0.0
    %3075 = vmatprep.subr.mxu0 0.0
    %3076 = vmatpush2.msra.mxu0 0.0
    %3077 = vmatprep.subr.mxu0 0.0
    %3078 = vmatpush2.msra.mxu0 0.0
    %3079 = vmatprep.subr.mxu0 0.0
    %3080 = vmatpush2.msra.mxu0 0.0
    %3081 = vmatprep.subr.mxu0 0.0
    %3082 = vmatpush2.msra.mxu0 0.0
    %3083 = vmatprep.subr.mxu0 0.0
    %3084 = vmatpush2.msra.mxu0 0.0
    %3085 = vmatprep.subr.mxu0 0.0
    %3086 = vmatpush2.msra.mxu0 0.0
    %3087 = vmatprep.subr.mxu0 0.0
    %3088 = vmatpush2.msra.mxu0 0.0
    %3089 = vmatprep.subr.mxu0 0.0
    %3090 = vmatpush2.msra.mxu0 0.0
    %3091 = vmatprep.subr.mxu0 0.0
    %3092 = vmatpush2.msra.mxu0 0.0
    %3093 = vmatprep.subr.mxu0 0.0
    %3094 = vmatpush2.msra.mxu0 0.0
    %3095 = vmatprep.subr.mxu0 0.0
    %3096 = vmatpush2.msra.mxu0 0.0
    %3097 = vmatprep.mubr.f32.mxu0 0.0
    %3098 = vmatmul.mubr.f32.gmra.mxu0 %v3031
    %v3099 = vpop.f32.mrf.mxu0
    %v3100 = vadd.f32 0.0, %v3099
    %v3101 = vpop.f32.mrf.mxu0
    %3102 = vdwg.mxu0
    %v3104 = vrot.slane %v2994, 6
    %3105 = vrot.lane.b32.xlu0 %v3104, 64
    %v3106 = vpop.permute.xlu0 %3105
    %v3107 = vsel %vm119, %v3106, 0
    %3109 = vmatprep.subr.mxu0 0.0
    %3110 = vmatpush1.msra.mxu0 0.0
    %3111 = vmatprep.subr.mxu0 0.0
    %3112 = vmatpush1.msra.mxu0 0.0
    %3113 = vmatprep.subr.mxu0 0.0
    %3114 = vmatpush1.msra.mxu0 0.0
    %3115 = vmatprep.subr.mxu0 0.0
    %3116 = vmatpush1.msra.mxu0 0.0
    %3117 = vmatprep.subr.mxu0 0.0
    %3118 = vmatpush1.msra.mxu0 0.0
    %3119 = vmatprep.subr.mxu0 0.0
    %3120 = vmatpush1.msra.mxu0 0.0
    %3121 = vmatprep.subr.mxu0 0.0
    %3122 = vmatpush1.msra.mxu0 0.0
    %3123 = vmatprep.subr.mxu0 0.0
    %3124 = vmatpush1.msra.mxu0 0.0
    %3125 = vmatprep.subr.mxu0 0.0
    %3126 = vmatpush1.msra.mxu0 0.0
    %3127 = vmatprep.subr.mxu0 0.0
    %3128 = vmatpush1.msra.mxu0 0.0
    %3129 = vmatprep.subr.mxu0 0.0
    %3130 = vmatpush1.msra.mxu0 0.0
    %3131 = vmatprep.subr.mxu0 0.0
    %3132 = vmatpush1.msra.mxu0 0.0
    %3133 = vmatprep.subr.mxu0 0.0
    %3134 = vmatpush1.msra.mxu0 %v3022
    %3135 = vmatprep.subr.mxu0 0.0
    %3136 = vmatpush1.msra.mxu0 %v3021
    %3137 = vmatprep.subr.mxu0 0.0
    %3138 = vmatpush1.msra.mxu0 %v3020
    %3139 = vmatprep.subr.mxu0 0.0
    %3140 = vmatpush1.msra.mxu0 %v3019
    %3141 = vmatprep.subr.mxu0 0.0
    %3142 = vmatpush2.msra.mxu0 0.0
    %3143 = vmatprep.subr.mxu0 0.0
    %3144 = vmatpush2.msra.mxu0 0.0
    %3145 = vmatprep.subr.mxu0 0.0
    %3146 = vmatpush2.msra.mxu0 0.0
    %3147 = vmatprep.subr.mxu0 0.0
    %3148 = vmatpush2.msra.mxu0 0.0
    %3149 = vmatprep.subr.mxu0 0.0
    %3150 = vmatpush2.msra.mxu0 0.0
    %3151 = vmatprep.subr.mxu0 0.0
    %3152 = vmatpush2.msra.mxu0 0.0
    %3153 = vmatprep.subr.mxu0 0.0
    %3154 = vmatpush2.msra.mxu0 0.0
    %3155 = vmatprep.subr.mxu0 0.0
    %3156 = vmatpush2.msra.mxu0 0.0
    %3157 = vmatprep.subr.mxu0 0.0
    %3158 = vmatpush2.msra.mxu0 0.0
    %3159 = vmatprep.subr.mxu0 0.0
    %3160 = vmatpush2.msra.mxu0 0.0
    %3161 = vmatprep.subr.mxu0 0.0
    %3162 = vmatpush2.msra.mxu0 0.0
    %3163 = vmatprep.subr.mxu0 0.0
    %3164 = vmatpush2.msra.mxu0 0.0
    %3165 = vmatprep.subr.mxu0 0.0
    %3166 = vmatpush2.msra.mxu0 0.0
    %3167 = vmatprep.subr.mxu0 0.0
    %3168 = vmatpush2.msra.mxu0 0.0
    %3169 = vmatprep.subr.mxu0 0.0
    %3170 = vmatpush2.msra.mxu0 0.0
    %3171 = vmatprep.subr.mxu0 0.0
    %3172 = vmatpush2.msra.mxu0 0.0
    %3173 = vmatprep.mubr.f32.mxu0 0.0
    %3174 = vmatmul.mubr.f32.gmra.mxu0 %v3107
    %v3175 = vpop.f32.mrf.mxu0
    %v3176 = vadd.f32 %v3100, %v3175
    %v3177 = vpop.f32.mrf.mxu0
    %3178 = vdwg.mxu0
    %v3179 = vld [vmem:[%s10] sm:$0x1]
    %v3181 = vlaneseq
    %v3182 = vshrl.u32 %v3181, 7
    %v3183 = vsub.s32 0, %v3182
    %v3184 = vrot.slane %v3179, %v3183
    %v3186 = vadd.f32 %v3176, %v3184
    %v3187 = vlaneseq
    %v3188 = vand.u32 %v3187, 127
    %vm3189 = vcmask 25600
    %v3190 = vsel %vm3189, %v3186, -inf
    %3191 = vmax.xlane.f32.xlu0 %v3190
    %v3192 = vpop.xlane.xlu0 %3191
    %vm3193 = vcmp.eq.f32.partialorder %v3186, %v3192
    %v3194 = vsel %vm3193, %v3188, 4
    %v3195 = vsel %vm3189, %v3194, 2147483647
    %v3196 = vand.u32 %v3195, 65535
    %v3197 = vshra.s32 %v3195, 16
    %v3198 = vcvt.s32.f32 %v3196
    %v3199 = vcvt.s32.f32 %v3197
    %3200 = vmin.xlane.f32.xlu0 %v3199
    %v3201 = vpop.xlane.xlu0 %3200
    %vm3202 = vcmp.eq.f32.partialorder %v3199, %v3201
    %v3203 = vsel %vm3202, %v3198, inf
    %3204 = vmin.xlane.f32.xlu0 %v3203
    %v3205 = vpop.xlane.xlu0 %3204
    %v3206 = vcvt.f32.s32 %v3205
    %v3207 = vcvt.f32.s32 %v3201
    %v3208 = vshll.u32 %v3207, 16
    %v3209 = vadd.s32 %v3208, %v3206
    %vm3210 = vcmask 1024
    %3211 = vst.msk [vmem:[%s11] sm:$0x3] %vm3210, %v3209
    // Predicated region
    $region62: #{bilstm_forward.1} parent=1 // pred_check
      _
    $region63: #{bilstm_forward.1} parent=1 // pred_check_branch
      %3213 = sbr.rel (0) target = $region65
    $region64: #{bilstm_forward.1} parent=1 // pred_region
      _
    $region65: #{bilstm_forward.1} parent=1 // pred_fallthru
      _
    // Predicated region
    $region66: #{bilstm_forward.1} parent=1 // pred_check
      _
    $region67: #{bilstm_forward.1} parent=1 // pred_check_branch
      %3215 = sbr.rel (0) target = $region69
    $region68: #{bilstm_forward.1} parent=1 // pred_region
      _
    $region69: #{bilstm_forward.1} parent=1 // pred_fallthru
      _
    %3216 = vsyncpa [#allocation5], 1
    %3217 = vsyncpa [#allocation7], 1
    %3218 = vsyncpa [#allocation10], 1

</llo_original>
